<compile_context>
chip_gen: v5e
topology: v5e:2x2
jax: 0.10.0
libtpu: 0.0.40
codegen_flags: <defaults>
</compile_context>

<pallas_src>
import functools
import math

import jax
import jax.numpy as jnp
from jax.experimental import pallas as pl
from jax.experimental.pallas import tpu as pltpu


def _quantize_kernel(x_ref, embed_ref, embed_t_ref, half_esq_ref,
                     q_ref, ind_ref, err_ref, *, n_embed):
    # x_ref      : (TM, dim)        input rows
    # embed_ref  : (dim, n_embed)   codebook (PyTorch buffer layout)
    # embed_t_ref: (n_embed, dim)   pre-transposed codebook for the lookup
    # half_esq_ref: (1, n_embed)    0.5 * ||e_j||^2, precomputed in the wrapper
    # q_ref      : (TM, dim)        quantized output (straight-through value)
    # ind_ref    : (TM, 1) int32    chosen code index per row
    # err_ref    : (TM, 1) f32      per-row sum of squared error (for `diff`)
    x = x_ref[...]                                                    # (TM, dim)

    # scores = x @ embed : single MXU matmul with K = dim.
    scores = jnp.dot(x, embed_ref[...],
                     preferred_element_type=jnp.float32)              # (TM, E)

    # argmin_j ||x - e_j||^2 == argmax_j (x.e_j - 0.5*||e_j||^2); the per-row
    # ||x||^2 constant is dropped (does not affect the argmin) and the
    # codebook norm is hoisted out of the kernel.
    neg = scores - half_esq_ref[...]                                  # (TM, E)

    best = jnp.max(neg, axis=1, keepdims=True)                        # (TM, 1)
    col = jax.lax.broadcasted_iota(jnp.int32, neg.shape, 1)           # (TM, E)
    # First index attaining the max (matches torch argmin tie behaviour).
    # jnp.argmax is not reliably lowered by Mosaic, so use the iota-min trick.
    masked = jnp.where(neg == best, col, n_embed)                     # (TM, E)
    idx = jnp.min(masked, axis=1, keepdims=True)                      # (TM, 1)

    # Codebook lookup as one-hot @ embed.T on the MXU (no gather, no implicit
    # transpose — embed_t is already (E, dim)).
    onehot = (col == idx).astype(jnp.float32)                         # (TM, E)
    q = jnp.dot(onehot, embed_t_ref[...],
                preferred_element_type=jnp.float32)                   # (TM, dim)

    err = q - x
    err_ref[...] = jnp.sum(err * err, axis=1, keepdims=True)          # per-row SSE
    ind_ref[...] = idx
    q_ref[...] = q      # straight-through forward value equals q exactly


def quantize_forward(x, embed, *, block_rows=512):
    """x: (..., dim) float32 (channel-last, as fed to Quantize);
       embed: (dim, n_embed) float32 (PyTorch buffer layout).
       Returns (quantize, diff, embed_ind)."""
    dim, n_embed = embed.shape
    lead = x.shape[:-1]
    M = math.prod(lead)
    flat = x.reshape(M, dim).astype(jnp.float32)

    embed_f = embed.astype(jnp.float32)                 # (dim, n_embed)
    embed_t = embed_f.T                                 # (n_embed, dim)
    half_e_sq = 0.5 * jnp.sum(embed_f * embed_f, axis=0, keepdims=True)  # (1, E)

    # Tile selection: pad rows so every tile is full and a multiple of 8
    # sublanes; force >= 2 tiles so both v7x TensorCores get work.
    num_tiles = max(1, -(-M // block_rows))
    if num_tiles == 1 and M >= 16:
        num_tiles = 2
    tm = max(8, ((-(-M // num_tiles) + 7) // 8) * 8)
    m_pad = tm * num_tiles
    if m_pad != M:
        flat = jnp.pad(flat, ((0, m_pad - M), (0, 0)))

    # VMEM budget: double-buffered x/q tiles, resident codebook (both layouts),
    # and the (TM, E) f32 intermediates; capped so it is safe on v7x (64 MiB).
    vmem_est = 4 * (6 * tm * dim + 4 * dim * n_embed + 6 * tm * n_embed + 8 * tm)
    vmem_limit = int(min(max(vmem_est, 16 * 1024 * 1024), 48 * 1024 * 1024))

    kernel = functools.partial(_quantize_kernel, n_embed=n_embed)

    q_flat, ind_flat, sq_err = pl.pallas_call(
        kernel,
        out_shape=(
            jax.ShapeDtypeStruct((m_pad, dim), jnp.float32),
            jax.ShapeDtypeStruct((m_pad, 1), jnp.int32),
            jax.ShapeDtypeStruct((m_pad, 1), jnp.float32),
        ),
        grid=(num_tiles,),
        in_specs=[
            pl.BlockSpec((tm, dim), lambda i: (i, 0)),
            pl.BlockSpec((dim, n_embed), lambda i: (0, 0)),
            pl.BlockSpec((n_embed, dim), lambda i: (0, 0)),
            pl.BlockSpec((1, n_embed), lambda i: (0, 0)),
        ],
        out_specs=(
            pl.BlockSpec((tm, dim), lambda i: (i, 0)),
            pl.BlockSpec((tm, 1), lambda i: (i, 0)),
            pl.BlockSpec((tm, 1), lambda i: (i, 0)),
        ),
        compiler_params=pltpu.CompilerParams(
            dimension_semantics=("parallel",),
            vmem_limit_bytes=vmem_limit),
    )(flat, embed_f, embed_t, half_e_sq)

    quantize = q_flat[:M].reshape(x.shape)
    embed_ind = ind_flat[:M, 0].reshape(lead)
    diff = jnp.sum(sq_err[:M]) / (M * dim)   # tiny (M,1) wrapper-side reduce
    # TODO(synk): training-mode EMA buffer updates (cluster_size / embed_avg /
    # embed.copy_) are stateful module mutations and are omitted from this
    # eval-mode forward kernel.
    return quantize, diff, embed_ind


def _reference(x, embed):
    """Pure-JAX mirror of the PyTorch forward (eval mode)."""
    dim, n_embed = embed.shape
    flatten = x.reshape(-1, dim)
    dist = (jnp.sum(flatten ** 2, axis=1, keepdims=True)
            - 2.0 * jnp.dot(flatten, embed, precision=jax.lax.Precision.HIGHEST)
            + jnp.sum(embed ** 2, axis=0, keepdims=True))
    embed_ind = jnp.argmax(-dist, axis=1)
    quantize = jnp.take(embed.T, embed_ind, axis=0).reshape(x.shape)
    diff = jnp.mean((quantize - x) ** 2)
    quantize_st = x + (quantize - x)
    return quantize_st, diff, embed_ind.reshape(x.shape[:-1])


if __name__ == "__main__":
    # Small shapes consistent with a VQ-VAE quantizer: (N, H, W, dim) input,
    # codebook (dim, n_embed).
    N, H, W, dim, n_embed = 2, 16, 16, 64, 512

    key = jax.random.PRNGKey(0)
    kx, ke = jax.random.split(key)
    x = jax.random.normal(kx, (N, H, W, dim), dtype=jnp.float32)
    embed = jax.random.normal(ke, (dim, n_embed), dtype=jnp.float32)

    quantize, diff, embed_ind = quantize_forward(x, embed)
    quantize = jax.block_until_ready(quantize)

    q_ref, d_ref, i_ref = _reference(x, embed)
    assert quantize.shape == x.shape
    assert embed_ind.shape == (N, H, W)
    assert jnp.array_equal(embed_ind, i_ref.astype(embed_ind.dtype))
    assert jnp.allclose(quantize, q_ref, atol=1e-5, rtol=1e-5)
    assert jnp.allclose(diff, d_ref, atol=1e-5, rtol=1e-5)

    print("KERNEL_OK")
</pallas_src>

<mosaic_0001>
module attributes {stable_mosaic.version = 11 : i64} {
  func.func @_quantize_kernel(%arg0: i32, %arg1: memref<256x64xf32, #tpu.memory_space<vmem>>, %arg2: memref<64x512xf32, #tpu.memory_space<vmem>>, %arg3: memref<512x64xf32, #tpu.memory_space<vmem>>, %arg4: memref<1x512xf32, #tpu.memory_space<vmem>>, %arg5: memref<256x64xf32, #tpu.memory_space<vmem>>, %arg6: memref<256x1xi32, #tpu.memory_space<vmem>>, %arg7: memref<256x1xf32, #tpu.memory_space<vmem>>) attributes {dimension_semantics = [#tpu.dimension_semantics<parallel>], iteration_bounds = array<i64: 2>, scalar_prefetch = 0 : i64, scratch_operands = 0 : i64, tpu.core_type = #tpu.core_type<tc>, window_params = [{transform_indices = @transform_0, window_bounds = array<i64: 256, 64>}, {pipeline_mode = #tpu.pipeline_mode<synchronous>, transform_indices = @transform_1, window_bounds = array<i64: 64, 512>}, {pipeline_mode = #tpu.pipeline_mode<synchronous>, transform_indices = @transform_2, window_bounds = array<i64: 512, 64>}, {pipeline_mode = #tpu.pipeline_mode<synchronous>, transform_indices = @transform_3, window_bounds = array<i64: 1, 512>}, {transform_indices = @transform_4, window_bounds = array<i64: 256, 64>}, {transform_indices = @transform_5, window_bounds = array<i64: 256, 1>}, {transform_indices = @transform_6, window_bounds = array<i64: 256, 1>}]} {
    %c0 = arith.constant 0 : index
    %c0_0 = arith.constant 0 : index
    %0 = vector.load %arg1[%c0, %c0_0] : memref<256x64xf32, #tpu.memory_space<vmem>>, vector<256x64xf32>
    %c0_1 = arith.constant 0 : index
    %c0_2 = arith.constant 0 : index
    %1 = vector.load %arg2[%c0_1, %c0_2] : memref<64x512xf32, #tpu.memory_space<vmem>>, vector<64x512xf32>
    %cst = arith.constant dense<0.000000e+00> : vector<256x512xf32>
    %2 = tpu.matmul %0, %1, %cst {dimension_numbers = #tpu.dot_dimension_numbers<[1], [0], [0], [1], [0, 0, 1, 1], [], []>} : vector<256x64xf32>, vector<64x512xf32>, vector<256x512xf32> -> vector<256x512xf32>
    %c0_3 = arith.constant 0 : index
    %c0_4 = arith.constant 0 : index
    %3 = vector.load %arg4[%c0_3, %c0_4] : memref<1x512xf32, #tpu.memory_space<vmem>>, vector<1x512xf32>
    %4 = vector.broadcast %3 : vector<1x512xf32> to vector<256x512xf32>
    %5 = arith.subf %2, %4 : vector<256x512xf32>
    %cst_5 = arith.constant dense<0xFF800000> : vector<256xf32>
    %6 = vector.multi_reduction <maximumf>, %5, %cst_5 [1] : vector<256x512xf32> to vector<256xf32>
    %7 = vector.shape_cast %6 : vector<256xf32> to vector<256x1xf32>
    %8 = tpu.iota {dimensions = array<i32: 1>} : vector<256x512xi32>
    %9 = vector.broadcast %7 : vector<256x1xf32> to vector<256x512xf32>
    %10 = arith.cmpf oeq, %5, %9 : vector<256x512xf32>
    %c512_i32 = arith.constant 512 : i32
    %11 = vector.broadcast %c512_i32 : i32 to vector<256x512xi32>
    %12 = arith.select %10, %8, %11 : vector<256x512xi1>, vector<256x512xi32>
    %cst_6 = arith.constant dense<2147483647> : vector<256xi32>
    %13 = vector.multi_reduction <minsi>, %12, %cst_6 [1] : vector<256x512xi32> to vector<256xi32>
    %14 = vector.shape_cast %13 : vector<256xi32> to vector<256x1xi32>
    %15 = vector.broadcast %14 : vector<256x1xi32> to vector<256x512xi32>
    %16 = arith.cmpi eq, %8, %15 : vector<256x512xi32>
    %17 = arith.extui %16 : vector<256x512xi1> to vector<256x512xi32>
    %18 = arith.sitofp %17 : vector<256x512xi32> to vector<256x512xf32>
    %c0_7 = arith.constant 0 : index
    %c0_8 = arith.constant 0 : index
    %19 = vector.load %arg3[%c0_7, %c0_8] : memref<512x64xf32, #tpu.memory_space<vmem>>, vector<512x64xf32>
    %cst_9 = arith.constant dense<0.000000e+00> : vector<256x64xf32>
    %20 = tpu.matmul %18, %19, %cst_9 {dimension_numbers = #tpu.dot_dimension_numbers<[1], [0], [0], [1], [0, 0, 1, 1], [], []>} : vector<256x512xf32>, vector<512x64xf32>, vector<256x64xf32> -> vector<256x64xf32>
    %21 = arith.subf %20, %0 : vector<256x64xf32>
    %22 = arith.mulf %21, %21 : vector<256x64xf32>
    %cst_10 = arith.constant dense<0.000000e+00> : vector<256xf32>
    %23 = vector.multi_reduction <add>, %22, %cst_10 [1] : vector<256x64xf32> to vector<256xf32>
    %24 = vector.shape_cast %23 : vector<256xf32> to vector<256x1xf32>
    %c0_11 = arith.constant 0 : index
    %c0_12 = arith.constant 0 : index
    %25 = vector.load %arg7[%c0_11, %c0_12] : memref<256x1xf32, #tpu.memory_space<vmem>>, vector<256x1xf32>
    tpu.vector_store %arg7[%c0_11, %c0_12], %24 {strides = array<i32>} : memref<256x1xf32, #tpu.memory_space<vmem>>, vector<256x1xf32>,
    %c0_13 = arith.constant 0 : index
    %c0_14 = arith.constant 0 : index
    %26 = vector.load %arg6[%c0_13, %c0_14] : memref<256x1xi32, #tpu.memory_space<vmem>>, vector<256x1xi32>
    tpu.vector_store %arg6[%c0_13, %c0_14], %14 {strides = array<i32>} : memref<256x1xi32, #tpu.memory_space<vmem>>, vector<256x1xi32>,
    %c0_15 = arith.constant 0 : index
    %c0_16 = arith.constant 0 : index
    %27 = vector.load %arg5[%c0_15, %c0_16] : memref<256x64xf32, #tpu.memory_space<vmem>>, vector<256x64xf32>
    tpu.vector_store %arg5[%c0_15, %c0_16], %20 {strides = array<i32>} : memref<256x64xf32, #tpu.memory_space<vmem>>, vector<256x64xf32>,
    return
  }
  func.func @transform_0(%arg0: i32) -> (i32, i32) {
    %c0_i32 = arith.constant 0 : i32
    %c0_i32_0 = arith.constant 0 : i32
    return %arg0, %c0_i32 : i32, i32
  }
  func.func @transform_1(%arg0: i32) -> (i32, i32) {
    %c0_i32 = arith.constant 0 : i32
    %c0_i32_0 = arith.constant 0 : i32
    %c0_i32_1 = arith.constant 0 : i32
    return %c0_i32, %c0_i32_0 : i32, i32
  }
  func.func @transform_2(%arg0: i32) -> (i32, i32) {
    %c0_i32 = arith.constant 0 : i32
    %c0_i32_0 = arith.constant 0 : i32
    %c0_i32_1 = arith.constant 0 : i32
    return %c0_i32, %c0_i32_0 : i32, i32
  }
  func.func @transform_3(%arg0: i32) -> (i32, i32) {
    %c0_i32 = arith.constant 0 : i32
    %c0_i32_0 = arith.constant 0 : i32
    %c0_i32_1 = arith.constant 0 : i32
    return %c0_i32, %c0_i32_0 : i32, i32
  }
  func.func @transform_4(%arg0: i32) -> (i32, i32) {
    %c0_i32 = arith.constant 0 : i32
    %c0_i32_0 = arith.constant 0 : i32
    return %arg0, %c0_i32 : i32, i32
  }
  func.func @transform_5(%arg0: i32) -> (i32, i32) {
    %c0_i32 = arith.constant 0 : i32
    %c0_i32_0 = arith.constant 0 : i32
    return %arg0, %c0_i32 : i32, i32
  }
  func.func @transform_6(%arg0: i32) -> (i32, i32) {
    %c0_i32 = arith.constant 0 : i32
    %c0_i32_0 = arith.constant 0 : i32
    return %arg0, %c0_i32 : i32, i32
  }
}

</mosaic_0001>

<llo_original>
// kernel: tpu_custom_call.1
$region0: #{tpu_custom_call.1}
  #allocation0 [shape = 'u32[]', space=smem, size = 0x4, offset = 0x4, fixed_abs, tag = 'smem constant byte address 0x4 - core index']
  #allocation1 [shape = 'u32[72,128]{1,0:T(1,128)}', space=vmem, size = 0x9000, scoped, tag = 'internal scratch']
  %s0 = inlined_call_operand.vmem [shape: f32[512,64], index: 0, kind: input, shape index: {}]
  %s1 = inlined_call_operand.vmem [shape: f32[64,512], index: 1, kind: input, shape index: {}]
  %s2 = inlined_call_operand.vmem [shape: f32[512,64], index: 2, kind: input, shape index: {}]
  %s3 = inlined_call_operand.vmem [shape: f32[1,512], index: 3, kind: input, shape index: {}]
  %s4 = inlined_call_operand.vmem [shape: f32[512,64], index: 4, kind: output, shape index: {0}]
  %s5 = inlined_call_operand.vmem [shape: s32[512,1], index: 5, kind: output, shape index: {1}]
  %s6 = inlined_call_operand.vmem [shape: f32[512,1], index: 6, kind: output, shape index: {2}]
  %7 = xla_tuple %s4, %s5, %s6
  %s8 = sld [smem:[#allocation0]]
  $region65: #{tpu_custom_call.1} parent=0
    _
  %s10 = ssub.s32 1, %s8
  %s11 = scalar_select 0, %s10, %s8
  loop: start=0, step=1, limit=4
  $region2: #{tpu_custom_call.1} parent=0 // loop_pre_header
    _
  $region3: #{tpu_custom_call.1} parent=0 // loop_header
    %s13 = sphi 0, %s17
    %p14 = scmp.ge.s32.totalorder %s13, 4
    %s23 = sphi 0, %s25
    %s26 = sphi 0, %s23
    %s27 = sphi 0, %s26
    %s43 = sphi 0, %s27
    %s47 = sphi 0, %s47
    %s49 = sphi 0, %s47
    %s50 = sphi 0, %s49
    %s64 = sphi 0, %s50
    %s68 = sphi 0, %s68
    %s70 = sphi 0, %s68
    %s71 = sphi 0, %s70
    %s85 = sphi 0, %s71
    %s89 = sphi 0, %s89
    %s91 = sphi 0, %s89
    %s92 = sphi 0, %s91
    %s106 = sphi 0, %s92
    %s112 = sphi 0, %s114
    %s115 = sphi 0, %s112
    %s116 = sphi 0, %s115
    %s132 = sphi 0, %s116
    %s138 = sphi 0, %s140
    %s141 = sphi 0, %s138
    %s142 = sphi 0, %s141
    %s158 = sphi 0, %s142
    %s164 = sphi 0, %s166
    %s167 = sphi 0, %s164
    %s168 = sphi 0, %s167
    %s184 = sphi 0, %s168
  $region4: #{tpu_custom_call.1} parent=0 // loop_header_branch
    %16 = sbr.rel (%p14) target = $region8
  $region5: #{tpu_custom_call.1} parent=0 // loop_body
    %s18 = ssub.s32 %s13, 1
    %s19 = ssub.s32 %s13, 2
    %s20 = sadd.s32 %s13, 1
    %s21 = ssub.s32 %s13, %s20
    %p22 = scmp.eq.s32.totalorder %s21, 0
    %s24 = sadd.s32 %s23, 1
    %s25 = scalar_select %p22, %s23, %s24
    %p28 = pneg %p22
    %p29 = scmp.eq.s32.totalorder %s13, 1
    %p30 = por %p28, %p29
    %p31 = scmp.ne.s32.totalorder %s23, %s26
    %p32 = scmp.eq.s32.totalorder %s13, 0
    %p33 = por %p31, %p32
    %p34 = scmp.ne.s32.totalorder %s23, %s26
    %p35 = scmp.eq.s32.totalorder %s18, 1
    %p36 = por %p34, %p35
    %p37 = scmp.ne.s32.totalorder %s26, %s27
    %p38 = scmp.eq.s32.totalorder %s18, 0
    %p39 = por %p37, %p38
    %p40 = scmp.ne.s32.totalorder %s26, %s27
    %p41 = scmp.eq.s32.totalorder %s19, 1
    %p42 = por %p40, %p41
    %p44 = scmp.ne.s32.totalorder %s27, %s43
    %p45 = scmp.eq.s32.totalorder %s19, 0
    %p46 = por %p44, %p45
    %s48 = sadd.s32 %s47, 1
    %p51 = scmp.eq.s32.totalorder %s13, 1
    %p52 = scmp.ne.s32.totalorder %s47, %s49
    %p53 = scmp.eq.s32.totalorder %s13, 0
    %p54 = por %p52, %p53
    %p55 = scmp.ne.s32.totalorder %s47, %s49
    %p56 = scmp.eq.s32.totalorder %s18, 1
    %p57 = por %p55, %p56
    %p58 = scmp.ne.s32.totalorder %s49, %s50
    %p59 = scmp.eq.s32.totalorder %s18, 0
    %p60 = por %p58, %p59
    %p61 = scmp.ne.s32.totalorder %s49, %s50
    %p62 = scmp.eq.s32.totalorder %s19, 1
    %p63 = por %p61, %p62
    %p65 = scmp.ne.s32.totalorder %s50, %s64
    %p66 = scmp.eq.s32.totalorder %s19, 0
    %p67 = por %p65, %p66
    %s69 = sadd.s32 %s68, 1
    %p72 = scmp.eq.s32.totalorder %s13, 1
    %p73 = scmp.ne.s32.totalorder %s68, %s70
    %p74 = scmp.eq.s32.totalorder %s13, 0
    %p75 = por %p73, %p74
    %p76 = scmp.ne.s32.totalorder %s68, %s70
    %p77 = scmp.eq.s32.totalorder %s18, 1
    %p78 = por %p76, %p77
    %p79 = scmp.ne.s32.totalorder %s70, %s71
    %p80 = scmp.eq.s32.totalorder %s18, 0
    %p81 = por %p79, %p80
    %p82 = scmp.ne.s32.totalorder %s70, %s71
    %p83 = scmp.eq.s32.totalorder %s19, 1
    %p84 = por %p82, %p83
    %p86 = scmp.ne.s32.totalorder %s71, %s85
    %p87 = scmp.eq.s32.totalorder %s19, 0
    %p88 = por %p86, %p87
    %s90 = sadd.s32 %s89, 1
    %p93 = scmp.eq.s32.totalorder %s13, 1
    %p94 = scmp.ne.s32.totalorder %s89, %s91
    %p95 = scmp.eq.s32.totalorder %s13, 0
    %p96 = por %p94, %p95
    %p97 = scmp.ne.s32.totalorder %s89, %s91
    %p98 = scmp.eq.s32.totalorder %s18, 1
    %p99 = por %p97, %p98
    %p100 = scmp.ne.s32.totalorder %s91, %s92
    %p101 = scmp.eq.s32.totalorder %s18, 0
    %p102 = por %p100, %p101
    %p103 = scmp.ne.s32.totalorder %s91, %s92
    %p104 = scmp.eq.s32.totalorder %s19, 1
    %p105 = por %p103, %p104
    %p107 = scmp.ne.s32.totalorder %s92, %s106
    %p108 = scmp.eq.s32.totalorder %s19, 0
    %p109 = por %p107, %p108
    %s110 = ssub.s32 %s13, %s20
    %p111 = scmp.eq.s32.totalorder %s110, 0
    %s113 = sadd.s32 %s112, 1
    %s114 = scalar_select %p111, %s112, %s113
    %p117 = pneg %p111
    %p118 = scmp.eq.s32.totalorder %s13, 1
    %p119 = por %p117, %p118
    %p120 = scmp.ne.s32.totalorder %s112, %s115
    %p121 = scmp.eq.s32.totalorder %s13, 0
    %p122 = por %p120, %p121
    %p123 = scmp.ne.s32.totalorder %s112, %s115
    %p124 = scmp.eq.s32.totalorder %s18, 1
    %p125 = por %p123, %p124
    %p126 = scmp.ne.s32.totalorder %s115, %s116
    %p127 = scmp.eq.s32.totalorder %s18, 0
    %p128 = por %p126, %p127
    %p129 = scmp.ne.s32.totalorder %s115, %s116
    %p130 = scmp.eq.s32.totalorder %s19, 1
    %p131 = por %p129, %p130
    %p133 = scmp.ne.s32.totalorder %s116, %s132
    %p134 = scmp.eq.s32.totalorder %s19, 0
    %p135 = por %p133, %p134
    %s136 = ssub.s32 %s13, %s20
    %p137 = scmp.eq.s32.totalorder %s136, 0
    %s139 = sadd.s32 %s138, 1
    %s140 = scalar_select %p137, %s138, %s139
    %p143 = pneg %p137
    %p144 = scmp.eq.s32.totalorder %s13, 1
    %p145 = por %p143, %p144
    %p146 = scmp.ne.s32.totalorder %s138, %s141
    %p147 = scmp.eq.s32.totalorder %s13, 0
    %p148 = por %p146, %p147
    %p149 = scmp.ne.s32.totalorder %s138, %s141
    %p150 = scmp.eq.s32.totalorder %s18, 1
    %p151 = por %p149, %p150
    %p152 = scmp.ne.s32.totalorder %s141, %s142
    %p153 = scmp.eq.s32.totalorder %s18, 0
    %p154 = por %p152, %p153
    %p155 = scmp.ne.s32.totalorder %s141, %s142
    %p156 = scmp.eq.s32.totalorder %s19, 1
    %p157 = por %p155, %p156
    %p159 = scmp.ne.s32.totalorder %s142, %s158
    %p160 = scmp.eq.s32.totalorder %s19, 0
    %p161 = por %p159, %p160
    %s162 = ssub.s32 %s13, %s20
    %p163 = scmp.eq.s32.totalorder %s162, 0
    %s165 = sadd.s32 %s164, 1
    %s166 = scalar_select %p163, %s164, %s165
    %p169 = pneg %p163
    %p170 = scmp.eq.s32.totalorder %s13, 1
    %p171 = por %p169, %p170
    %p172 = scmp.ne.s32.totalorder %s164, %s167
    %p173 = scmp.eq.s32.totalorder %s13, 0
    %p174 = por %p172, %p173
    %p175 = scmp.ne.s32.totalorder %s164, %s167
    %p176 = scmp.eq.s32.totalorder %s18, 1
    %p177 = por %p175, %p176
    %p178 = scmp.ne.s32.totalorder %s167, %s168
    %p179 = scmp.eq.s32.totalorder %s18, 0
    %p180 = por %p178, %p179
    %p181 = scmp.ne.s32.totalorder %s167, %s168
    %p182 = scmp.eq.s32.totalorder %s19, 1
    %p183 = por %p181, %p182
    %p185 = scmp.ne.s32.totalorder %s168, %s184
    %p186 = scmp.eq.s32.totalorder %s19, 0
    %p187 = por %p185, %p186
    %p188 = scmp.le.s32.totalorder 1, %s13
    %p189 = scmp.lt.s32.totalorder %s13, 3
    %p190 = pnand %p188, %p189
    %p191 = pneg %p190
    // Predicated region
    $region9: #{tpu_custom_call.1} parent=5 // pred_check
      _
    $region10: #{tpu_custom_call.1} parent=5 // pred_check_branch
      %193 = sbr.rel (%p190) target = $region12
    $region11: #{tpu_custom_call.1} parent=5 // pred_region
      %s194 = ssub.s32 %s13, 1
      // Predicated region
      $region13: #{tpu_custom_call.1} parent=11 // pred_check
        %p195 = pneg %p60
      $region14: #{tpu_custom_call.1} parent=11 // pred_check_branch
        %197 = sbr.rel (%p195) target = $region16
      $region15: #{tpu_custom_call.1} parent=11 // pred_region
        _
      $region16: #{tpu_custom_call.1} parent=11 // pred_fallthru
        _
      // Predicated region
      $region17: #{tpu_custom_call.1} parent=11 // pred_check
        %p198 = pneg %p81
      $region18: #{tpu_custom_call.1} parent=11 // pred_check_branch
        %200 = sbr.rel (%p198) target = $region20
      $region19: #{tpu_custom_call.1} parent=11 // pred_region
        _
      $region20: #{tpu_custom_call.1} parent=11 // pred_fallthru
        _
      // Predicated region
      $region21: #{tpu_custom_call.1} parent=11 // pred_check
        %p201 = pneg %p102
      $region22: #{tpu_custom_call.1} parent=11 // pred_check_branch
        %203 = sbr.rel (%p201) target = $region24
      $region23: #{tpu_custom_call.1} parent=11 // pred_region
        _
      $region24: #{tpu_custom_call.1} parent=11 // pred_fallthru
        _
    $region12: #{tpu_custom_call.1} parent=5 // pred_fallthru
      _
    %p204 = scmp.lt.s32.totalorder %s13, 2
    // Predicated region
    $region25: #{tpu_custom_call.1} parent=5 // pred_check
      %p205 = pneg %p204
    $region26: #{tpu_custom_call.1} parent=5 // pred_check_branch
      %207 = sbr.rel (%p205) target = $region28
    $region27: #{tpu_custom_call.1} parent=5 // pred_region
      // Predicated region
      $region29: #{tpu_custom_call.1} parent=27 // pred_check
        %p208 = pneg %p33
      $region30: #{tpu_custom_call.1} parent=27 // pred_check_branch
        %210 = sbr.rel (%p208) target = $region32
      $region31: #{tpu_custom_call.1} parent=27 // pred_region
        %s211 = smul.u32 32, %s13
        %p212 = scmp.lt.s32.totalorder %s211, 63
        %s213 = scalar_select %p212, %s211, 63
        %s214 = smul.addr %s213, 8
        %s215 = scalar_lea.vmem %s0, %s214
        %s216 = smul.u32 32, %s13
      $region32: #{tpu_custom_call.1} parent=27 // pred_fallthru
        _
    $region28: #{tpu_custom_call.1} parent=5 // pred_fallthru
      _
    %p217 = scmp.le.s32.totalorder 1, %s13
    %p218 = scmp.lt.s32.totalorder %s13, 3
    %p219 = pnand %p217, %p218
    %p220 = pneg %p219
    // Predicated region
    $region33: #{tpu_custom_call.1} parent=5 // pred_check
      _
    $region34: #{tpu_custom_call.1} parent=5 // pred_check_branch
      %222 = sbr.rel (%p219) target = $region36
    $region35: #{tpu_custom_call.1} parent=5 // pred_region
      %s223 = ssub.s32 %s13, 1
      %s224 = smul.u32 32, %s18
      %p225 = scmp.lt.s32.totalorder %s224, 63
      %s226 = scalar_select %p225, %s224, 63
      %s227 = smul.addr %s226, 8
      %s228 = scalar_lea.vmem %s0, %s227
      %p229 = pneg %p39
      %p230 = pneg %p36
      %p231 = pneg %p60
      %p232 = pneg %p57
      %p233 = pneg %p81
      %p234 = pneg %p78
      %p235 = pneg %p102
      %p236 = pneg %p99
      %p237 = pneg %p128
      %p238 = pneg %p125
      %s239 = smul.u32 32, %s18
      %p240 = scmp.lt.s32.totalorder %s239, 63
      %s241 = scalar_select %p240, %s239, 63
      %s242 = smul.addr %s241, 8
      %s243 = scalar_lea.vmem %s4, %s242
      %p244 = pneg %p154
      %p245 = pneg %p151
      %s246 = smul.u32 32, %s18
      %p247 = scmp.lt.s32.totalorder %s246, 63
      %s248 = scalar_select %p247, %s246, 63
      %s249 = smul.addr %s248, 8
      %s250 = scalar_lea.vmem %s5, %s249
      %p251 = pneg %p180
      %p252 = pneg %p177
      %s253 = smul.u32 32, %s18
      %p254 = scmp.lt.s32.totalorder %s253, 63
      %s255 = scalar_select %p254, %s253, 63
      %s256 = smul.addr %s255, 8
      %s257 = scalar_lea.vmem %s6, %s256
      %s258 = smul.u32 32, %s18
      %p259 = scmp.lt.s32.totalorder %s258, 63
      %s260 = scalar_select %p259, %s258, 63
      %s261 = smul.addr %s260, 8
      %s262 = scalar_lea.vmem %s0, %s261
      %s263 = smul.u32 32, %s18
      %s264 = smul.u32 32, %s18
      %p265 = scmp.lt.s32.totalorder %s264, 63
      %s266 = scalar_select %p265, %s264, 63
      %s267 = smul.addr %s266, 8
      %s268 = scalar_lea.vmem %s4, %s267
      %s269 = smul.u32 32, %s18
      %s270 = smul.u32 32, %s18
      %p271 = scmp.lt.s32.totalorder %s270, 63
      %s272 = scalar_select %p271, %s270, 63
      %s273 = smul.addr %s272, 8
      %s274 = scalar_lea.vmem %s5, %s273
      %s275 = smul.u32 32, %s18
      %s276 = smul.u32 32, %s18
      %p277 = scmp.lt.s32.totalorder %s276, 63
      %s278 = scalar_select %p277, %s276, 63
      %s279 = smul.addr %s278, 8
      %s280 = scalar_lea.vmem %s6, %s279
      %s281 = smul.u32 32, %s18
      %v282 = vld [vmem:[%s262] sm:$0xff]
      %v283 = vld [vmem:[%s262 + $0x8] sm:$0xff]
      %v284 = vld [vmem:[%s262 + $0x10] sm:$0xff]
      %v285 = vld [vmem:[%s262 + $0x18] sm:$0xff]
      %v286 = vld [vmem:[%s262 + $0x20] sm:$0xff]
      %v287 = vld [vmem:[%s262 + $0x28] sm:$0xff]
      %v288 = vld [vmem:[%s262 + $0x30] sm:$0xff]
      %v289 = vld [vmem:[%s262 + $0x38] sm:$0xff]
      %v290 = vld [vmem:[%s262 + $0x40] sm:$0xff]
      %v291 = vld [vmem:[%s262 + $0x48] sm:$0xff]
      %v292 = vld [vmem:[%s262 + $0x50] sm:$0xff]
      %v293 = vld [vmem:[%s262 + $0x58] sm:$0xff]
      %v294 = vld [vmem:[%s262 + $0x60] sm:$0xff]
      %v295 = vld [vmem:[%s262 + $0x68] sm:$0xff]
      %v296 = vld [vmem:[%s262 + $0x70] sm:$0xff]
      %v297 = vld [vmem:[%s262 + $0x78] sm:$0xff]
      %v298 = vld [vmem:[%s262 + $0x80] sm:$0xff]
      %v299 = vld [vmem:[%s262 + $0x88] sm:$0xff]
      %v300 = vld [vmem:[%s262 + $0x90] sm:$0xff]
      %v301 = vld [vmem:[%s262 + $0x98] sm:$0xff]
      %v302 = vld [vmem:[%s262 + $0xa0] sm:$0xff]
      %v303 = vld [vmem:[%s262 + $0xa8] sm:$0xff]
      %v304 = vld [vmem:[%s262 + $0xb0] sm:$0xff]
      %v305 = vld [vmem:[%s262 + $0xb8] sm:$0xff]
      %v306 = vld [vmem:[%s262 + $0xc0] sm:$0xff]
      %v307 = vld [vmem:[%s262 + $0xc8] sm:$0xff]
      %v308 = vld [vmem:[%s262 + $0xd0] sm:$0xff]
      %v309 = vld [vmem:[%s262 + $0xd8] sm:$0xff]
      %v310 = vld [vmem:[%s262 + $0xe0] sm:$0xff]
      %v311 = vld [vmem:[%s262 + $0xe8] sm:$0xff]
      %v312 = vld [vmem:[%s262 + $0xf0] sm:$0xff]
      %v313 = vld [vmem:[%s262 + $0xf8] sm:$0xff]
      %v314 = vld [vmem:[%s1] sm:$0xff]
      %v315 = vld [vmem:[%s1 + $0x8] sm:$0xff]
      %v316 = vld [vmem:[%s1 + $0x10] sm:$0xff]
      %v317 = vld [vmem:[%s1 + $0x18] sm:$0xff]
      %v318 = vld [vmem:[%s1 + $0x20] sm:$0xff]
      %v319 = vld [vmem:[%s1 + $0x28] sm:$0xff]
      %v320 = vld [vmem:[%s1 + $0x30] sm:$0xff]
      %v321 = vld [vmem:[%s1 + $0x38] sm:$0xff]
      %v322 = vld [vmem:[%s1 + $0x40] sm:$0xff]
      %v323 = vld [vmem:[%s1 + $0x48] sm:$0xff]
      %v324 = vld [vmem:[%s1 + $0x50] sm:$0xff]
      %v325 = vld [vmem:[%s1 + $0x58] sm:$0xff]
      %v326 = vld [vmem:[%s1 + $0x60] sm:$0xff]
      %v327 = vld [vmem:[%s1 + $0x68] sm:$0xff]
      %v328 = vld [vmem:[%s1 + $0x70] sm:$0xff]
      %v329 = vld [vmem:[%s1 + $0x78] sm:$0xff]
      %v330 = vld [vmem:[%s1 + $0x80] sm:$0xff]
      %v331 = vld [vmem:[%s1 + $0x88] sm:$0xff]
      %v332 = vld [vmem:[%s1 + $0x90] sm:$0xff]
      %v333 = vld [vmem:[%s1 + $0x98] sm:$0xff]
      %v334 = vld [vmem:[%s1 + $0xa0] sm:$0xff]
      %v335 = vld [vmem:[%s1 + $0xa8] sm:$0xff]
      %v336 = vld [vmem:[%s1 + $0xb0] sm:$0xff]
      %v337 = vld [vmem:[%s1 + $0xb8] sm:$0xff]
      %v338 = vld [vmem:[%s1 + $0xc0] sm:$0xff]
      %v339 = vld [vmem:[%s1 + $0xc8] sm:$0xff]
      %v340 = vld [vmem:[%s1 + $0xd0] sm:$0xff]
      %v341 = vld [vmem:[%s1 + $0xd8] sm:$0xff]
      %v342 = vld [vmem:[%s1 + $0xe0] sm:$0xff]
      %v343 = vld [vmem:[%s1 + $0xe8] sm:$0xff]
      %v344 = vld [vmem:[%s1 + $0xf0] sm:$0xff]
      %v345 = vld [vmem:[%s1 + $0xf8] sm:$0xff]
      %vm346 = vcmask 523264
      %v348 = vsel %vm346, %v282, 0
      %v351 = vsel %vm346, %v283, 0
      %v354 = vsel %vm346, %v284, 0
      %v357 = vsel %vm346, %v285, 0
      %v360 = vsel %vm346, %v286, 0
      %v363 = vsel %vm346, %v287, 0
      %v366 = vsel %vm346, %v288, 0
      %v369 = vsel %vm346, %v289, 0
      %v372 = vsel %vm346, %v290, 0
      %v375 = vsel %vm346, %v291, 0
      %v378 = vsel %vm346, %v292, 0
      %v381 = vsel %vm346, %v293, 0
      %v384 = vsel %vm346, %v294, 0
      %v387 = vsel %vm346, %v295, 0
      %v390 = vsel %vm346, %v296, 0
      %v393 = vsel %vm346, %v297, 0
      %v396 = vsel %vm346, %v298, 0
      %v399 = vsel %vm346, %v299, 0
      %v402 = vsel %vm346, %v300, 0
      %v405 = vsel %vm346, %v301, 0
      %v408 = vsel %vm346, %v302, 0
      %v411 = vsel %vm346, %v303, 0
      %v414 = vsel %vm346, %v304, 0
      %v417 = vsel %vm346, %v305, 0
      %v420 = vsel %vm346, %v306, 0
      %v423 = vsel %vm346, %v307, 0
      %v426 = vsel %vm346, %v308, 0
      %v429 = vsel %vm346, %v309, 0
      %v432 = vsel %vm346, %v310, 0
      %v435 = vsel %vm346, %v311, 0
      %v438 = vsel %vm346, %v312, 0
      %v441 = vsel %vm346, %v313, 0
      %443 = vmatpush.msra.mxu0 0.0
      %444 = vmatpush.msra.mxu0 0.0
      %445 = vmatpush.msra.mxu0 0.0
      %446 = vmatpush.msra.mxu0 0.0
      %447 = vmatpush.msra.mxu0 0.0
      %448 = vmatpush.msra.mxu0 0.0
      %449 = vmatpush.msra.mxu0 0.0
      %450 = vmatpush.msra.mxu0 0.0
      %451 = vmatpush.msra.mxu0 %v342
      %452 = vmatpush.msra.mxu0 %v338
      %453 = vmatpush.msra.mxu0 %v334
      %454 = vmatpush.msra.mxu0 %v330
      %455 = vmatpush.msra.mxu0 %v326
      %456 = vmatpush.msra.mxu0 %v322
      %457 = vmatpush.msra.mxu0 %v318
      %458 = vmatpush.msra.mxu0 %v314
      %459 = vmatmul.f32.gmra.mxu0 %v348
      %v460 = vpop.f32.mrf.mxu0
      %v461 = vadd.f32 0.0, %v460
      %462 = vmatmul.f32.gmra.mxu0 %v351
      %v463 = vpop.f32.mrf.mxu0
      %v464 = vadd.f32 0.0, %v463
      %465 = vmatmul.f32.gmra.mxu0 %v354
      %v466 = vpop.f32.mrf.mxu0
      %v467 = vadd.f32 0.0, %v466
      %468 = vmatmul.f32.gmra.mxu0 %v357
      %v469 = vpop.f32.mrf.mxu0
      %v470 = vadd.f32 0.0, %v469
      %471 = vmatmul.f32.gmra.mxu0 %v360
      %v472 = vpop.f32.mrf.mxu0
      %v473 = vadd.f32 0.0, %v472
      %474 = vmatmul.f32.gmra.mxu0 %v363
      %v475 = vpop.f32.mrf.mxu0
      %v476 = vadd.f32 0.0, %v475
      %477 = vmatmul.f32.gmra.mxu0 %v366
      %v478 = vpop.f32.mrf.mxu0
      %v479 = vadd.f32 0.0, %v478
      %480 = vmatmul.f32.gmra.mxu0 %v369
      %v481 = vpop.f32.mrf.mxu0
      %v482 = vadd.f32 0.0, %v481
      %483 = vmatmul.f32.gmra.mxu0 %v372
      %v484 = vpop.f32.mrf.mxu0
      %v485 = vadd.f32 0.0, %v484
      %486 = vmatmul.f32.gmra.mxu0 %v375
      %v487 = vpop.f32.mrf.mxu0
      %v488 = vadd.f32 0.0, %v487
      %489 = vmatmul.f32.gmra.mxu0 %v378
      %v490 = vpop.f32.mrf.mxu0
      %v491 = vadd.f32 0.0, %v490
      %492 = vmatmul.f32.gmra.mxu0 %v381
      %v493 = vpop.f32.mrf.mxu0
      %v494 = vadd.f32 0.0, %v493
      %495 = vmatmul.f32.gmra.mxu0 %v384
      %v496 = vpop.f32.mrf.mxu0
      %v497 = vadd.f32 0.0, %v496
      %498 = vmatmul.f32.gmra.mxu0 %v387
      %v499 = vpop.f32.mrf.mxu0
      %v500 = vadd.f32 0.0, %v499
      %501 = vmatmul.f32.gmra.mxu0 %v390
      %v502 = vpop.f32.mrf.mxu0
      %v503 = vadd.f32 0.0, %v502
      %504 = vmatmul.f32.gmra.mxu0 %v393
      %v505 = vpop.f32.mrf.mxu0
      %v506 = vadd.f32 0.0, %v505
      %507 = vmatmul.f32.gmra.mxu0 %v396
      %v508 = vpop.f32.mrf.mxu0
      %v509 = vadd.f32 0.0, %v508
      %510 = vmatmul.f32.gmra.mxu0 %v399
      %v511 = vpop.f32.mrf.mxu0
      %v512 = vadd.f32 0.0, %v511
      %513 = vmatmul.f32.gmra.mxu0 %v402
      %v514 = vpop.f32.mrf.mxu0
      %v515 = vadd.f32 0.0, %v514
      %516 = vmatmul.f32.gmra.mxu0 %v405
      %v517 = vpop.f32.mrf.mxu0
      %v518 = vadd.f32 0.0, %v517
      %519 = vmatmul.f32.gmra.mxu0 %v408
      %v520 = vpop.f32.mrf.mxu0
      %v521 = vadd.f32 0.0, %v520
      %522 = vmatmul.f32.gmra.mxu0 %v411
      %v523 = vpop.f32.mrf.mxu0
      %v524 = vadd.f32 0.0, %v523
      %525 = vmatmul.f32.gmra.mxu0 %v414
      %v526 = vpop.f32.mrf.mxu0
      %v527 = vadd.f32 0.0, %v526
      %528 = vmatmul.f32.gmra.mxu0 %v417
      %v529 = vpop.f32.mrf.mxu0
      %v530 = vadd.f32 0.0, %v529
      %531 = vmatmul.f32.gmra.mxu0 %v420
      %v532 = vpop.f32.mrf.mxu0
      %v533 = vadd.f32 0.0, %v532
      %534 = vmatmul.f32.gmra.mxu0 %v423
      %v535 = vpop.f32.mrf.mxu0
      %v536 = vadd.f32 0.0, %v535
      %537 = vmatmul.f32.gmra.mxu0 %v426
      %v538 = vpop.f32.mrf.mxu0
      %v539 = vadd.f32 0.0, %v538
      %540 = vmatmul.f32.gmra.mxu0 %v429
      %v541 = vpop.f32.mrf.mxu0
      %v542 = vadd.f32 0.0, %v541
      %543 = vmatmul.f32.gmra.mxu0 %v432
      %v544 = vpop.f32.mrf.mxu0
      %v545 = vadd.f32 0.0, %v544
      %546 = vmatmul.f32.gmra.mxu0 %v435
      %v547 = vpop.f32.mrf.mxu0
      %v548 = vadd.f32 0.0, %v547
      %549 = vmatmul.f32.gmra.mxu0 %v438
      %v550 = vpop.f32.mrf.mxu0
      %v551 = vadd.f32 0.0, %v550
      %552 = vmatmul.f32.gmra.mxu0 %v441
      %v553 = vpop.f32.mrf.mxu0
      %v554 = vadd.f32 0.0, %v553
      %555 = vdwg.mxu0
      %556 = vmatpush.msra.mxu0 0.0
      %557 = vmatpush.msra.mxu0 0.0
      %558 = vmatpush.msra.mxu0 0.0
      %559 = vmatpush.msra.mxu0 0.0
      %560 = vmatpush.msra.mxu0 0.0
      %561 = vmatpush.msra.mxu0 0.0
      %562 = vmatpush.msra.mxu0 0.0
      %563 = vmatpush.msra.mxu0 0.0
      %564 = vmatpush.msra.mxu0 %v343
      %565 = vmatpush.msra.mxu0 %v339
      %566 = vmatpush.msra.mxu0 %v335
      %567 = vmatpush.msra.mxu0 %v331
      %568 = vmatpush.msra.mxu0 %v327
      %569 = vmatpush.msra.mxu0 %v323
      %570 = vmatpush.msra.mxu0 %v319
      %571 = vmatpush.msra.mxu0 %v315
      %572 = vmatmul.f32.gmra.mxu0 %v348
      %v573 = vpop.f32.mrf.mxu0
      %v574 = vadd.f32 0.0, %v573
      %575 = vmatmul.f32.gmra.mxu0 %v351
      %v576 = vpop.f32.mrf.mxu0
      %v577 = vadd.f32 0.0, %v576
      %578 = vmatmul.f32.gmra.mxu0 %v354
      %v579 = vpop.f32.mrf.mxu0
      %v580 = vadd.f32 0.0, %v579
      %581 = vmatmul.f32.gmra.mxu0 %v357
      %v582 = vpop.f32.mrf.mxu0
      %v583 = vadd.f32 0.0, %v582
      %584 = vmatmul.f32.gmra.mxu0 %v360
      %v585 = vpop.f32.mrf.mxu0
      %v586 = vadd.f32 0.0, %v585
      %587 = vmatmul.f32.gmra.mxu0 %v363
      %v588 = vpop.f32.mrf.mxu0
      %v589 = vadd.f32 0.0, %v588
      %590 = vmatmul.f32.gmra.mxu0 %v366
      %v591 = vpop.f32.mrf.mxu0
      %v592 = vadd.f32 0.0, %v591
      %593 = vmatmul.f32.gmra.mxu0 %v369
      %v594 = vpop.f32.mrf.mxu0
      %v595 = vadd.f32 0.0, %v594
      %596 = vmatmul.f32.gmra.mxu0 %v372
      %v597 = vpop.f32.mrf.mxu0
      %v598 = vadd.f32 0.0, %v597
      %599 = vmatmul.f32.gmra.mxu0 %v375
      %v600 = vpop.f32.mrf.mxu0
      %v601 = vadd.f32 0.0, %v600
      %602 = vmatmul.f32.gmra.mxu0 %v378
      %v603 = vpop.f32.mrf.mxu0
      %v604 = vadd.f32 0.0, %v603
      %605 = vmatmul.f32.gmra.mxu0 %v381
      %v606 = vpop.f32.mrf.mxu0
      %v607 = vadd.f32 0.0, %v606
      %608 = vmatmul.f32.gmra.mxu0 %v384
      %v609 = vpop.f32.mrf.mxu0
      %v610 = vadd.f32 0.0, %v609
      %611 = vmatmul.f32.gmra.mxu0 %v387
      %v612 = vpop.f32.mrf.mxu0
      %v613 = vadd.f32 0.0, %v612
      %614 = vmatmul.f32.gmra.mxu0 %v390
      %v615 = vpop.f32.mrf.mxu0
      %v616 = vadd.f32 0.0, %v615
      %617 = vmatmul.f32.gmra.mxu0 %v393
      %v618 = vpop.f32.mrf.mxu0
      %v619 = vadd.f32 0.0, %v618
      %620 = vmatmul.f32.gmra.mxu0 %v396
      %v621 = vpop.f32.mrf.mxu0
      %v622 = vadd.f32 0.0, %v621
      %623 = vmatmul.f32.gmra.mxu0 %v399
      %v624 = vpop.f32.mrf.mxu0
      %v625 = vadd.f32 0.0, %v624
      %626 = vmatmul.f32.gmra.mxu0 %v402
      %v627 = vpop.f32.mrf.mxu0
      %v628 = vadd.f32 0.0, %v627
      %629 = vmatmul.f32.gmra.mxu0 %v405
      %v630 = vpop.f32.mrf.mxu0
      %v631 = vadd.f32 0.0, %v630
      %632 = vmatmul.f32.gmra.mxu0 %v408
      %v633 = vpop.f32.mrf.mxu0
      %v634 = vadd.f32 0.0, %v633
      %635 = vmatmul.f32.gmra.mxu0 %v411
      %v636 = vpop.f32.mrf.mxu0
      %v637 = vadd.f32 0.0, %v636
      %638 = vmatmul.f32.gmra.mxu0 %v414
      %v639 = vpop.f32.mrf.mxu0
      %v640 = vadd.f32 0.0, %v639
      %641 = vmatmul.f32.gmra.mxu0 %v417
      %v642 = vpop.f32.mrf.mxu0
      %v643 = vadd.f32 0.0, %v642
      %644 = vmatmul.f32.gmra.mxu0 %v420
      %v645 = vpop.f32.mrf.mxu0
      %v646 = vadd.f32 0.0, %v645
      %647 = vmatmul.f32.gmra.mxu0 %v423
      %v648 = vpop.f32.mrf.mxu0
      %v649 = vadd.f32 0.0, %v648
      %650 = vmatmul.f32.gmra.mxu0 %v426
      %v651 = vpop.f32.mrf.mxu0
      %v652 = vadd.f32 0.0, %v651
      %653 = vmatmul.f32.gmra.mxu0 %v429
      %v654 = vpop.f32.mrf.mxu0
      %v655 = vadd.f32 0.0, %v654
      %656 = vmatmul.f32.gmra.mxu0 %v432
      %v657 = vpop.f32.mrf.mxu0
      %v658 = vadd.f32 0.0, %v657
      %659 = vmatmul.f32.gmra.mxu0 %v435
      %v660 = vpop.f32.mrf.mxu0
      %v661 = vadd.f32 0.0, %v660
      %662 = vmatmul.f32.gmra.mxu0 %v438
      %v663 = vpop.f32.mrf.mxu0
      %v664 = vadd.f32 0.0, %v663
      %665 = vmatmul.f32.gmra.mxu0 %v441
      %v666 = vpop.f32.mrf.mxu0
      %v667 = vadd.f32 0.0, %v666
      %668 = vdwg.mxu0
      %669 = vmatpush.msra.mxu0 0.0
      %670 = vmatpush.msra.mxu0 0.0
      %671 = vmatpush.msra.mxu0 0.0
      %672 = vmatpush.msra.mxu0 0.0
      %673 = vmatpush.msra.mxu0 0.0
      %674 = vmatpush.msra.mxu0 0.0
      %675 = vmatpush.msra.mxu0 0.0
      %676 = vmatpush.msra.mxu0 0.0
      %677 = vmatpush.msra.mxu0 %v344
      %678 = vmatpush.msra.mxu0 %v340
      %679 = vmatpush.msra.mxu0 %v336
      %680 = vmatpush.msra.mxu0 %v332
      %681 = vmatpush.msra.mxu0 %v328
      %682 = vmatpush.msra.mxu0 %v324
      %683 = vmatpush.msra.mxu0 %v320
      %684 = vmatpush.msra.mxu0 %v316
      %685 = vmatmul.f32.gmra.mxu0 %v348
      %v686 = vpop.f32.mrf.mxu0
      %v687 = vadd.f32 0.0, %v686
      %688 = vmatmul.f32.gmra.mxu0 %v351
      %v689 = vpop.f32.mrf.mxu0
      %v690 = vadd.f32 0.0, %v689
      %691 = vmatmul.f32.gmra.mxu0 %v354
      %v692 = vpop.f32.mrf.mxu0
      %v693 = vadd.f32 0.0, %v692
      %694 = vmatmul.f32.gmra.mxu0 %v357
      %v695 = vpop.f32.mrf.mxu0
      %v696 = vadd.f32 0.0, %v695
      %697 = vmatmul.f32.gmra.mxu0 %v360
      %v698 = vpop.f32.mrf.mxu0
      %v699 = vadd.f32 0.0, %v698
      %700 = vmatmul.f32.gmra.mxu0 %v363
      %v701 = vpop.f32.mrf.mxu0
      %v702 = vadd.f32 0.0, %v701
      %703 = vmatmul.f32.gmra.mxu0 %v366
      %v704 = vpop.f32.mrf.mxu0
      %v705 = vadd.f32 0.0, %v704
      %706 = vmatmul.f32.gmra.mxu0 %v369
      %v707 = vpop.f32.mrf.mxu0
      %v708 = vadd.f32 0.0, %v707
      %709 = vmatmul.f32.gmra.mxu0 %v372
      %v710 = vpop.f32.mrf.mxu0
      %v711 = vadd.f32 0.0, %v710
      %712 = vmatmul.f32.gmra.mxu0 %v375
      %v713 = vpop.f32.mrf.mxu0
      %v714 = vadd.f32 0.0, %v713
      %715 = vmatmul.f32.gmra.mxu0 %v378
      %v716 = vpop.f32.mrf.mxu0
      %v717 = vadd.f32 0.0, %v716
      %718 = vmatmul.f32.gmra.mxu0 %v381
      %v719 = vpop.f32.mrf.mxu0
      %v720 = vadd.f32 0.0, %v719
      %721 = vmatmul.f32.gmra.mxu0 %v384
      %v722 = vpop.f32.mrf.mxu0
      %v723 = vadd.f32 0.0, %v722
      %724 = vmatmul.f32.gmra.mxu0 %v387
      %v725 = vpop.f32.mrf.mxu0
      %v726 = vadd.f32 0.0, %v725
      %727 = vmatmul.f32.gmra.mxu0 %v390
      %v728 = vpop.f32.mrf.mxu0
      %v729 = vadd.f32 0.0, %v728
      %730 = vmatmul.f32.gmra.mxu0 %v393
      %v731 = vpop.f32.mrf.mxu0
      %v732 = vadd.f32 0.0, %v731
      %733 = vmatmul.f32.gmra.mxu0 %v396
      %v734 = vpop.f32.mrf.mxu0
      %v735 = vadd.f32 0.0, %v734
      %736 = vmatmul.f32.gmra.mxu0 %v399
      %v737 = vpop.f32.mrf.mxu0
      %v738 = vadd.f32 0.0, %v737
      %739 = vmatmul.f32.gmra.mxu0 %v402
      %v740 = vpop.f32.mrf.mxu0
      %v741 = vadd.f32 0.0, %v740
      %742 = vmatmul.f32.gmra.mxu0 %v405
      %v743 = vpop.f32.mrf.mxu0
      %v744 = vadd.f32 0.0, %v743
      %745 = vmatmul.f32.gmra.mxu0 %v408
      %v746 = vpop.f32.mrf.mxu0
      %v747 = vadd.f32 0.0, %v746
      %748 = vmatmul.f32.gmra.mxu0 %v411
      %v749 = vpop.f32.mrf.mxu0
      %v750 = vadd.f32 0.0, %v749
      %751 = vmatmul.f32.gmra.mxu0 %v414
      %v752 = vpop.f32.mrf.mxu0
      %v753 = vadd.f32 0.0, %v752
      %754 = vmatmul.f32.gmra.mxu0 %v417
      %v755 = vpop.f32.mrf.mxu0
      %v756 = vadd.f32 0.0, %v755
      %757 = vmatmul.f32.gmra.mxu0 %v420
      %v758 = vpop.f32.mrf.mxu0
      %v759 = vadd.f32 0.0, %v758
      %760 = vmatmul.f32.gmra.mxu0 %v423
      %v761 = vpop.f32.mrf.mxu0
      %v762 = vadd.f32 0.0, %v761
      %763 = vmatmul.f32.gmra.mxu0 %v426
      %v764 = vpop.f32.mrf.mxu0
      %v765 = vadd.f32 0.0, %v764
      %766 = vmatmul.f32.gmra.mxu0 %v429
      %v767 = vpop.f32.mrf.mxu0
      %v768 = vadd.f32 0.0, %v767
      %769 = vmatmul.f32.gmra.mxu0 %v432
      %v770 = vpop.f32.mrf.mxu0
      %v771 = vadd.f32 0.0, %v770
      %772 = vmatmul.f32.gmra.mxu0 %v435
      %v773 = vpop.f32.mrf.mxu0
      %v774 = vadd.f32 0.0, %v773
      %775 = vmatmul.f32.gmra.mxu0 %v438
      %v776 = vpop.f32.mrf.mxu0
      %v777 = vadd.f32 0.0, %v776
      %778 = vmatmul.f32.gmra.mxu0 %v441
      %v779 = vpop.f32.mrf.mxu0
      %v780 = vadd.f32 0.0, %v779
      %781 = vdwg.mxu0
      %782 = vmatpush.msra.mxu0 0.0
      %783 = vmatpush.msra.mxu0 0.0
      %784 = vmatpush.msra.mxu0 0.0
      %785 = vmatpush.msra.mxu0 0.0
      %786 = vmatpush.msra.mxu0 0.0
      %787 = vmatpush.msra.mxu0 0.0
      %788 = vmatpush.msra.mxu0 0.0
      %789 = vmatpush.msra.mxu0 0.0
      %790 = vmatpush.msra.mxu0 %v345
      %791 = vmatpush.msra.mxu0 %v341
      %792 = vmatpush.msra.mxu0 %v337
      %793 = vmatpush.msra.mxu0 %v333
      %794 = vmatpush.msra.mxu0 %v329
      %795 = vmatpush.msra.mxu0 %v325
      %796 = vmatpush.msra.mxu0 %v321
      %797 = vmatpush.msra.mxu0 %v317
      %798 = vmatmul.f32.gmra.mxu0 %v348
      %v799 = vpop.f32.mrf.mxu0
      %v800 = vadd.f32 0.0, %v799
      %801 = vmatmul.f32.gmra.mxu0 %v351
      %v802 = vpop.f32.mrf.mxu0
      %v803 = vadd.f32 0.0, %v802
      %804 = vmatmul.f32.gmra.mxu0 %v354
      %v805 = vpop.f32.mrf.mxu0
      %v806 = vadd.f32 0.0, %v805
      %807 = vmatmul.f32.gmra.mxu0 %v357
      %v808 = vpop.f32.mrf.mxu0
      %v809 = vadd.f32 0.0, %v808
      %810 = vmatmul.f32.gmra.mxu0 %v360
      %v811 = vpop.f32.mrf.mxu0
      %v812 = vadd.f32 0.0, %v811
      %813 = vmatmul.f32.gmra.mxu0 %v363
      %v814 = vpop.f32.mrf.mxu0
      %v815 = vadd.f32 0.0, %v814
      %816 = vmatmul.f32.gmra.mxu0 %v366
      %v817 = vpop.f32.mrf.mxu0
      %v818 = vadd.f32 0.0, %v817
      %819 = vmatmul.f32.gmra.mxu0 %v369
      %v820 = vpop.f32.mrf.mxu0
      %v821 = vadd.f32 0.0, %v820
      %822 = vmatmul.f32.gmra.mxu0 %v372
      %v823 = vpop.f32.mrf.mxu0
      %v824 = vadd.f32 0.0, %v823
      %825 = vmatmul.f32.gmra.mxu0 %v375
      %v826 = vpop.f32.mrf.mxu0
      %v827 = vadd.f32 0.0, %v826
      %828 = vmatmul.f32.gmra.mxu0 %v378
      %v829 = vpop.f32.mrf.mxu0
      %v830 = vadd.f32 0.0, %v829
      %831 = vmatmul.f32.gmra.mxu0 %v381
      %v832 = vpop.f32.mrf.mxu0
      %v833 = vadd.f32 0.0, %v832
      %834 = vmatmul.f32.gmra.mxu0 %v384
      %v835 = vpop.f32.mrf.mxu0
      %v836 = vadd.f32 0.0, %v835
      %837 = vmatmul.f32.gmra.mxu0 %v387
      %v838 = vpop.f32.mrf.mxu0
      %v839 = vadd.f32 0.0, %v838
      %840 = vmatmul.f32.gmra.mxu0 %v390
      %v841 = vpop.f32.mrf.mxu0
      %v842 = vadd.f32 0.0, %v841
      %843 = vmatmul.f32.gmra.mxu0 %v393
      %v844 = vpop.f32.mrf.mxu0
      %v845 = vadd.f32 0.0, %v844
      %846 = vmatmul.f32.gmra.mxu0 %v396
      %v847 = vpop.f32.mrf.mxu0
      %v848 = vadd.f32 0.0, %v847
      %849 = vmatmul.f32.gmra.mxu0 %v399
      %v850 = vpop.f32.mrf.mxu0
      %v851 = vadd.f32 0.0, %v850
      %852 = vmatmul.f32.gmra.mxu0 %v402
      %v853 = vpop.f32.mrf.mxu0
      %v854 = vadd.f32 0.0, %v853
      %855 = vmatmul.f32.gmra.mxu0 %v405
      %v856 = vpop.f32.mrf.mxu0
      %v857 = vadd.f32 0.0, %v856
      %858 = vmatmul.f32.gmra.mxu0 %v408
      %v859 = vpop.f32.mrf.mxu0
      %v860 = vadd.f32 0.0, %v859
      %861 = vmatmul.f32.gmra.mxu0 %v411
      %v862 = vpop.f32.mrf.mxu0
      %v863 = vadd.f32 0.0, %v862
      %864 = vmatmul.f32.gmra.mxu0 %v414
      %v865 = vpop.f32.mrf.mxu0
      %v866 = vadd.f32 0.0, %v865
      %867 = vmatmul.f32.gmra.mxu0 %v417
      %v868 = vpop.f32.mrf.mxu0
      %v869 = vadd.f32 0.0, %v868
      %870 = vmatmul.f32.gmra.mxu0 %v420
      %v871 = vpop.f32.mrf.mxu0
      %v872 = vadd.f32 0.0, %v871
      %873 = vmatmul.f32.gmra.mxu0 %v423
      %v874 = vpop.f32.mrf.mxu0
      %v875 = vadd.f32 0.0, %v874
      %876 = vmatmul.f32.gmra.mxu0 %v426
      %v877 = vpop.f32.mrf.mxu0
      %v878 = vadd.f32 0.0, %v877
      %879 = vmatmul.f32.gmra.mxu0 %v429
      %v880 = vpop.f32.mrf.mxu0
      %v881 = vadd.f32 0.0, %v880
      %882 = vmatmul.f32.gmra.mxu0 %v432
      %v883 = vpop.f32.mrf.mxu0
      %v884 = vadd.f32 0.0, %v883
      %885 = vmatmul.f32.gmra.mxu0 %v435
      %v886 = vpop.f32.mrf.mxu0
      %v887 = vadd.f32 0.0, %v886
      %888 = vmatmul.f32.gmra.mxu0 %v438
      %v889 = vpop.f32.mrf.mxu0
      %v890 = vadd.f32 0.0, %v889
      %891 = vmatmul.f32.gmra.mxu0 %v441
      %v892 = vpop.f32.mrf.mxu0
      %v893 = vadd.f32 0.0, %v892
      %894 = vdwg.mxu0
      %v895 = vld [vmem:[%s3] sm:$0xf]
      %v897 = vperm.slane %v895, 0
      %v898 = vperm.slane %v895, 1
      %v899 = vperm.slane %v895, 2
      %v900 = vperm.slane %v895, 3
      %v905 = vsub.f32 %v461, %v897
      %v906 = vsub.f32 %v574, %v898
      %v907 = vsub.f32 %v687, %v899
      %v908 = vsub.f32 %v800, %v900
      %v909 = vsub.f32 %v464, %v897
      %v910 = vsub.f32 %v577, %v898
      %v911 = vsub.f32 %v690, %v899
      %v912 = vsub.f32 %v803, %v900
      %v913 = vsub.f32 %v467, %v897
      %v914 = vsub.f32 %v580, %v898
      %v915 = vsub.f32 %v693, %v899
      %v916 = vsub.f32 %v806, %v900
      %v917 = vsub.f32 %v470, %v897
      %v918 = vsub.f32 %v583, %v898
      %v919 = vsub.f32 %v696, %v899
      %v920 = vsub.f32 %v809, %v900
      %v921 = vsub.f32 %v473, %v897
      %v922 = vsub.f32 %v586, %v898
      %v923 = vsub.f32 %v699, %v899
      %v924 = vsub.f32 %v812, %v900
      %v925 = vsub.f32 %v476, %v897
      %v926 = vsub.f32 %v589, %v898
      %v927 = vsub.f32 %v702, %v899
      %v928 = vsub.f32 %v815, %v900
      %v929 = vsub.f32 %v479, %v897
      %v930 = vsub.f32 %v592, %v898
      %v931 = vsub.f32 %v705, %v899
      %v932 = vsub.f32 %v818, %v900
      %v933 = vsub.f32 %v482, %v897
      %v934 = vsub.f32 %v595, %v898
      %v935 = vsub.f32 %v708, %v899
      %v936 = vsub.f32 %v821, %v900
      %v937 = vsub.f32 %v485, %v897
      %v938 = vsub.f32 %v598, %v898
      %v939 = vsub.f32 %v711, %v899
      %v940 = vsub.f32 %v824, %v900
      %v941 = vsub.f32 %v488, %v897
      %v942 = vsub.f32 %v601, %v898
      %v943 = vsub.f32 %v714, %v899
      %v944 = vsub.f32 %v827, %v900
      %v945 = vsub.f32 %v491, %v897
      %v946 = vsub.f32 %v604, %v898
      %v947 = vsub.f32 %v717, %v899
      %v948 = vsub.f32 %v830, %v900
      %v949 = vsub.f32 %v494, %v897
      %v950 = vsub.f32 %v607, %v898
      %v951 = vsub.f32 %v720, %v899
      %v952 = vsub.f32 %v833, %v900
      %v953 = vsub.f32 %v497, %v897
      %v954 = vsub.f32 %v610, %v898
      %v955 = vsub.f32 %v723, %v899
      %v956 = vsub.f32 %v836, %v900
      %v957 = vsub.f32 %v500, %v897
      %v958 = vsub.f32 %v613, %v898
      %v959 = vsub.f32 %v726, %v899
      %v960 = vsub.f32 %v839, %v900
      %v961 = vsub.f32 %v503, %v897
      %v962 = vsub.f32 %v616, %v898
      %v963 = vsub.f32 %v729, %v899
      %v964 = vsub.f32 %v842, %v900
      %v965 = vsub.f32 %v506, %v897
      %v966 = vsub.f32 %v619, %v898
      %v967 = vsub.f32 %v732, %v899
      %v968 = vsub.f32 %v845, %v900
      %v969 = vsub.f32 %v509, %v897
      %v970 = vsub.f32 %v622, %v898
      %v971 = vsub.f32 %v735, %v899
      %v972 = vsub.f32 %v848, %v900
      %v973 = vsub.f32 %v512, %v897
      %v974 = vsub.f32 %v625, %v898
      %v975 = vsub.f32 %v738, %v899
      %v976 = vsub.f32 %v851, %v900
      %v977 = vsub.f32 %v515, %v897
      %v978 = vsub.f32 %v628, %v898
      %v979 = vsub.f32 %v741, %v899
      %v980 = vsub.f32 %v854, %v900
      %v981 = vsub.f32 %v518, %v897
      %v982 = vsub.f32 %v631, %v898
      %v983 = vsub.f32 %v744, %v899
      %v984 = vsub.f32 %v857, %v900
      %v985 = vsub.f32 %v521, %v897
      %v986 = vsub.f32 %v634, %v898
      %v987 = vsub.f32 %v747, %v899
      %v988 = vsub.f32 %v860, %v900
      %v989 = vsub.f32 %v524, %v897
      %v990 = vsub.f32 %v637, %v898
      %v991 = vsub.f32 %v750, %v899
      %v992 = vsub.f32 %v863, %v900
      %v993 = vsub.f32 %v527, %v897
      %v994 = vsub.f32 %v640, %v898
      %v995 = vsub.f32 %v753, %v899
      %v996 = vsub.f32 %v866, %v900
      %v997 = vsub.f32 %v530, %v897
      %v998 = vsub.f32 %v643, %v898
      %v999 = vsub.f32 %v756, %v899
      %v1000 = vsub.f32 %v869, %v900
      %v1001 = vsub.f32 %v533, %v897
      %v1002 = vsub.f32 %v646, %v898
      %v1003 = vsub.f32 %v759, %v899
      %v1004 = vsub.f32 %v872, %v900
      %v1005 = vsub.f32 %v536, %v897
      %v1006 = vsub.f32 %v649, %v898
      %v1007 = vsub.f32 %v762, %v899
      %v1008 = vsub.f32 %v875, %v900
      %v1009 = vsub.f32 %v539, %v897
      %v1010 = vsub.f32 %v652, %v898
      %v1011 = vsub.f32 %v765, %v899
      %v1012 = vsub.f32 %v878, %v900
      %v1013 = vsub.f32 %v542, %v897
      %v1014 = vsub.f32 %v655, %v898
      %v1015 = vsub.f32 %v768, %v899
      %v1016 = vsub.f32 %v881, %v900
      %v1017 = vsub.f32 %v545, %v897
      %v1018 = vsub.f32 %v658, %v898
      %v1019 = vsub.f32 %v771, %v899
      %v1020 = vsub.f32 %v884, %v900
      %v1021 = vsub.f32 %v548, %v897
      %v1022 = vsub.f32 %v661, %v898
      %v1023 = vsub.f32 %v774, %v899
      %v1024 = vsub.f32 %v887, %v900
      %v1025 = vsub.f32 %v551, %v897
      %v1026 = vsub.f32 %v664, %v898
      %v1027 = vsub.f32 %v777, %v899
      %v1028 = vsub.f32 %v890, %v900
      %v1029 = vsub.f32 %v554, %v897
      %v1030 = vsub.f32 %v667, %v898
      %v1031 = vsub.f32 %v780, %v899
      %v1032 = vsub.f32 %v893, %v900
      %v1033 = vmax.f32 %v905, %v906
      %v1034 = vmax.f32 %v1033, %v907
      %v1035 = vmax.f32 %v1034, %v908
      %1036 = vmax.xlane.f32.xlu0 %v1035
      %v1037 = vpop.xlane.xlu0 %1036
      %v1038 = vmax.f32 %v909, %v910
      %v1039 = vmax.f32 %v1038, %v911
      %v1040 = vmax.f32 %v1039, %v912
      %1041 = vmax.xlane.f32.xlu0 %v1040
      %v1042 = vpop.xlane.xlu0 %1041
      %v1043 = vmax.f32 %v913, %v914
      %v1044 = vmax.f32 %v1043, %v915
      %v1045 = vmax.f32 %v1044, %v916
      %1046 = vmax.xlane.f32.xlu0 %v1045
      %v1047 = vpop.xlane.xlu0 %1046
      %v1048 = vmax.f32 %v917, %v918
      %v1049 = vmax.f32 %v1048, %v919
      %v1050 = vmax.f32 %v1049, %v920
      %1051 = vmax.xlane.f32.xlu0 %v1050
      %v1052 = vpop.xlane.xlu0 %1051
      %v1053 = vmax.f32 %v921, %v922
      %v1054 = vmax.f32 %v1053, %v923
      %v1055 = vmax.f32 %v1054, %v924
      %1056 = vmax.xlane.f32.xlu0 %v1055
      %v1057 = vpop.xlane.xlu0 %1056
      %v1058 = vmax.f32 %v925, %v926
      %v1059 = vmax.f32 %v1058, %v927
      %v1060 = vmax.f32 %v1059, %v928
      %1061 = vmax.xlane.f32.xlu0 %v1060
      %v1062 = vpop.xlane.xlu0 %1061
      %v1063 = vmax.f32 %v929, %v930
      %v1064 = vmax.f32 %v1063, %v931
      %v1065 = vmax.f32 %v1064, %v932
      %1066 = vmax.xlane.f32.xlu0 %v1065
      %v1067 = vpop.xlane.xlu0 %1066
      %v1068 = vmax.f32 %v933, %v934
      %v1069 = vmax.f32 %v1068, %v935
      %v1070 = vmax.f32 %v1069, %v936
      %1071 = vmax.xlane.f32.xlu0 %v1070
      %v1072 = vpop.xlane.xlu0 %1071
      %v1073 = vmax.f32 %v937, %v938
      %v1074 = vmax.f32 %v1073, %v939
      %v1075 = vmax.f32 %v1074, %v940
      %1076 = vmax.xlane.f32.xlu0 %v1075
      %v1077 = vpop.xlane.xlu0 %1076
      %v1078 = vmax.f32 %v941, %v942
      %v1079 = vmax.f32 %v1078, %v943
      %v1080 = vmax.f32 %v1079, %v944
      %1081 = vmax.xlane.f32.xlu0 %v1080
      %v1082 = vpop.xlane.xlu0 %1081
      %v1083 = vmax.f32 %v945, %v946
      %v1084 = vmax.f32 %v1083, %v947
      %v1085 = vmax.f32 %v1084, %v948
      %1086 = vmax.xlane.f32.xlu0 %v1085
      %v1087 = vpop.xlane.xlu0 %1086
      %v1088 = vmax.f32 %v949, %v950
      %v1089 = vmax.f32 %v1088, %v951
      %v1090 = vmax.f32 %v1089, %v952
      %1091 = vmax.xlane.f32.xlu0 %v1090
      %v1092 = vpop.xlane.xlu0 %1091
      %v1093 = vmax.f32 %v953, %v954
      %v1094 = vmax.f32 %v1093, %v955
      %v1095 = vmax.f32 %v1094, %v956
      %1096 = vmax.xlane.f32.xlu0 %v1095
      %v1097 = vpop.xlane.xlu0 %1096
      %v1098 = vmax.f32 %v957, %v958
      %v1099 = vmax.f32 %v1098, %v959
      %v1100 = vmax.f32 %v1099, %v960
      %1101 = vmax.xlane.f32.xlu0 %v1100
      %v1102 = vpop.xlane.xlu0 %1101
      %v1103 = vmax.f32 %v961, %v962
      %v1104 = vmax.f32 %v1103, %v963
      %v1105 = vmax.f32 %v1104, %v964
      %1106 = vmax.xlane.f32.xlu0 %v1105
      %v1107 = vpop.xlane.xlu0 %1106
      %v1108 = vmax.f32 %v965, %v966
      %v1109 = vmax.f32 %v1108, %v967
      %v1110 = vmax.f32 %v1109, %v968
      %1111 = vmax.xlane.f32.xlu0 %v1110
      %v1112 = vpop.xlane.xlu0 %1111
      %v1113 = vmax.f32 %v969, %v970
      %v1114 = vmax.f32 %v1113, %v971
      %v1115 = vmax.f32 %v1114, %v972
      %1116 = vmax.xlane.f32.xlu0 %v1115
      %v1117 = vpop.xlane.xlu0 %1116
      %v1118 = vmax.f32 %v973, %v974
      %v1119 = vmax.f32 %v1118, %v975
      %v1120 = vmax.f32 %v1119, %v976
      %1121 = vmax.xlane.f32.xlu0 %v1120
      %v1122 = vpop.xlane.xlu0 %1121
      %v1123 = vmax.f32 %v977, %v978
      %v1124 = vmax.f32 %v1123, %v979
      %v1125 = vmax.f32 %v1124, %v980
      %1126 = vmax.xlane.f32.xlu0 %v1125
      %v1127 = vpop.xlane.xlu0 %1126
      %v1128 = vmax.f32 %v981, %v982
      %v1129 = vmax.f32 %v1128, %v983
      %v1130 = vmax.f32 %v1129, %v984
      %1131 = vmax.xlane.f32.xlu0 %v1130
      %v1132 = vpop.xlane.xlu0 %1131
      %v1133 = vmax.f32 %v985, %v986
      %v1134 = vmax.f32 %v1133, %v987
      %v1135 = vmax.f32 %v1134, %v988
      %1136 = vmax.xlane.f32.xlu0 %v1135
      %v1137 = vpop.xlane.xlu0 %1136
      %v1138 = vmax.f32 %v989, %v990
      %v1139 = vmax.f32 %v1138, %v991
      %v1140 = vmax.f32 %v1139, %v992
      %1141 = vmax.xlane.f32.xlu0 %v1140
      %v1142 = vpop.xlane.xlu0 %1141
      %v1143 = vmax.f32 %v993, %v994
      %v1144 = vmax.f32 %v1143, %v995
      %v1145 = vmax.f32 %v1144, %v996
      %1146 = vmax.xlane.f32.xlu0 %v1145
      %v1147 = vpop.xlane.xlu0 %1146
      %v1148 = vmax.f32 %v997, %v998
      %v1149 = vmax.f32 %v1148, %v999
      %v1150 = vmax.f32 %v1149, %v1000
      %1151 = vmax.xlane.f32.xlu0 %v1150
      %v1152 = vpop.xlane.xlu0 %1151
      %v1153 = vmax.f32 %v1001, %v1002
      %v1154 = vmax.f32 %v1153, %v1003
      %v1155 = vmax.f32 %v1154, %v1004
      %1156 = vmax.xlane.f32.xlu0 %v1155
      %v1157 = vpop.xlane.xlu0 %1156
      %v1158 = vmax.f32 %v1005, %v1006
      %v1159 = vmax.f32 %v1158, %v1007
      %v1160 = vmax.f32 %v1159, %v1008
      %1161 = vmax.xlane.f32.xlu0 %v1160
      %v1162 = vpop.xlane.xlu0 %1161
      %v1163 = vmax.f32 %v1009, %v1010
      %v1164 = vmax.f32 %v1163, %v1011
      %v1165 = vmax.f32 %v1164, %v1012
      %1166 = vmax.xlane.f32.xlu0 %v1165
      %v1167 = vpop.xlane.xlu0 %1166
      %v1168 = vmax.f32 %v1013, %v1014
      %v1169 = vmax.f32 %v1168, %v1015
      %v1170 = vmax.f32 %v1169, %v1016
      %1171 = vmax.xlane.f32.xlu0 %v1170
      %v1172 = vpop.xlane.xlu0 %1171
      %v1173 = vmax.f32 %v1017, %v1018
      %v1174 = vmax.f32 %v1173, %v1019
      %v1175 = vmax.f32 %v1174, %v1020
      %1176 = vmax.xlane.f32.xlu0 %v1175
      %v1177 = vpop.xlane.xlu0 %1176
      %v1178 = vmax.f32 %v1021, %v1022
      %v1179 = vmax.f32 %v1178, %v1023
      %v1180 = vmax.f32 %v1179, %v1024
      %1181 = vmax.xlane.f32.xlu0 %v1180
      %v1182 = vpop.xlane.xlu0 %1181
      %v1183 = vmax.f32 %v1025, %v1026
      %v1184 = vmax.f32 %v1183, %v1027
      %v1185 = vmax.f32 %v1184, %v1028
      %1186 = vmax.xlane.f32.xlu0 %v1185
      %v1187 = vpop.xlane.xlu0 %1186
      %v1188 = vmax.f32 %v1029, %v1030
      %v1189 = vmax.f32 %v1188, %v1031
      %v1190 = vmax.f32 %v1189, %v1032
      %1191 = vmax.xlane.f32.xlu0 %v1190
      %v1192 = vpop.xlane.xlu0 %1191
      %v1193 = vlaneseq
      %v1194 = vand.u32 %v1193, 127
      %v1195 = vadd.s32 %v1194, 128
      %v1196 = vadd.s32 %v1194, 256
      %v1197 = vadd.s32 %v1194, 384
      %vm1198 = vcmp.eq.f32.partialorder %v905, %v1037
      %vm1199 = vcmp.eq.f32.partialorder %v906, %v1037
      %vm1200 = vcmp.eq.f32.partialorder %v907, %v1037
      %vm1201 = vcmp.eq.f32.partialorder %v908, %v1037
      %vm1202 = vcmp.eq.f32.partialorder %v909, %v1042
      %vm1203 = vcmp.eq.f32.partialorder %v910, %v1042
      %vm1204 = vcmp.eq.f32.partialorder %v911, %v1042
      %vm1205 = vcmp.eq.f32.partialorder %v912, %v1042
      %vm1206 = vcmp.eq.f32.partialorder %v913, %v1047
      %vm1207 = vcmp.eq.f32.partialorder %v914, %v1047
      %vm1208 = vcmp.eq.f32.partialorder %v915, %v1047
      %vm1209 = vcmp.eq.f32.partialorder %v916, %v1047
      %vm1210 = vcmp.eq.f32.partialorder %v917, %v1052
      %vm1211 = vcmp.eq.f32.partialorder %v918, %v1052
      %vm1212 = vcmp.eq.f32.partialorder %v919, %v1052
      %vm1213 = vcmp.eq.f32.partialorder %v920, %v1052
      %vm1214 = vcmp.eq.f32.partialorder %v921, %v1057
      %vm1215 = vcmp.eq.f32.partialorder %v922, %v1057
      %vm1216 = vcmp.eq.f32.partialorder %v923, %v1057
      %vm1217 = vcmp.eq.f32.partialorder %v924, %v1057
      %vm1218 = vcmp.eq.f32.partialorder %v925, %v1062
      %vm1219 = vcmp.eq.f32.partialorder %v926, %v1062
      %vm1220 = vcmp.eq.f32.partialorder %v927, %v1062
      %vm1221 = vcmp.eq.f32.partialorder %v928, %v1062
      %vm1222 = vcmp.eq.f32.partialorder %v929, %v1067
      %vm1223 = vcmp.eq.f32.partialorder %v930, %v1067
      %vm1224 = vcmp.eq.f32.partialorder %v931, %v1067
      %vm1225 = vcmp.eq.f32.partialorder %v932, %v1067
      %vm1226 = vcmp.eq.f32.partialorder %v933, %v1072
      %vm1227 = vcmp.eq.f32.partialorder %v934, %v1072
      %vm1228 = vcmp.eq.f32.partialorder %v935, %v1072
      %vm1229 = vcmp.eq.f32.partialorder %v936, %v1072
      %vm1230 = vcmp.eq.f32.partialorder %v937, %v1077
      %vm1231 = vcmp.eq.f32.partialorder %v938, %v1077
      %vm1232 = vcmp.eq.f32.partialorder %v939, %v1077
      %vm1233 = vcmp.eq.f32.partialorder %v940, %v1077
      %vm1234 = vcmp.eq.f32.partialorder %v941, %v1082
      %vm1235 = vcmp.eq.f32.partialorder %v942, %v1082
      %vm1236 = vcmp.eq.f32.partialorder %v943, %v1082
      %vm1237 = vcmp.eq.f32.partialorder %v944, %v1082
      %vm1238 = vcmp.eq.f32.partialorder %v945, %v1087
      %vm1239 = vcmp.eq.f32.partialorder %v946, %v1087
      %vm1240 = vcmp.eq.f32.partialorder %v947, %v1087
      %vm1241 = vcmp.eq.f32.partialorder %v948, %v1087
      %vm1242 = vcmp.eq.f32.partialorder %v949, %v1092
      %vm1243 = vcmp.eq.f32.partialorder %v950, %v1092
      %vm1244 = vcmp.eq.f32.partialorder %v951, %v1092
      %vm1245 = vcmp.eq.f32.partialorder %v952, %v1092
      %vm1246 = vcmp.eq.f32.partialorder %v953, %v1097
      %vm1247 = vcmp.eq.f32.partialorder %v954, %v1097
      %vm1248 = vcmp.eq.f32.partialorder %v955, %v1097
      %vm1249 = vcmp.eq.f32.partialorder %v956, %v1097
      %vm1250 = vcmp.eq.f32.partialorder %v957, %v1102
      %vm1251 = vcmp.eq.f32.partialorder %v958, %v1102
      %vm1252 = vcmp.eq.f32.partialorder %v959, %v1102
      %vm1253 = vcmp.eq.f32.partialorder %v960, %v1102
      %vm1254 = vcmp.eq.f32.partialorder %v961, %v1107
      %vm1255 = vcmp.eq.f32.partialorder %v962, %v1107
      %vm1256 = vcmp.eq.f32.partialorder %v963, %v1107
      %vm1257 = vcmp.eq.f32.partialorder %v964, %v1107
      %vm1258 = vcmp.eq.f32.partialorder %v965, %v1112
      %vm1259 = vcmp.eq.f32.partialorder %v966, %v1112
      %vm1260 = vcmp.eq.f32.partialorder %v967, %v1112
      %vm1261 = vcmp.eq.f32.partialorder %v968, %v1112
      %vm1262 = vcmp.eq.f32.partialorder %v969, %v1117
      %vm1263 = vcmp.eq.f32.partialorder %v970, %v1117
      %vm1264 = vcmp.eq.f32.partialorder %v971, %v1117
      %vm1265 = vcmp.eq.f32.partialorder %v972, %v1117
      %vm1266 = vcmp.eq.f32.partialorder %v973, %v1122
      %vm1267 = vcmp.eq.f32.partialorder %v974, %v1122
      %vm1268 = vcmp.eq.f32.partialorder %v975, %v1122
      %vm1269 = vcmp.eq.f32.partialorder %v976, %v1122
      %vm1270 = vcmp.eq.f32.partialorder %v977, %v1127
      %vm1271 = vcmp.eq.f32.partialorder %v978, %v1127
      %vm1272 = vcmp.eq.f32.partialorder %v979, %v1127
      %vm1273 = vcmp.eq.f32.partialorder %v980, %v1127
      %vm1274 = vcmp.eq.f32.partialorder %v981, %v1132
      %vm1275 = vcmp.eq.f32.partialorder %v982, %v1132
      %vm1276 = vcmp.eq.f32.partialorder %v983, %v1132
      %vm1277 = vcmp.eq.f32.partialorder %v984, %v1132
      %vm1278 = vcmp.eq.f32.partialorder %v985, %v1137
      %vm1279 = vcmp.eq.f32.partialorder %v986, %v1137
      %vm1280 = vcmp.eq.f32.partialorder %v987, %v1137
      %vm1281 = vcmp.eq.f32.partialorder %v988, %v1137
      %vm1282 = vcmp.eq.f32.partialorder %v989, %v1142
      %vm1283 = vcmp.eq.f32.partialorder %v990, %v1142
      %vm1284 = vcmp.eq.f32.partialorder %v991, %v1142
      %vm1285 = vcmp.eq.f32.partialorder %v992, %v1142
      %vm1286 = vcmp.eq.f32.partialorder %v993, %v1147
      %vm1287 = vcmp.eq.f32.partialorder %v994, %v1147
      %vm1288 = vcmp.eq.f32.partialorder %v995, %v1147
      %vm1289 = vcmp.eq.f32.partialorder %v996, %v1147
      %vm1290 = vcmp.eq.f32.partialorder %v997, %v1152
      %vm1291 = vcmp.eq.f32.partialorder %v998, %v1152
      %vm1292 = vcmp.eq.f32.partialorder %v999, %v1152
      %vm1293 = vcmp.eq.f32.partialorder %v1000, %v1152
      %vm1294 = vcmp.eq.f32.partialorder %v1001, %v1157
      %vm1295 = vcmp.eq.f32.partialorder %v1002, %v1157
      %vm1296 = vcmp.eq.f32.partialorder %v1003, %v1157
      %vm1297 = vcmp.eq.f32.partialorder %v1004, %v1157
      %vm1298 = vcmp.eq.f32.partialorder %v1005, %v1162
      %vm1299 = vcmp.eq.f32.partialorder %v1006, %v1162
      %vm1300 = vcmp.eq.f32.partialorder %v1007, %v1162
      %vm1301 = vcmp.eq.f32.partialorder %v1008, %v1162
      %vm1302 = vcmp.eq.f32.partialorder %v1009, %v1167
      %vm1303 = vcmp.eq.f32.partialorder %v1010, %v1167
      %vm1304 = vcmp.eq.f32.partialorder %v1011, %v1167
      %vm1305 = vcmp.eq.f32.partialorder %v1012, %v1167
      %vm1306 = vcmp.eq.f32.partialorder %v1013, %v1172
      %vm1307 = vcmp.eq.f32.partialorder %v1014, %v1172
      %vm1308 = vcmp.eq.f32.partialorder %v1015, %v1172
      %vm1309 = vcmp.eq.f32.partialorder %v1016, %v1172
      %vm1310 = vcmp.eq.f32.partialorder %v1017, %v1177
      %vm1311 = vcmp.eq.f32.partialorder %v1018, %v1177
      %vm1312 = vcmp.eq.f32.partialorder %v1019, %v1177
      %vm1313 = vcmp.eq.f32.partialorder %v1020, %v1177
      %vm1314 = vcmp.eq.f32.partialorder %v1021, %v1182
      %vm1315 = vcmp.eq.f32.partialorder %v1022, %v1182
      %vm1316 = vcmp.eq.f32.partialorder %v1023, %v1182
      %vm1317 = vcmp.eq.f32.partialorder %v1024, %v1182
      %vm1318 = vcmp.eq.f32.partialorder %v1025, %v1187
      %vm1319 = vcmp.eq.f32.partialorder %v1026, %v1187
      %vm1320 = vcmp.eq.f32.partialorder %v1027, %v1187
      %vm1321 = vcmp.eq.f32.partialorder %v1028, %v1187
      %vm1322 = vcmp.eq.f32.partialorder %v1029, %v1192
      %vm1323 = vcmp.eq.f32.partialorder %v1030, %v1192
      %vm1324 = vcmp.eq.f32.partialorder %v1031, %v1192
      %vm1325 = vcmp.eq.f32.partialorder %v1032, %v1192
      %v1326 = vsel %vm1198, %v1194, 512
      %v1327 = vsel %vm1199, %v1195, 512
      %v1328 = vsel %vm1200, %v1196, 512
      %v1329 = vsel %vm1201, %v1197, 512
      %v1330 = vsel %vm1202, %v1194, 512
      %v1331 = vsel %vm1203, %v1195, 512
      %v1332 = vsel %vm1204, %v1196, 512
      %v1333 = vsel %vm1205, %v1197, 512
      %v1334 = vsel %vm1206, %v1194, 512
      %v1335 = vsel %vm1207, %v1195, 512
      %v1336 = vsel %vm1208, %v1196, 512
      %v1337 = vsel %vm1209, %v1197, 512
      %v1338 = vsel %vm1210, %v1194, 512
      %v1339 = vsel %vm1211, %v1195, 512
      %v1340 = vsel %vm1212, %v1196, 512
      %v1341 = vsel %vm1213, %v1197, 512
      %v1342 = vsel %vm1214, %v1194, 512
      %v1343 = vsel %vm1215, %v1195, 512
      %v1344 = vsel %vm1216, %v1196, 512
      %v1345 = vsel %vm1217, %v1197, 512
      %v1346 = vsel %vm1218, %v1194, 512
      %v1347 = vsel %vm1219, %v1195, 512
      %v1348 = vsel %vm1220, %v1196, 512
      %v1349 = vsel %vm1221, %v1197, 512
      %v1350 = vsel %vm1222, %v1194, 512
      %v1351 = vsel %vm1223, %v1195, 512
      %v1352 = vsel %vm1224, %v1196, 512
      %v1353 = vsel %vm1225, %v1197, 512
      %v1354 = vsel %vm1226, %v1194, 512
      %v1355 = vsel %vm1227, %v1195, 512
      %v1356 = vsel %vm1228, %v1196, 512
      %v1357 = vsel %vm1229, %v1197, 512
      %v1358 = vsel %vm1230, %v1194, 512
      %v1359 = vsel %vm1231, %v1195, 512
      %v1360 = vsel %vm1232, %v1196, 512
      %v1361 = vsel %vm1233, %v1197, 512
      %v1362 = vsel %vm1234, %v1194, 512
      %v1363 = vsel %vm1235, %v1195, 512
      %v1364 = vsel %vm1236, %v1196, 512
      %v1365 = vsel %vm1237, %v1197, 512
      %v1366 = vsel %vm1238, %v1194, 512
      %v1367 = vsel %vm1239, %v1195, 512
      %v1368 = vsel %vm1240, %v1196, 512
      %v1369 = vsel %vm1241, %v1197, 512
      %v1370 = vsel %vm1242, %v1194, 512
      %v1371 = vsel %vm1243, %v1195, 512
      %v1372 = vsel %vm1244, %v1196, 512
      %v1373 = vsel %vm1245, %v1197, 512
      %v1374 = vsel %vm1246, %v1194, 512
      %v1375 = vsel %vm1247, %v1195, 512
      %v1376 = vsel %vm1248, %v1196, 512
      %v1377 = vsel %vm1249, %v1197, 512
      %v1378 = vsel %vm1250, %v1194, 512
      %v1379 = vsel %vm1251, %v1195, 512
      %v1380 = vsel %vm1252, %v1196, 512
      %v1381 = vsel %vm1253, %v1197, 512
      %v1382 = vsel %vm1254, %v1194, 512
      %v1383 = vsel %vm1255, %v1195, 512
      %v1384 = vsel %vm1256, %v1196, 512
      %v1385 = vsel %vm1257, %v1197, 512
      %v1386 = vsel %vm1258, %v1194, 512
      %v1387 = vsel %vm1259, %v1195, 512
      %v1388 = vsel %vm1260, %v1196, 512
      %v1389 = vsel %vm1261, %v1197, 512
      %v1390 = vsel %vm1262, %v1194, 512
      %v1391 = vsel %vm1263, %v1195, 512
      %v1392 = vsel %vm1264, %v1196, 512
      %v1393 = vsel %vm1265, %v1197, 512
      %v1394 = vsel %vm1266, %v1194, 512
      %v1395 = vsel %vm1267, %v1195, 512
      %v1396 = vsel %vm1268, %v1196, 512
      %v1397 = vsel %vm1269, %v1197, 512
      %v1398 = vsel %vm1270, %v1194, 512
      %v1399 = vsel %vm1271, %v1195, 512
      %v1400 = vsel %vm1272, %v1196, 512
      %v1401 = vsel %vm1273, %v1197, 512
      %v1402 = vsel %vm1274, %v1194, 512
      %v1403 = vsel %vm1275, %v1195, 512
      %v1404 = vsel %vm1276, %v1196, 512
      %v1405 = vsel %vm1277, %v1197, 512
      %v1406 = vsel %vm1278, %v1194, 512
      %v1407 = vsel %vm1279, %v1195, 512
      %v1408 = vsel %vm1280, %v1196, 512
      %v1409 = vsel %vm1281, %v1197, 512
      %v1410 = vsel %vm1282, %v1194, 512
      %v1411 = vsel %vm1283, %v1195, 512
      %v1412 = vsel %vm1284, %v1196, 512
      %v1413 = vsel %vm1285, %v1197, 512
      %v1414 = vsel %vm1286, %v1194, 512
      %v1415 = vsel %vm1287, %v1195, 512
      %v1416 = vsel %vm1288, %v1196, 512
      %v1417 = vsel %vm1289, %v1197, 512
      %v1418 = vsel %vm1290, %v1194, 512
      %v1419 = vsel %vm1291, %v1195, 512
      %v1420 = vsel %vm1292, %v1196, 512
      %v1421 = vsel %vm1293, %v1197, 512
      %v1422 = vsel %vm1294, %v1194, 512
      %v1423 = vsel %vm1295, %v1195, 512
      %v1424 = vsel %vm1296, %v1196, 512
      %v1425 = vsel %vm1297, %v1197, 512
      %v1426 = vsel %vm1298, %v1194, 512
      %v1427 = vsel %vm1299, %v1195, 512
      %v1428 = vsel %vm1300, %v1196, 512
      %v1429 = vsel %vm1301, %v1197, 512
      %v1430 = vsel %vm1302, %v1194, 512
      %v1431 = vsel %vm1303, %v1195, 512
      %v1432 = vsel %vm1304, %v1196, 512
      %v1433 = vsel %vm1305, %v1197, 512
      %v1434 = vsel %vm1306, %v1194, 512
      %v1435 = vsel %vm1307, %v1195, 512
      %v1436 = vsel %vm1308, %v1196, 512
      %v1437 = vsel %vm1309, %v1197, 512
      %v1438 = vsel %vm1310, %v1194, 512
      %v1439 = vsel %vm1311, %v1195, 512
      %v1440 = vsel %vm1312, %v1196, 512
      %v1441 = vsel %vm1313, %v1197, 512
      %v1442 = vsel %vm1314, %v1194, 512
      %v1443 = vsel %vm1315, %v1195, 512
      %v1444 = vsel %vm1316, %v1196, 512
      %v1445 = vsel %vm1317, %v1197, 512
      %v1446 = vsel %vm1318, %v1194, 512
      %v1447 = vsel %vm1319, %v1195, 512
      %v1448 = vsel %vm1320, %v1196, 512
      %v1449 = vsel %vm1321, %v1197, 512
      %v1450 = vsel %vm1322, %v1194, 512
      %v1451 = vsel %vm1323, %v1195, 512
      %v1452 = vsel %vm1324, %v1196, 512
      %v1453 = vsel %vm1325, %v1197, 512
      %vm1454 = vcmp.lt.s32.totalorder %v1326, %v1327
      %v1455 = vsel %vm1454, %v1326, %v1327
      %vm1456 = vcmp.lt.s32.totalorder %v1455, %v1328
      %v1457 = vsel %vm1456, %v1455, %v1328
      %vm1458 = vcmp.lt.s32.totalorder %v1457, %v1329
      %v1459 = vsel %vm1458, %v1457, %v1329
      %v1460 = vand.u32 %v1459, 65535
      %v1461 = vshra.s32 %v1459, 16
      %v1462 = vcvt.s32.f32 %v1460
      %v1463 = vcvt.s32.f32 %v1461
      %1464 = vmin.xlane.f32.xlu0 %v1463
      %v1465 = vpop.xlane.xlu0 %1464
      %vm1466 = vcmp.eq.f32.partialorder %v1463, %v1465
      %v1467 = vsel %vm1466, %v1462, inf
      %1468 = vmin.xlane.f32.xlu0 %v1467
      %v1469 = vpop.xlane.xlu0 %1468
      %v1470 = vcvt.f32.s32 %v1469
      %v1471 = vcvt.f32.s32 %v1465
      %v1472 = vshll.u32 %v1471, 16
      %v1473 = vadd.s32 %v1472, %v1470
      %vm1474 = vcmp.lt.s32.totalorder %v1330, %v1331
      %v1475 = vsel %vm1474, %v1330, %v1331
      %vm1476 = vcmp.lt.s32.totalorder %v1475, %v1332
      %v1477 = vsel %vm1476, %v1475, %v1332
      %vm1478 = vcmp.lt.s32.totalorder %v1477, %v1333
      %v1479 = vsel %vm1478, %v1477, %v1333
      %v1480 = vand.u32 %v1479, 65535
      %v1481 = vshra.s32 %v1479, 16
      %v1482 = vcvt.s32.f32 %v1480
      %v1483 = vcvt.s32.f32 %v1481
      %1484 = vmin.xlane.f32.xlu0 %v1483
      %v1485 = vpop.xlane.xlu0 %1484
      %vm1486 = vcmp.eq.f32.partialorder %v1483, %v1485
      %v1487 = vsel %vm1486, %v1482, inf
      %1488 = vmin.xlane.f32.xlu0 %v1487
      %v1489 = vpop.xlane.xlu0 %1488
      %v1490 = vcvt.f32.s32 %v1489
      %v1491 = vcvt.f32.s32 %v1485
      %v1492 = vshll.u32 %v1491, 16
      %v1493 = vadd.s32 %v1492, %v1490
      %vm1494 = vcmp.lt.s32.totalorder %v1334, %v1335
      %v1495 = vsel %vm1494, %v1334, %v1335
      %vm1496 = vcmp.lt.s32.totalorder %v1495, %v1336
      %v1497 = vsel %vm1496, %v1495, %v1336
      %vm1498 = vcmp.lt.s32.totalorder %v1497, %v1337
      %v1499 = vsel %vm1498, %v1497, %v1337
      %v1500 = vand.u32 %v1499, 65535
      %v1501 = vshra.s32 %v1499, 16
      %v1502 = vcvt.s32.f32 %v1500
      %v1503 = vcvt.s32.f32 %v1501
      %1504 = vmin.xlane.f32.xlu0 %v1503
      %v1505 = vpop.xlane.xlu0 %1504
      %vm1506 = vcmp.eq.f32.partialorder %v1503, %v1505
      %v1507 = vsel %vm1506, %v1502, inf
      %1508 = vmin.xlane.f32.xlu0 %v1507
      %v1509 = vpop.xlane.xlu0 %1508
      %v1510 = vcvt.f32.s32 %v1509
      %v1511 = vcvt.f32.s32 %v1505
      %v1512 = vshll.u32 %v1511, 16
      %v1513 = vadd.s32 %v1512, %v1510
      %vm1514 = vcmp.lt.s32.totalorder %v1338, %v1339
      %v1515 = vsel %vm1514, %v1338, %v1339
      %vm1516 = vcmp.lt.s32.totalorder %v1515, %v1340
      %v1517 = vsel %vm1516, %v1515, %v1340
      %vm1518 = vcmp.lt.s32.totalorder %v1517, %v1341
      %v1519 = vsel %vm1518, %v1517, %v1341
      %v1520 = vand.u32 %v1519, 65535
      %v1521 = vshra.s32 %v1519, 16
      %v1522 = vcvt.s32.f32 %v1520
      %v1523 = vcvt.s32.f32 %v1521
      %1524 = vmin.xlane.f32.xlu0 %v1523
      %v1525 = vpop.xlane.xlu0 %1524
      %vm1526 = vcmp.eq.f32.partialorder %v1523, %v1525
      %v1527 = vsel %vm1526, %v1522, inf
      %1528 = vmin.xlane.f32.xlu0 %v1527
      %v1529 = vpop.xlane.xlu0 %1528
      %v1530 = vcvt.f32.s32 %v1529
      %v1531 = vcvt.f32.s32 %v1525
      %v1532 = vshll.u32 %v1531, 16
      %v1533 = vadd.s32 %v1532, %v1530
      %vm1534 = vcmp.lt.s32.totalorder %v1342, %v1343
      %v1535 = vsel %vm1534, %v1342, %v1343
      %vm1536 = vcmp.lt.s32.totalorder %v1535, %v1344
      %v1537 = vsel %vm1536, %v1535, %v1344
      %vm1538 = vcmp.lt.s32.totalorder %v1537, %v1345
      %v1539 = vsel %vm1538, %v1537, %v1345
      %v1540 = vand.u32 %v1539, 65535
      %v1541 = vshra.s32 %v1539, 16
      %v1542 = vcvt.s32.f32 %v1540
      %v1543 = vcvt.s32.f32 %v1541
      %1544 = vmin.xlane.f32.xlu0 %v1543
      %v1545 = vpop.xlane.xlu0 %1544
      %vm1546 = vcmp.eq.f32.partialorder %v1543, %v1545
      %v1547 = vsel %vm1546, %v1542, inf
      %1548 = vmin.xlane.f32.xlu0 %v1547
      %v1549 = vpop.xlane.xlu0 %1548
      %v1550 = vcvt.f32.s32 %v1549
      %v1551 = vcvt.f32.s32 %v1545
      %v1552 = vshll.u32 %v1551, 16
      %v1553 = vadd.s32 %v1552, %v1550
      %vm1554 = vcmp.lt.s32.totalorder %v1346, %v1347
      %v1555 = vsel %vm1554, %v1346, %v1347
      %vm1556 = vcmp.lt.s32.totalorder %v1555, %v1348
      %v1557 = vsel %vm1556, %v1555, %v1348
      %vm1558 = vcmp.lt.s32.totalorder %v1557, %v1349
      %v1559 = vsel %vm1558, %v1557, %v1349
      %v1560 = vand.u32 %v1559, 65535
      %v1561 = vshra.s32 %v1559, 16
      %v1562 = vcvt.s32.f32 %v1560
      %v1563 = vcvt.s32.f32 %v1561
      %1564 = vmin.xlane.f32.xlu0 %v1563
      %v1565 = vpop.xlane.xlu0 %1564
      %vm1566 = vcmp.eq.f32.partialorder %v1563, %v1565
      %v1567 = vsel %vm1566, %v1562, inf
      %1568 = vmin.xlane.f32.xlu0 %v1567
      %v1569 = vpop.xlane.xlu0 %1568
      %v1570 = vcvt.f32.s32 %v1569
      %v1571 = vcvt.f32.s32 %v1565
      %v1572 = vshll.u32 %v1571, 16
      %v1573 = vadd.s32 %v1572, %v1570
      %vm1574 = vcmp.lt.s32.totalorder %v1350, %v1351
      %v1575 = vsel %vm1574, %v1350, %v1351
      %vm1576 = vcmp.lt.s32.totalorder %v1575, %v1352
      %v1577 = vsel %vm1576, %v1575, %v1352
      %vm1578 = vcmp.lt.s32.totalorder %v1577, %v1353
      %v1579 = vsel %vm1578, %v1577, %v1353
      %v1580 = vand.u32 %v1579, 65535
      %v1581 = vshra.s32 %v1579, 16
      %v1582 = vcvt.s32.f32 %v1580
      %v1583 = vcvt.s32.f32 %v1581
      %1584 = vmin.xlane.f32.xlu0 %v1583
      %v1585 = vpop.xlane.xlu0 %1584
      %vm1586 = vcmp.eq.f32.partialorder %v1583, %v1585
      %v1587 = vsel %vm1586, %v1582, inf
      %1588 = vmin.xlane.f32.xlu0 %v1587
      %v1589 = vpop.xlane.xlu0 %1588
      %v1590 = vcvt.f32.s32 %v1589
      %v1591 = vcvt.f32.s32 %v1585
      %v1592 = vshll.u32 %v1591, 16
      %v1593 = vadd.s32 %v1592, %v1590
      %vm1594 = vcmp.lt.s32.totalorder %v1354, %v1355
      %v1595 = vsel %vm1594, %v1354, %v1355
      %vm1596 = vcmp.lt.s32.totalorder %v1595, %v1356
      %v1597 = vsel %vm1596, %v1595, %v1356
      %vm1598 = vcmp.lt.s32.totalorder %v1597, %v1357
      %v1599 = vsel %vm1598, %v1597, %v1357
      %v1600 = vand.u32 %v1599, 65535
      %v1601 = vshra.s32 %v1599, 16
      %v1602 = vcvt.s32.f32 %v1600
      %v1603 = vcvt.s32.f32 %v1601
      %1604 = vmin.xlane.f32.xlu0 %v1603
      %v1605 = vpop.xlane.xlu0 %1604
      %vm1606 = vcmp.eq.f32.partialorder %v1603, %v1605
      %v1607 = vsel %vm1606, %v1602, inf
      %1608 = vmin.xlane.f32.xlu0 %v1607
      %v1609 = vpop.xlane.xlu0 %1608
      %v1610 = vcvt.f32.s32 %v1609
      %v1611 = vcvt.f32.s32 %v1605
      %v1612 = vshll.u32 %v1611, 16
      %v1613 = vadd.s32 %v1612, %v1610
      %vm1614 = vcmp.lt.s32.totalorder %v1358, %v1359
      %v1615 = vsel %vm1614, %v1358, %v1359
      %vm1616 = vcmp.lt.s32.totalorder %v1615, %v1360
      %v1617 = vsel %vm1616, %v1615, %v1360
      %vm1618 = vcmp.lt.s32.totalorder %v1617, %v1361
      %v1619 = vsel %vm1618, %v1617, %v1361
      %v1620 = vand.u32 %v1619, 65535
      %v1621 = vshra.s32 %v1619, 16
      %v1622 = vcvt.s32.f32 %v1620
      %v1623 = vcvt.s32.f32 %v1621
      %1624 = vmin.xlane.f32.xlu0 %v1623
      %v1625 = vpop.xlane.xlu0 %1624
      %vm1626 = vcmp.eq.f32.partialorder %v1623, %v1625
      %v1627 = vsel %vm1626, %v1622, inf
      %1628 = vmin.xlane.f32.xlu0 %v1627
      %v1629 = vpop.xlane.xlu0 %1628
      %v1630 = vcvt.f32.s32 %v1629
      %v1631 = vcvt.f32.s32 %v1625
      %v1632 = vshll.u32 %v1631, 16
      %v1633 = vadd.s32 %v1632, %v1630
      %vm1634 = vcmp.lt.s32.totalorder %v1362, %v1363
      %v1635 = vsel %vm1634, %v1362, %v1363
      %vm1636 = vcmp.lt.s32.totalorder %v1635, %v1364
      %v1637 = vsel %vm1636, %v1635, %v1364
      %vm1638 = vcmp.lt.s32.totalorder %v1637, %v1365
      %v1639 = vsel %vm1638, %v1637, %v1365
      %v1640 = vand.u32 %v1639, 65535
      %v1641 = vshra.s32 %v1639, 16
      %v1642 = vcvt.s32.f32 %v1640
      %v1643 = vcvt.s32.f32 %v1641
      %1644 = vmin.xlane.f32.xlu0 %v1643
      %v1645 = vpop.xlane.xlu0 %1644
      %vm1646 = vcmp.eq.f32.partialorder %v1643, %v1645
      %v1647 = vsel %vm1646, %v1642, inf
      %1648 = vmin.xlane.f32.xlu0 %v1647
      %v1649 = vpop.xlane.xlu0 %1648
      %v1650 = vcvt.f32.s32 %v1649
      %v1651 = vcvt.f32.s32 %v1645
      %v1652 = vshll.u32 %v1651, 16
      %v1653 = vadd.s32 %v1652, %v1650
      %vm1654 = vcmp.lt.s32.totalorder %v1366, %v1367
      %v1655 = vsel %vm1654, %v1366, %v1367
      %vm1656 = vcmp.lt.s32.totalorder %v1655, %v1368
      %v1657 = vsel %vm1656, %v1655, %v1368
      %vm1658 = vcmp.lt.s32.totalorder %v1657, %v1369
      %v1659 = vsel %vm1658, %v1657, %v1369
      %v1660 = vand.u32 %v1659, 65535
      %v1661 = vshra.s32 %v1659, 16
      %v1662 = vcvt.s32.f32 %v1660
      %v1663 = vcvt.s32.f32 %v1661
      %1664 = vmin.xlane.f32.xlu0 %v1663
      %v1665 = vpop.xlane.xlu0 %1664
      %vm1666 = vcmp.eq.f32.partialorder %v1663, %v1665
      %v1667 = vsel %vm1666, %v1662, inf
      %1668 = vmin.xlane.f32.xlu0 %v1667
      %v1669 = vpop.xlane.xlu0 %1668
      %v1670 = vcvt.f32.s32 %v1669
      %v1671 = vcvt.f32.s32 %v1665
      %v1672 = vshll.u32 %v1671, 16
      %v1673 = vadd.s32 %v1672, %v1670
      %vm1674 = vcmp.lt.s32.totalorder %v1370, %v1371
      %v1675 = vsel %vm1674, %v1370, %v1371
      %vm1676 = vcmp.lt.s32.totalorder %v1675, %v1372
      %v1677 = vsel %vm1676, %v1675, %v1372
      %vm1678 = vcmp.lt.s32.totalorder %v1677, %v1373
      %v1679 = vsel %vm1678, %v1677, %v1373
      %v1680 = vand.u32 %v1679, 65535
      %v1681 = vshra.s32 %v1679, 16
      %v1682 = vcvt.s32.f32 %v1680
      %v1683 = vcvt.s32.f32 %v1681
      %1684 = vmin.xlane.f32.xlu0 %v1683
      %v1685 = vpop.xlane.xlu0 %1684
      %vm1686 = vcmp.eq.f32.partialorder %v1683, %v1685
      %v1687 = vsel %vm1686, %v1682, inf
      %1688 = vmin.xlane.f32.xlu0 %v1687
      %v1689 = vpop.xlane.xlu0 %1688
      %v1690 = vcvt.f32.s32 %v1689
      %v1691 = vcvt.f32.s32 %v1685
      %v1692 = vshll.u32 %v1691, 16
      %v1693 = vadd.s32 %v1692, %v1690
      %vm1694 = vcmp.lt.s32.totalorder %v1374, %v1375
      %v1695 = vsel %vm1694, %v1374, %v1375
      %vm1696 = vcmp.lt.s32.totalorder %v1695, %v1376
      %v1697 = vsel %vm1696, %v1695, %v1376
      %vm1698 = vcmp.lt.s32.totalorder %v1697, %v1377
      %v1699 = vsel %vm1698, %v1697, %v1377
      %v1700 = vand.u32 %v1699, 65535
      %v1701 = vshra.s32 %v1699, 16
      %v1702 = vcvt.s32.f32 %v1700
      %v1703 = vcvt.s32.f32 %v1701
      %1704 = vmin.xlane.f32.xlu0 %v1703
      %v1705 = vpop.xlane.xlu0 %1704
      %vm1706 = vcmp.eq.f32.partialorder %v1703, %v1705
      %v1707 = vsel %vm1706, %v1702, inf
      %1708 = vmin.xlane.f32.xlu0 %v1707
      %v1709 = vpop.xlane.xlu0 %1708
      %v1710 = vcvt.f32.s32 %v1709
      %v1711 = vcvt.f32.s32 %v1705
      %v1712 = vshll.u32 %v1711, 16
      %v1713 = vadd.s32 %v1712, %v1710
      %vm1714 = vcmp.lt.s32.totalorder %v1378, %v1379
      %v1715 = vsel %vm1714, %v1378, %v1379
      %vm1716 = vcmp.lt.s32.totalorder %v1715, %v1380
      %v1717 = vsel %vm1716, %v1715, %v1380
      %vm1718 = vcmp.lt.s32.totalorder %v1717, %v1381
      %v1719 = vsel %vm1718, %v1717, %v1381
      %v1720 = vand.u32 %v1719, 65535
      %v1721 = vshra.s32 %v1719, 16
      %v1722 = vcvt.s32.f32 %v1720
      %v1723 = vcvt.s32.f32 %v1721
      %1724 = vmin.xlane.f32.xlu0 %v1723
      %v1725 = vpop.xlane.xlu0 %1724
      %vm1726 = vcmp.eq.f32.partialorder %v1723, %v1725
      %v1727 = vsel %vm1726, %v1722, inf
      %1728 = vmin.xlane.f32.xlu0 %v1727
      %v1729 = vpop.xlane.xlu0 %1728
      %v1730 = vcvt.f32.s32 %v1729
      %v1731 = vcvt.f32.s32 %v1725
      %v1732 = vshll.u32 %v1731, 16
      %v1733 = vadd.s32 %v1732, %v1730
      %vm1734 = vcmp.lt.s32.totalorder %v1382, %v1383
      %v1735 = vsel %vm1734, %v1382, %v1383
      %vm1736 = vcmp.lt.s32.totalorder %v1735, %v1384
      %v1737 = vsel %vm1736, %v1735, %v1384
      %vm1738 = vcmp.lt.s32.totalorder %v1737, %v1385
      %v1739 = vsel %vm1738, %v1737, %v1385
      %v1740 = vand.u32 %v1739, 65535
      %v1741 = vshra.s32 %v1739, 16
      %v1742 = vcvt.s32.f32 %v1740
      %v1743 = vcvt.s32.f32 %v1741
      %1744 = vmin.xlane.f32.xlu0 %v1743
      %v1745 = vpop.xlane.xlu0 %1744
      %vm1746 = vcmp.eq.f32.partialorder %v1743, %v1745
      %v1747 = vsel %vm1746, %v1742, inf
      %1748 = vmin.xlane.f32.xlu0 %v1747
      %v1749 = vpop.xlane.xlu0 %1748
      %v1750 = vcvt.f32.s32 %v1749
      %v1751 = vcvt.f32.s32 %v1745
      %v1752 = vshll.u32 %v1751, 16
      %v1753 = vadd.s32 %v1752, %v1750
      %vm1754 = vcmp.lt.s32.totalorder %v1386, %v1387
      %v1755 = vsel %vm1754, %v1386, %v1387
      %vm1756 = vcmp.lt.s32.totalorder %v1755, %v1388
      %v1757 = vsel %vm1756, %v1755, %v1388
      %vm1758 = vcmp.lt.s32.totalorder %v1757, %v1389
      %v1759 = vsel %vm1758, %v1757, %v1389
      %v1760 = vand.u32 %v1759, 65535
      %v1761 = vshra.s32 %v1759, 16
      %v1762 = vcvt.s32.f32 %v1760
      %v1763 = vcvt.s32.f32 %v1761
      %1764 = vmin.xlane.f32.xlu0 %v1763
      %v1765 = vpop.xlane.xlu0 %1764
      %vm1766 = vcmp.eq.f32.partialorder %v1763, %v1765
      %v1767 = vsel %vm1766, %v1762, inf
      %1768 = vmin.xlane.f32.xlu0 %v1767
      %v1769 = vpop.xlane.xlu0 %1768
      %v1770 = vcvt.f32.s32 %v1769
      %v1771 = vcvt.f32.s32 %v1765
      %v1772 = vshll.u32 %v1771, 16
      %v1773 = vadd.s32 %v1772, %v1770
      %vm1774 = vcmp.lt.s32.totalorder %v1390, %v1391
      %v1775 = vsel %vm1774, %v1390, %v1391
      %vm1776 = vcmp.lt.s32.totalorder %v1775, %v1392
      %v1777 = vsel %vm1776, %v1775, %v1392
      %vm1778 = vcmp.lt.s32.totalorder %v1777, %v1393
      %v1779 = vsel %vm1778, %v1777, %v1393
      %v1780 = vand.u32 %v1779, 65535
      %v1781 = vshra.s32 %v1779, 16
      %v1782 = vcvt.s32.f32 %v1780
      %v1783 = vcvt.s32.f32 %v1781
      %1784 = vmin.xlane.f32.xlu0 %v1783
      %v1785 = vpop.xlane.xlu0 %1784
      %vm1786 = vcmp.eq.f32.partialorder %v1783, %v1785
      %v1787 = vsel %vm1786, %v1782, inf
      %1788 = vmin.xlane.f32.xlu0 %v1787
      %v1789 = vpop.xlane.xlu0 %1788
      %v1790 = vcvt.f32.s32 %v1789
      %v1791 = vcvt.f32.s32 %v1785
      %v1792 = vshll.u32 %v1791, 16
      %v1793 = vadd.s32 %v1792, %v1790
      %vm1794 = vcmp.lt.s32.totalorder %v1394, %v1395
      %v1795 = vsel %vm1794, %v1394, %v1395
      %vm1796 = vcmp.lt.s32.totalorder %v1795, %v1396
      %v1797 = vsel %vm1796, %v1795, %v1396
      %vm1798 = vcmp.lt.s32.totalorder %v1797, %v1397
      %v1799 = vsel %vm1798, %v1797, %v1397
      %v1800 = vand.u32 %v1799, 65535
      %v1801 = vshra.s32 %v1799, 16
      %v1802 = vcvt.s32.f32 %v1800
      %v1803 = vcvt.s32.f32 %v1801
      %1804 = vmin.xlane.f32.xlu0 %v1803
      %v1805 = vpop.xlane.xlu0 %1804
      %vm1806 = vcmp.eq.f32.partialorder %v1803, %v1805
      %v1807 = vsel %vm1806, %v1802, inf
      %1808 = vmin.xlane.f32.xlu0 %v1807
      %v1809 = vpop.xlane.xlu0 %1808
      %v1810 = vcvt.f32.s32 %v1809
      %v1811 = vcvt.f32.s32 %v1805
      %v1812 = vshll.u32 %v1811, 16
      %v1813 = vadd.s32 %v1812, %v1810
      %vm1814 = vcmp.lt.s32.totalorder %v1398, %v1399
      %v1815 = vsel %vm1814, %v1398, %v1399
      %vm1816 = vcmp.lt.s32.totalorder %v1815, %v1400
      %v1817 = vsel %vm1816, %v1815, %v1400
      %vm1818 = vcmp.lt.s32.totalorder %v1817, %v1401
      %v1819 = vsel %vm1818, %v1817, %v1401
      %v1820 = vand.u32 %v1819, 65535
      %v1821 = vshra.s32 %v1819, 16
      %v1822 = vcvt.s32.f32 %v1820
      %v1823 = vcvt.s32.f32 %v1821
      %1824 = vmin.xlane.f32.xlu0 %v1823
      %v1825 = vpop.xlane.xlu0 %1824
      %vm1826 = vcmp.eq.f32.partialorder %v1823, %v1825
      %v1827 = vsel %vm1826, %v1822, inf
      %1828 = vmin.xlane.f32.xlu0 %v1827
      %v1829 = vpop.xlane.xlu0 %1828
      %v1830 = vcvt.f32.s32 %v1829
      %v1831 = vcvt.f32.s32 %v1825
      %v1832 = vshll.u32 %v1831, 16
      %v1833 = vadd.s32 %v1832, %v1830
      %vm1834 = vcmp.lt.s32.totalorder %v1402, %v1403
      %v1835 = vsel %vm1834, %v1402, %v1403
      %vm1836 = vcmp.lt.s32.totalorder %v1835, %v1404
      %v1837 = vsel %vm1836, %v1835, %v1404
      %vm1838 = vcmp.lt.s32.totalorder %v1837, %v1405
      %v1839 = vsel %vm1838, %v1837, %v1405
      %v1840 = vand.u32 %v1839, 65535
      %v1841 = vshra.s32 %v1839, 16
      %v1842 = vcvt.s32.f32 %v1840
      %v1843 = vcvt.s32.f32 %v1841
      %1844 = vmin.xlane.f32.xlu0 %v1843
      %v1845 = vpop.xlane.xlu0 %1844
      %vm1846 = vcmp.eq.f32.partialorder %v1843, %v1845
      %v1847 = vsel %vm1846, %v1842, inf
      %1848 = vmin.xlane.f32.xlu0 %v1847
      %v1849 = vpop.xlane.xlu0 %1848
      %v1850 = vcvt.f32.s32 %v1849
      %v1851 = vcvt.f32.s32 %v1845
      %v1852 = vshll.u32 %v1851, 16
      %v1853 = vadd.s32 %v1852, %v1850
      %vm1854 = vcmp.lt.s32.totalorder %v1406, %v1407
      %v1855 = vsel %vm1854, %v1406, %v1407
      %vm1856 = vcmp.lt.s32.totalorder %v1855, %v1408
      %v1857 = vsel %vm1856, %v1855, %v1408
      %vm1858 = vcmp.lt.s32.totalorder %v1857, %v1409
      %v1859 = vsel %vm1858, %v1857, %v1409
      %v1860 = vand.u32 %v1859, 65535
      %v1861 = vshra.s32 %v1859, 16
      %v1862 = vcvt.s32.f32 %v1860
      %v1863 = vcvt.s32.f32 %v1861
      %1864 = vmin.xlane.f32.xlu0 %v1863
      %v1865 = vpop.xlane.xlu0 %1864
      %vm1866 = vcmp.eq.f32.partialorder %v1863, %v1865
      %v1867 = vsel %vm1866, %v1862, inf
      %1868 = vmin.xlane.f32.xlu0 %v1867
      %v1869 = vpop.xlane.xlu0 %1868
      %v1870 = vcvt.f32.s32 %v1869
      %v1871 = vcvt.f32.s32 %v1865
      %v1872 = vshll.u32 %v1871, 16
      %v1873 = vadd.s32 %v1872, %v1870
      %vm1874 = vcmp.lt.s32.totalorder %v1410, %v1411
      %v1875 = vsel %vm1874, %v1410, %v1411
      %vm1876 = vcmp.lt.s32.totalorder %v1875, %v1412
      %v1877 = vsel %vm1876, %v1875, %v1412
      %vm1878 = vcmp.lt.s32.totalorder %v1877, %v1413
      %v1879 = vsel %vm1878, %v1877, %v1413
      %v1880 = vand.u32 %v1879, 65535
      %v1881 = vshra.s32 %v1879, 16
      %v1882 = vcvt.s32.f32 %v1880
      %v1883 = vcvt.s32.f32 %v1881
      %1884 = vmin.xlane.f32.xlu0 %v1883
      %v1885 = vpop.xlane.xlu0 %1884
      %vm1886 = vcmp.eq.f32.partialorder %v1883, %v1885
      %v1887 = vsel %vm1886, %v1882, inf
      %1888 = vmin.xlane.f32.xlu0 %v1887
      %v1889 = vpop.xlane.xlu0 %1888
      %v1890 = vcvt.f32.s32 %v1889
      %v1891 = vcvt.f32.s32 %v1885
      %v1892 = vshll.u32 %v1891, 16
      %v1893 = vadd.s32 %v1892, %v1890
      %vm1894 = vcmp.lt.s32.totalorder %v1414, %v1415
      %v1895 = vsel %vm1894, %v1414, %v1415
      %vm1896 = vcmp.lt.s32.totalorder %v1895, %v1416
      %v1897 = vsel %vm1896, %v1895, %v1416
      %vm1898 = vcmp.lt.s32.totalorder %v1897, %v1417
      %v1899 = vsel %vm1898, %v1897, %v1417
      %v1900 = vand.u32 %v1899, 65535
      %v1901 = vshra.s32 %v1899, 16
      %v1902 = vcvt.s32.f32 %v1900
      %v1903 = vcvt.s32.f32 %v1901
      %1904 = vmin.xlane.f32.xlu0 %v1903
      %v1905 = vpop.xlane.xlu0 %1904
      %vm1906 = vcmp.eq.f32.partialorder %v1903, %v1905
      %v1907 = vsel %vm1906, %v1902, inf
      %1908 = vmin.xlane.f32.xlu0 %v1907
      %v1909 = vpop.xlane.xlu0 %1908
      %v1910 = vcvt.f32.s32 %v1909
      %v1911 = vcvt.f32.s32 %v1905
      %v1912 = vshll.u32 %v1911, 16
      %v1913 = vadd.s32 %v1912, %v1910
      %vm1914 = vcmp.lt.s32.totalorder %v1418, %v1419
      %v1915 = vsel %vm1914, %v1418, %v1419
      %vm1916 = vcmp.lt.s32.totalorder %v1915, %v1420
      %v1917 = vsel %vm1916, %v1915, %v1420
      %vm1918 = vcmp.lt.s32.totalorder %v1917, %v1421
      %v1919 = vsel %vm1918, %v1917, %v1421
      %v1920 = vand.u32 %v1919, 65535
      %v1921 = vshra.s32 %v1919, 16
      %v1922 = vcvt.s32.f32 %v1920
      %v1923 = vcvt.s32.f32 %v1921
      %1924 = vmin.xlane.f32.xlu0 %v1923
      %v1925 = vpop.xlane.xlu0 %1924
      %vm1926 = vcmp.eq.f32.partialorder %v1923, %v1925
      %v1927 = vsel %vm1926, %v1922, inf
      %1928 = vmin.xlane.f32.xlu0 %v1927
      %v1929 = vpop.xlane.xlu0 %1928
      %v1930 = vcvt.f32.s32 %v1929
      %v1931 = vcvt.f32.s32 %v1925
      %v1932 = vshll.u32 %v1931, 16
      %v1933 = vadd.s32 %v1932, %v1930
      %vm1934 = vcmp.lt.s32.totalorder %v1422, %v1423
      %v1935 = vsel %vm1934, %v1422, %v1423
      %vm1936 = vcmp.lt.s32.totalorder %v1935, %v1424
      %v1937 = vsel %vm1936, %v1935, %v1424
      %vm1938 = vcmp.lt.s32.totalorder %v1937, %v1425
      %v1939 = vsel %vm1938, %v1937, %v1425
      %v1940 = vand.u32 %v1939, 65535
      %v1941 = vshra.s32 %v1939, 16
      %v1942 = vcvt.s32.f32 %v1940
      %v1943 = vcvt.s32.f32 %v1941
      %1944 = vmin.xlane.f32.xlu0 %v1943
      %v1945 = vpop.xlane.xlu0 %1944
      %vm1946 = vcmp.eq.f32.partialorder %v1943, %v1945
      %v1947 = vsel %vm1946, %v1942, inf
      %1948 = vmin.xlane.f32.xlu0 %v1947
      %v1949 = vpop.xlane.xlu0 %1948
      %v1950 = vcvt.f32.s32 %v1949
      %v1951 = vcvt.f32.s32 %v1945
      %v1952 = vshll.u32 %v1951, 16
      %v1953 = vadd.s32 %v1952, %v1950
      %vm1954 = vcmp.lt.s32.totalorder %v1426, %v1427
      %v1955 = vsel %vm1954, %v1426, %v1427
      %vm1956 = vcmp.lt.s32.totalorder %v1955, %v1428
      %v1957 = vsel %vm1956, %v1955, %v1428
      %vm1958 = vcmp.lt.s32.totalorder %v1957, %v1429
      %v1959 = vsel %vm1958, %v1957, %v1429
      %v1960 = vand.u32 %v1959, 65535
      %v1961 = vshra.s32 %v1959, 16
      %v1962 = vcvt.s32.f32 %v1960
      %v1963 = vcvt.s32.f32 %v1961
      %1964 = vmin.xlane.f32.xlu0 %v1963
      %v1965 = vpop.xlane.xlu0 %1964
      %vm1966 = vcmp.eq.f32.partialorder %v1963, %v1965
      %v1967 = vsel %vm1966, %v1962, inf
      %1968 = vmin.xlane.f32.xlu0 %v1967
      %v1969 = vpop.xlane.xlu0 %1968
      %v1970 = vcvt.f32.s32 %v1969
      %v1971 = vcvt.f32.s32 %v1965
      %v1972 = vshll.u32 %v1971, 16
      %v1973 = vadd.s32 %v1972, %v1970
      %vm1974 = vcmp.lt.s32.totalorder %v1430, %v1431
      %v1975 = vsel %vm1974, %v1430, %v1431
      %vm1976 = vcmp.lt.s32.totalorder %v1975, %v1432
      %v1977 = vsel %vm1976, %v1975, %v1432
      %vm1978 = vcmp.lt.s32.totalorder %v1977, %v1433
      %v1979 = vsel %vm1978, %v1977, %v1433
      %v1980 = vand.u32 %v1979, 65535
      %v1981 = vshra.s32 %v1979, 16
      %v1982 = vcvt.s32.f32 %v1980
      %v1983 = vcvt.s32.f32 %v1981
      %1984 = vmin.xlane.f32.xlu0 %v1983
      %v1985 = vpop.xlane.xlu0 %1984
      %vm1986 = vcmp.eq.f32.partialorder %v1983, %v1985
      %v1987 = vsel %vm1986, %v1982, inf
      %1988 = vmin.xlane.f32.xlu0 %v1987
      %v1989 = vpop.xlane.xlu0 %1988
      %v1990 = vcvt.f32.s32 %v1989
      %v1991 = vcvt.f32.s32 %v1985
      %v1992 = vshll.u32 %v1991, 16
      %v1993 = vadd.s32 %v1992, %v1990
      %vm1994 = vcmp.lt.s32.totalorder %v1434, %v1435
      %v1995 = vsel %vm1994, %v1434, %v1435
      %vm1996 = vcmp.lt.s32.totalorder %v1995, %v1436
      %v1997 = vsel %vm1996, %v1995, %v1436
      %vm1998 = vcmp.lt.s32.totalorder %v1997, %v1437
      %v1999 = vsel %vm1998, %v1997, %v1437
      %v2000 = vand.u32 %v1999, 65535
      %v2001 = vshra.s32 %v1999, 16
      %v2002 = vcvt.s32.f32 %v2000
      %v2003 = vcvt.s32.f32 %v2001
      %2004 = vmin.xlane.f32.xlu0 %v2003
      %v2005 = vpop.xlane.xlu0 %2004
      %vm2006 = vcmp.eq.f32.partialorder %v2003, %v2005
      %v2007 = vsel %vm2006, %v2002, inf
      %2008 = vmin.xlane.f32.xlu0 %v2007
      %v2009 = vpop.xlane.xlu0 %2008
      %v2010 = vcvt.f32.s32 %v2009
      %v2011 = vcvt.f32.s32 %v2005
      %v2012 = vshll.u32 %v2011, 16
      %v2013 = vadd.s32 %v2012, %v2010
      %vm2014 = vcmp.lt.s32.totalorder %v1438, %v1439
      %v2015 = vsel %vm2014, %v1438, %v1439
      %vm2016 = vcmp.lt.s32.totalorder %v2015, %v1440
      %v2017 = vsel %vm2016, %v2015, %v1440
      %vm2018 = vcmp.lt.s32.totalorder %v2017, %v1441
      %v2019 = vsel %vm2018, %v2017, %v1441
      %v2020 = vand.u32 %v2019, 65535
      %v2021 = vshra.s32 %v2019, 16
      %v2022 = vcvt.s32.f32 %v2020
      %v2023 = vcvt.s32.f32 %v2021
      %2024 = vmin.xlane.f32.xlu0 %v2023
      %v2025 = vpop.xlane.xlu0 %2024
      %vm2026 = vcmp.eq.f32.partialorder %v2023, %v2025
      %v2027 = vsel %vm2026, %v2022, inf
      %2028 = vmin.xlane.f32.xlu0 %v2027
      %v2029 = vpop.xlane.xlu0 %2028
      %v2030 = vcvt.f32.s32 %v2029
      %v2031 = vcvt.f32.s32 %v2025
      %v2032 = vshll.u32 %v2031, 16
      %v2033 = vadd.s32 %v2032, %v2030
      %vm2034 = vcmp.lt.s32.totalorder %v1442, %v1443
      %v2035 = vsel %vm2034, %v1442, %v1443
      %vm2036 = vcmp.lt.s32.totalorder %v2035, %v1444
      %v2037 = vsel %vm2036, %v2035, %v1444
      %vm2038 = vcmp.lt.s32.totalorder %v2037, %v1445
      %v2039 = vsel %vm2038, %v2037, %v1445
      %v2040 = vand.u32 %v2039, 65535
      %v2041 = vshra.s32 %v2039, 16
      %v2042 = vcvt.s32.f32 %v2040
      %v2043 = vcvt.s32.f32 %v2041
      %2044 = vmin.xlane.f32.xlu0 %v2043
      %v2045 = vpop.xlane.xlu0 %2044
      %vm2046 = vcmp.eq.f32.partialorder %v2043, %v2045
      %v2047 = vsel %vm2046, %v2042, inf
      %2048 = vmin.xlane.f32.xlu0 %v2047
      %v2049 = vpop.xlane.xlu0 %2048
      %v2050 = vcvt.f32.s32 %v2049
      %v2051 = vcvt.f32.s32 %v2045
      %v2052 = vshll.u32 %v2051, 16
      %v2053 = vadd.s32 %v2052, %v2050
      %vm2054 = vcmp.lt.s32.totalorder %v1446, %v1447
      %v2055 = vsel %vm2054, %v1446, %v1447
      %vm2056 = vcmp.lt.s32.totalorder %v2055, %v1448
      %v2057 = vsel %vm2056, %v2055, %v1448
      %vm2058 = vcmp.lt.s32.totalorder %v2057, %v1449
      %v2059 = vsel %vm2058, %v2057, %v1449
      %v2060 = vand.u32 %v2059, 65535
      %v2061 = vshra.s32 %v2059, 16
      %v2062 = vcvt.s32.f32 %v2060
      %v2063 = vcvt.s32.f32 %v2061
      %2064 = vmin.xlane.f32.xlu0 %v2063
      %v2065 = vpop.xlane.xlu0 %2064
      %vm2066 = vcmp.eq.f32.partialorder %v2063, %v2065
      %v2067 = vsel %vm2066, %v2062, inf
      %2068 = vmin.xlane.f32.xlu0 %v2067
      %v2069 = vpop.xlane.xlu0 %2068
      %v2070 = vcvt.f32.s32 %v2069
      %v2071 = vcvt.f32.s32 %v2065
      %v2072 = vshll.u32 %v2071, 16
      %v2073 = vadd.s32 %v2072, %v2070
      %vm2074 = vcmp.lt.s32.totalorder %v1450, %v1451
      %v2075 = vsel %vm2074, %v1450, %v1451
      %vm2076 = vcmp.lt.s32.totalorder %v2075, %v1452
      %v2077 = vsel %vm2076, %v2075, %v1452
      %vm2078 = vcmp.lt.s32.totalorder %v2077, %v1453
      %v2079 = vsel %vm2078, %v2077, %v1453
      %v2080 = vand.u32 %v2079, 65535
      %v2081 = vshra.s32 %v2079, 16
      %v2082 = vcvt.s32.f32 %v2080
      %v2083 = vcvt.s32.f32 %v2081
      %2084 = vmin.xlane.f32.xlu0 %v2083
      %v2085 = vpop.xlane.xlu0 %2084
      %vm2086 = vcmp.eq.f32.partialorder %v2083, %v2085
      %v2087 = vsel %vm2086, %v2082, inf
      %2088 = vmin.xlane.f32.xlu0 %v2087
      %v2089 = vpop.xlane.xlu0 %2088
      %v2090 = vcvt.f32.s32 %v2089
      %v2091 = vcvt.f32.s32 %v2085
      %v2092 = vshll.u32 %v2091, 16
      %v2093 = vadd.s32 %v2092, %v2090
      %vm2094 = vcmp.eq.s32.totalorder %v1194, %v1473
      %vm2095 = vcmp.eq.s32.totalorder %v1195, %v1473
      %vm2096 = vcmp.eq.s32.totalorder %v1196, %v1473
      %vm2097 = vcmp.eq.s32.totalorder %v1197, %v1473
      %vm2098 = vcmp.eq.s32.totalorder %v1194, %v1493
      %vm2099 = vcmp.eq.s32.totalorder %v1195, %v1493
      %vm2100 = vcmp.eq.s32.totalorder %v1196, %v1493
      %vm2101 = vcmp.eq.s32.totalorder %v1197, %v1493
      %vm2102 = vcmp.eq.s32.totalorder %v1194, %v1513
      %vm2103 = vcmp.eq.s32.totalorder %v1195, %v1513
      %vm2104 = vcmp.eq.s32.totalorder %v1196, %v1513
      %vm2105 = vcmp.eq.s32.totalorder %v1197, %v1513
      %vm2106 = vcmp.eq.s32.totalorder %v1194, %v1533
      %vm2107 = vcmp.eq.s32.totalorder %v1195, %v1533
      %vm2108 = vcmp.eq.s32.totalorder %v1196, %v1533
      %vm2109 = vcmp.eq.s32.totalorder %v1197, %v1533
      %vm2110 = vcmp.eq.s32.totalorder %v1194, %v1553
      %vm2111 = vcmp.eq.s32.totalorder %v1195, %v1553
      %vm2112 = vcmp.eq.s32.totalorder %v1196, %v1553
      %vm2113 = vcmp.eq.s32.totalorder %v1197, %v1553
      %vm2114 = vcmp.eq.s32.totalorder %v1194, %v1573
      %vm2115 = vcmp.eq.s32.totalorder %v1195, %v1573
      %vm2116 = vcmp.eq.s32.totalorder %v1196, %v1573
      %vm2117 = vcmp.eq.s32.totalorder %v1197, %v1573
      %vm2118 = vcmp.eq.s32.totalorder %v1194, %v1593
      %vm2119 = vcmp.eq.s32.totalorder %v1195, %v1593
      %vm2120 = vcmp.eq.s32.totalorder %v1196, %v1593
      %vm2121 = vcmp.eq.s32.totalorder %v1197, %v1593
      %vm2122 = vcmp.eq.s32.totalorder %v1194, %v1613
      %vm2123 = vcmp.eq.s32.totalorder %v1195, %v1613
      %vm2124 = vcmp.eq.s32.totalorder %v1196, %v1613
      %vm2125 = vcmp.eq.s32.totalorder %v1197, %v1613
      %vm2126 = vcmp.eq.s32.totalorder %v1194, %v1633
      %vm2127 = vcmp.eq.s32.totalorder %v1195, %v1633
      %vm2128 = vcmp.eq.s32.totalorder %v1196, %v1633
      %vm2129 = vcmp.eq.s32.totalorder %v1197, %v1633
      %vm2130 = vcmp.eq.s32.totalorder %v1194, %v1653
      %vm2131 = vcmp.eq.s32.totalorder %v1195, %v1653
      %vm2132 = vcmp.eq.s32.totalorder %v1196, %v1653
      %vm2133 = vcmp.eq.s32.totalorder %v1197, %v1653
      %vm2134 = vcmp.eq.s32.totalorder %v1194, %v1673
      %vm2135 = vcmp.eq.s32.totalorder %v1195, %v1673
      %vm2136 = vcmp.eq.s32.totalorder %v1196, %v1673
      %vm2137 = vcmp.eq.s32.totalorder %v1197, %v1673
      %vm2138 = vcmp.eq.s32.totalorder %v1194, %v1693
      %vm2139 = vcmp.eq.s32.totalorder %v1195, %v1693
      %vm2140 = vcmp.eq.s32.totalorder %v1196, %v1693
      %vm2141 = vcmp.eq.s32.totalorder %v1197, %v1693
      %vm2142 = vcmp.eq.s32.totalorder %v1194, %v1713
      %vm2143 = vcmp.eq.s32.totalorder %v1195, %v1713
      %vm2144 = vcmp.eq.s32.totalorder %v1196, %v1713
      %vm2145 = vcmp.eq.s32.totalorder %v1197, %v1713
      %vm2146 = vcmp.eq.s32.totalorder %v1194, %v1733
      %vm2147 = vcmp.eq.s32.totalorder %v1195, %v1733
      %vm2148 = vcmp.eq.s32.totalorder %v1196, %v1733
      %vm2149 = vcmp.eq.s32.totalorder %v1197, %v1733
      %vm2150 = vcmp.eq.s32.totalorder %v1194, %v1753
      %vm2151 = vcmp.eq.s32.totalorder %v1195, %v1753
      %vm2152 = vcmp.eq.s32.totalorder %v1196, %v1753
      %vm2153 = vcmp.eq.s32.totalorder %v1197, %v1753
      %vm2154 = vcmp.eq.s32.totalorder %v1194, %v1773
      %vm2155 = vcmp.eq.s32.totalorder %v1195, %v1773
      %vm2156 = vcmp.eq.s32.totalorder %v1196, %v1773
      %vm2157 = vcmp.eq.s32.totalorder %v1197, %v1773
      %vm2158 = vcmp.eq.s32.totalorder %v1194, %v1793
      %vm2159 = vcmp.eq.s32.totalorder %v1195, %v1793
      %vm2160 = vcmp.eq.s32.totalorder %v1196, %v1793
      %vm2161 = vcmp.eq.s32.totalorder %v1197, %v1793
      %vm2162 = vcmp.eq.s32.totalorder %v1194, %v1813
      %vm2163 = vcmp.eq.s32.totalorder %v1195, %v1813
      %vm2164 = vcmp.eq.s32.totalorder %v1196, %v1813
      %vm2165 = vcmp.eq.s32.totalorder %v1197, %v1813
      %vm2166 = vcmp.eq.s32.totalorder %v1194, %v1833
      %vm2167 = vcmp.eq.s32.totalorder %v1195, %v1833
      %vm2168 = vcmp.eq.s32.totalorder %v1196, %v1833
      %vm2169 = vcmp.eq.s32.totalorder %v1197, %v1833
      %vm2170 = vcmp.eq.s32.totalorder %v1194, %v1853
      %vm2171 = vcmp.eq.s32.totalorder %v1195, %v1853
      %vm2172 = vcmp.eq.s32.totalorder %v1196, %v1853
      %vm2173 = vcmp.eq.s32.totalorder %v1197, %v1853
      %vm2174 = vcmp.eq.s32.totalorder %v1194, %v1873
      %vm2175 = vcmp.eq.s32.totalorder %v1195, %v1873
      %vm2176 = vcmp.eq.s32.totalorder %v1196, %v1873
      %vm2177 = vcmp.eq.s32.totalorder %v1197, %v1873
      %vm2178 = vcmp.eq.s32.totalorder %v1194, %v1893
      %vm2179 = vcmp.eq.s32.totalorder %v1195, %v1893
      %vm2180 = vcmp.eq.s32.totalorder %v1196, %v1893
      %vm2181 = vcmp.eq.s32.totalorder %v1197, %v1893
      %vm2182 = vcmp.eq.s32.totalorder %v1194, %v1913
      %vm2183 = vcmp.eq.s32.totalorder %v1195, %v1913
      %vm2184 = vcmp.eq.s32.totalorder %v1196, %v1913
      %vm2185 = vcmp.eq.s32.totalorder %v1197, %v1913
      %vm2186 = vcmp.eq.s32.totalorder %v1194, %v1933
      %vm2187 = vcmp.eq.s32.totalorder %v1195, %v1933
      %vm2188 = vcmp.eq.s32.totalorder %v1196, %v1933
      %vm2189 = vcmp.eq.s32.totalorder %v1197, %v1933
      %vm2190 = vcmp.eq.s32.totalorder %v1194, %v1953
      %vm2191 = vcmp.eq.s32.totalorder %v1195, %v1953
      %vm2192 = vcmp.eq.s32.totalorder %v1196, %v1953
      %vm2193 = vcmp.eq.s32.totalorder %v1197, %v1953
      %vm2194 = vcmp.eq.s32.totalorder %v1194, %v1973
      %vm2195 = vcmp.eq.s32.totalorder %v1195, %v1973
      %vm2196 = vcmp.eq.s32.totalorder %v1196, %v1973
      %vm2197 = vcmp.eq.s32.totalorder %v1197, %v1973
      %vm2198 = vcmp.eq.s32.totalorder %v1194, %v1993
      %vm2199 = vcmp.eq.s32.totalorder %v1195, %v1993
      %vm2200 = vcmp.eq.s32.totalorder %v1196, %v1993
      %vm2201 = vcmp.eq.s32.totalorder %v1197, %v1993
      %vm2202 = vcmp.eq.s32.totalorder %v1194, %v2013
      %vm2203 = vcmp.eq.s32.totalorder %v1195, %v2013
      %vm2204 = vcmp.eq.s32.totalorder %v1196, %v2013
      %vm2205 = vcmp.eq.s32.totalorder %v1197, %v2013
      %vm2206 = vcmp.eq.s32.totalorder %v1194, %v2033
      %vm2207 = vcmp.eq.s32.totalorder %v1195, %v2033
      %vm2208 = vcmp.eq.s32.totalorder %v1196, %v2033
      %vm2209 = vcmp.eq.s32.totalorder %v1197, %v2033
      %vm2210 = vcmp.eq.s32.totalorder %v1194, %v2053
      %vm2211 = vcmp.eq.s32.totalorder %v1195, %v2053
      %vm2212 = vcmp.eq.s32.totalorder %v1196, %v2053
      %vm2213 = vcmp.eq.s32.totalorder %v1197, %v2053
      %vm2214 = vcmp.eq.s32.totalorder %v1194, %v2073
      %vm2215 = vcmp.eq.s32.totalorder %v1195, %v2073
      %vm2216 = vcmp.eq.s32.totalorder %v1196, %v2073
      %vm2217 = vcmp.eq.s32.totalorder %v1197, %v2073
      %vm2218 = vcmp.eq.s32.totalorder %v1194, %v2093
      %vm2219 = vcmp.eq.s32.totalorder %v1195, %v2093
      %vm2220 = vcmp.eq.s32.totalorder %v1196, %v2093
      %vm2221 = vcmp.eq.s32.totalorder %v1197, %v2093
      %v2222 = vsel %vm2094, 1, 0
      %v2223 = vsel %vm2095, 1, 0
      %v2224 = vsel %vm2096, 1, 0
      %v2225 = vsel %vm2097, 1, 0
      %v2226 = vsel %vm2098, 1, 0
      %v2227 = vsel %vm2099, 1, 0
      %v2228 = vsel %vm2100, 1, 0
      %v2229 = vsel %vm2101, 1, 0
      %v2230 = vsel %vm2102, 1, 0
      %v2231 = vsel %vm2103, 1, 0
      %v2232 = vsel %vm2104, 1, 0
      %v2233 = vsel %vm2105, 1, 0
      %v2234 = vsel %vm2106, 1, 0
      %v2235 = vsel %vm2107, 1, 0
      %v2236 = vsel %vm2108, 1, 0
      %v2237 = vsel %vm2109, 1, 0
      %v2238 = vsel %vm2110, 1, 0
      %v2239 = vsel %vm2111, 1, 0
      %v2240 = vsel %vm2112, 1, 0
      %v2241 = vsel %vm2113, 1, 0
      %v2242 = vsel %vm2114, 1, 0
      %v2243 = vsel %vm2115, 1, 0
      %v2244 = vsel %vm2116, 1, 0
      %v2245 = vsel %vm2117, 1, 0
      %v2246 = vsel %vm2118, 1, 0
      %v2247 = vsel %vm2119, 1, 0
      %v2248 = vsel %vm2120, 1, 0
      %v2249 = vsel %vm2121, 1, 0
      %v2250 = vsel %vm2122, 1, 0
      %v2251 = vsel %vm2123, 1, 0
      %v2252 = vsel %vm2124, 1, 0
      %v2253 = vsel %vm2125, 1, 0
      %v2254 = vsel %vm2126, 1, 0
      %v2255 = vsel %vm2127, 1, 0
      %v2256 = vsel %vm2128, 1, 0
      %v2257 = vsel %vm2129, 1, 0
      %v2258 = vsel %vm2130, 1, 0
      %v2259 = vsel %vm2131, 1, 0
      %v2260 = vsel %vm2132, 1, 0
      %v2261 = vsel %vm2133, 1, 0
      %v2262 = vsel %vm2134, 1, 0
      %v2263 = vsel %vm2135, 1, 0
      %v2264 = vsel %vm2136, 1, 0
      %v2265 = vsel %vm2137, 1, 0
      %v2266 = vsel %vm2138, 1, 0
      %v2267 = vsel %vm2139, 1, 0
      %v2268 = vsel %vm2140, 1, 0
      %v2269 = vsel %vm2141, 1, 0
      %v2270 = vsel %vm2142, 1, 0
      %v2271 = vsel %vm2143, 1, 0
      %v2272 = vsel %vm2144, 1, 0
      %v2273 = vsel %vm2145, 1, 0
      %v2274 = vsel %vm2146, 1, 0
      %v2275 = vsel %vm2147, 1, 0
      %v2276 = vsel %vm2148, 1, 0
      %v2277 = vsel %vm2149, 1, 0
      %v2278 = vsel %vm2150, 1, 0
      %v2279 = vsel %vm2151, 1, 0
      %v2280 = vsel %vm2152, 1, 0
      %v2281 = vsel %vm2153, 1, 0
      %v2282 = vsel %vm2154, 1, 0
      %v2283 = vsel %vm2155, 1, 0
      %v2284 = vsel %vm2156, 1, 0
      %v2285 = vsel %vm2157, 1, 0
      %v2286 = vsel %vm2158, 1, 0
      %v2287 = vsel %vm2159, 1, 0
      %v2288 = vsel %vm2160, 1, 0
      %v2289 = vsel %vm2161, 1, 0
      %v2290 = vsel %vm2162, 1, 0
      %v2291 = vsel %vm2163, 1, 0
      %v2292 = vsel %vm2164, 1, 0
      %v2293 = vsel %vm2165, 1, 0
      %v2294 = vsel %vm2166, 1, 0
      %v2295 = vsel %vm2167, 1, 0
      %v2296 = vsel %vm2168, 1, 0
      %v2297 = vsel %vm2169, 1, 0
      %v2298 = vsel %vm2170, 1, 0
      %v2299 = vsel %vm2171, 1, 0
      %v2300 = vsel %vm2172, 1, 0
      %v2301 = vsel %vm2173, 1, 0
      %v2302 = vsel %vm2174, 1, 0
      %v2303 = vsel %vm2175, 1, 0
      %v2304 = vsel %vm2176, 1, 0
      %v2305 = vsel %vm2177, 1, 0
      %v2306 = vsel %vm2178, 1, 0
      %v2307 = vsel %vm2179, 1, 0
      %v2308 = vsel %vm2180, 1, 0
      %v2309 = vsel %vm2181, 1, 0
      %v2310 = vsel %vm2182, 1, 0
      %v2311 = vsel %vm2183, 1, 0
      %v2312 = vsel %vm2184, 1, 0
      %v2313 = vsel %vm2185, 1, 0
      %v2314 = vsel %vm2186, 1, 0
      %v2315 = vsel %vm2187, 1, 0
      %v2316 = vsel %vm2188, 1, 0
      %v2317 = vsel %vm2189, 1, 0
      %v2318 = vsel %vm2190, 1, 0
      %v2319 = vsel %vm2191, 1, 0
      %v2320 = vsel %vm2192, 1, 0
      %v2321 = vsel %vm2193, 1, 0
      %v2322 = vsel %vm2194, 1, 0
      %v2323 = vsel %vm2195, 1, 0
      %v2324 = vsel %vm2196, 1, 0
      %v2325 = vsel %vm2197, 1, 0
      %v2326 = vsel %vm2198, 1, 0
      %v2327 = vsel %vm2199, 1, 0
      %v2328 = vsel %vm2200, 1, 0
      %v2329 = vsel %vm2201, 1, 0
      %v2330 = vsel %vm2202, 1, 0
      %v2331 = vsel %vm2203, 1, 0
      %v2332 = vsel %vm2204, 1, 0
      %v2333 = vsel %vm2205, 1, 0
      %v2334 = vsel %vm2206, 1, 0
      %v2335 = vsel %vm2207, 1, 0
      %v2336 = vsel %vm2208, 1, 0
      %v2337 = vsel %vm2209, 1, 0
      %v2338 = vsel %vm2210, 1, 0
      %v2339 = vsel %vm2211, 1, 0
      %v2340 = vsel %vm2212, 1, 0
      %v2341 = vsel %vm2213, 1, 0
      %v2342 = vsel %vm2214, 1, 0
      %v2343 = vsel %vm2215, 1, 0
      %v2344 = vsel %vm2216, 1, 0
      %v2345 = vsel %vm2217, 1, 0
      %v2346 = vsel %vm2218, 1, 0
      %v2347 = vsel %vm2219, 1, 0
      %v2348 = vsel %vm2220, 1, 0
      %v2349 = vsel %vm2221, 1, 0
      %v2350 = vcvt.s32.f32 %v2222
      %v2351 = vcvt.s32.f32 %v2223
      %v2352 = vcvt.s32.f32 %v2224
      %v2353 = vcvt.s32.f32 %v2225
      %v2354 = vcvt.s32.f32 %v2226
      %v2355 = vcvt.s32.f32 %v2227
      %v2356 = vcvt.s32.f32 %v2228
      %v2357 = vcvt.s32.f32 %v2229
      %v2358 = vcvt.s32.f32 %v2230
      %v2359 = vcvt.s32.f32 %v2231
      %v2360 = vcvt.s32.f32 %v2232
      %v2361 = vcvt.s32.f32 %v2233
      %v2362 = vcvt.s32.f32 %v2234
      %v2363 = vcvt.s32.f32 %v2235
      %v2364 = vcvt.s32.f32 %v2236
      %v2365 = vcvt.s32.f32 %v2237
      %v2366 = vcvt.s32.f32 %v2238
      %v2367 = vcvt.s32.f32 %v2239
      %v2368 = vcvt.s32.f32 %v2240
      %v2369 = vcvt.s32.f32 %v2241
      %v2370 = vcvt.s32.f32 %v2242
      %v2371 = vcvt.s32.f32 %v2243
      %v2372 = vcvt.s32.f32 %v2244
      %v2373 = vcvt.s32.f32 %v2245
      %v2374 = vcvt.s32.f32 %v2246
      %v2375 = vcvt.s32.f32 %v2247
      %v2376 = vcvt.s32.f32 %v2248
      %v2377 = vcvt.s32.f32 %v2249
      %v2378 = vcvt.s32.f32 %v2250
      %v2379 = vcvt.s32.f32 %v2251
      %v2380 = vcvt.s32.f32 %v2252
      %v2381 = vcvt.s32.f32 %v2253
      %v2382 = vcvt.s32.f32 %v2254
      %v2383 = vcvt.s32.f32 %v2255
      %v2384 = vcvt.s32.f32 %v2256
      %v2385 = vcvt.s32.f32 %v2257
      %v2386 = vcvt.s32.f32 %v2258
      %v2387 = vcvt.s32.f32 %v2259
      %v2388 = vcvt.s32.f32 %v2260
      %v2389 = vcvt.s32.f32 %v2261
      %v2390 = vcvt.s32.f32 %v2262
      %v2391 = vcvt.s32.f32 %v2263
      %v2392 = vcvt.s32.f32 %v2264
      %v2393 = vcvt.s32.f32 %v2265
      %v2394 = vcvt.s32.f32 %v2266
      %v2395 = vcvt.s32.f32 %v2267
      %v2396 = vcvt.s32.f32 %v2268
      %v2397 = vcvt.s32.f32 %v2269
      %v2398 = vcvt.s32.f32 %v2270
      %v2399 = vcvt.s32.f32 %v2271
      %v2400 = vcvt.s32.f32 %v2272
      %v2401 = vcvt.s32.f32 %v2273
      %v2402 = vcvt.s32.f32 %v2274
      %v2403 = vcvt.s32.f32 %v2275
      %v2404 = vcvt.s32.f32 %v2276
      %v2405 = vcvt.s32.f32 %v2277
      %v2406 = vcvt.s32.f32 %v2278
      %v2407 = vcvt.s32.f32 %v2279
      %v2408 = vcvt.s32.f32 %v2280
      %v2409 = vcvt.s32.f32 %v2281
      %v2410 = vcvt.s32.f32 %v2282
      %v2411 = vcvt.s32.f32 %v2283
      %v2412 = vcvt.s32.f32 %v2284
      %v2413 = vcvt.s32.f32 %v2285
      %v2414 = vcvt.s32.f32 %v2286
      %v2415 = vcvt.s32.f32 %v2287
      %v2416 = vcvt.s32.f32 %v2288
      %v2417 = vcvt.s32.f32 %v2289
      %v2418 = vcvt.s32.f32 %v2290
      %v2419 = vcvt.s32.f32 %v2291
      %v2420 = vcvt.s32.f32 %v2292
      %v2421 = vcvt.s32.f32 %v2293
      %v2422 = vcvt.s32.f32 %v2294
      %v2423 = vcvt.s32.f32 %v2295
      %v2424 = vcvt.s32.f32 %v2296
      %v2425 = vcvt.s32.f32 %v2297
      %v2426 = vcvt.s32.f32 %v2298
      %v2427 = vcvt.s32.f32 %v2299
      %v2428 = vcvt.s32.f32 %v2300
      %v2429 = vcvt.s32.f32 %v2301
      %v2430 = vcvt.s32.f32 %v2302
      %v2431 = vcvt.s32.f32 %v2303
      %v2432 = vcvt.s32.f32 %v2304
      %v2433 = vcvt.s32.f32 %v2305
      %v2434 = vcvt.s32.f32 %v2306
      %v2435 = vcvt.s32.f32 %v2307
      %v2436 = vcvt.s32.f32 %v2308
      %v2437 = vcvt.s32.f32 %v2309
      %v2438 = vcvt.s32.f32 %v2310
      %v2439 = vcvt.s32.f32 %v2311
      %v2440 = vcvt.s32.f32 %v2312
      %v2441 = vcvt.s32.f32 %v2313
      %v2442 = vcvt.s32.f32 %v2314
      %v2443 = vcvt.s32.f32 %v2315
      %v2444 = vcvt.s32.f32 %v2316
      %v2445 = vcvt.s32.f32 %v2317
      %v2446 = vcvt.s32.f32 %v2318
      %v2447 = vcvt.s32.f32 %v2319
      %v2448 = vcvt.s32.f32 %v2320
      %v2449 = vcvt.s32.f32 %v2321
      %v2450 = vcvt.s32.f32 %v2322
      %v2451 = vcvt.s32.f32 %v2323
      %v2452 = vcvt.s32.f32 %v2324
      %v2453 = vcvt.s32.f32 %v2325
      %v2454 = vcvt.s32.f32 %v2326
      %v2455 = vcvt.s32.f32 %v2327
      %v2456 = vcvt.s32.f32 %v2328
      %v2457 = vcvt.s32.f32 %v2329
      %v2458 = vcvt.s32.f32 %v2330
      %v2459 = vcvt.s32.f32 %v2331
      %v2460 = vcvt.s32.f32 %v2332
      %v2461 = vcvt.s32.f32 %v2333
      %v2462 = vcvt.s32.f32 %v2334
      %v2463 = vcvt.s32.f32 %v2335
      %v2464 = vcvt.s32.f32 %v2336
      %v2465 = vcvt.s32.f32 %v2337
      %v2466 = vcvt.s32.f32 %v2338
      %v2467 = vcvt.s32.f32 %v2339
      %v2468 = vcvt.s32.f32 %v2340
      %v2469 = vcvt.s32.f32 %v2341
      %v2470 = vcvt.s32.f32 %v2342
      %v2471 = vcvt.s32.f32 %v2343
      %v2472 = vcvt.s32.f32 %v2344
      %v2473 = vcvt.s32.f32 %v2345
      %v2474 = vcvt.s32.f32 %v2346
      %v2475 = vcvt.s32.f32 %v2347
      %v2476 = vcvt.s32.f32 %v2348
      %v2477 = vcvt.s32.f32 %v2349
      %v2478 = vld [vmem:[%s2] sm:$0xff]
      %v2479 = vld [vmem:[%s2 + $0x8] sm:$0xff]
      %v2480 = vld [vmem:[%s2 + $0x10] sm:$0xff]
      %v2481 = vld [vmem:[%s2 + $0x18] sm:$0xff]
      %v2482 = vld [vmem:[%s2 + $0x20] sm:$0xff]
      %v2483 = vld [vmem:[%s2 + $0x28] sm:$0xff]
      %v2484 = vld [vmem:[%s2 + $0x30] sm:$0xff]
      %v2485 = vld [vmem:[%s2 + $0x38] sm:$0xff]
      %v2486 = vld [vmem:[%s2 + $0x40] sm:$0xff]
      %v2487 = vld [vmem:[%s2 + $0x48] sm:$0xff]
      %v2488 = vld [vmem:[%s2 + $0x50] sm:$0xff]
      %v2489 = vld [vmem:[%s2 + $0x58] sm:$0xff]
      %v2490 = vld [vmem:[%s2 + $0x60] sm:$0xff]
      %v2491 = vld [vmem:[%s2 + $0x68] sm:$0xff]
      %v2492 = vld [vmem:[%s2 + $0x70] sm:$0xff]
      %v2493 = vld [vmem:[%s2 + $0x78] sm:$0xff]
      %v2494 = vld [vmem:[%s2 + $0x80] sm:$0xff]
      %v2495 = vld [vmem:[%s2 + $0x88] sm:$0xff]
      %v2496 = vld [vmem:[%s2 + $0x90] sm:$0xff]
      %v2497 = vld [vmem:[%s2 + $0x98] sm:$0xff]
      %v2498 = vld [vmem:[%s2 + $0xa0] sm:$0xff]
      %v2499 = vld [vmem:[%s2 + $0xa8] sm:$0xff]
      %v2500 = vld [vmem:[%s2 + $0xb0] sm:$0xff]
      %v2501 = vld [vmem:[%s2 + $0xb8] sm:$0xff]
      %v2502 = vld [vmem:[%s2 + $0xc0] sm:$0xff]
      %v2503 = vld [vmem:[%s2 + $0xc8] sm:$0xff]
      %v2504 = vld [vmem:[%s2 + $0xd0] sm:$0xff]
      %v2505 = vld [vmem:[%s2 + $0xd8] sm:$0xff]
      %v2506 = vld [vmem:[%s2 + $0xe0] sm:$0xff]
      %v2507 = vld [vmem:[%s2 + $0xe8] sm:$0xff]
      %v2508 = vld [vmem:[%s2 + $0xf0] sm:$0xff]
      %v2509 = vld [vmem:[%s2 + $0xf8] sm:$0xff]
      %v2510 = vld [vmem:[%s2 + $0x100] sm:$0xff]
      %v2511 = vld [vmem:[%s2 + $0x108] sm:$0xff]
      %v2512 = vld [vmem:[%s2 + $0x110] sm:$0xff]
      %v2513 = vld [vmem:[%s2 + $0x118] sm:$0xff]
      %v2514 = vld [vmem:[%s2 + $0x120] sm:$0xff]
      %v2515 = vld [vmem:[%s2 + $0x128] sm:$0xff]
      %v2516 = vld [vmem:[%s2 + $0x130] sm:$0xff]
      %v2517 = vld [vmem:[%s2 + $0x138] sm:$0xff]
      %v2518 = vld [vmem:[%s2 + $0x140] sm:$0xff]
      %v2519 = vld [vmem:[%s2 + $0x148] sm:$0xff]
      %v2520 = vld [vmem:[%s2 + $0x150] sm:$0xff]
      %v2521 = vld [vmem:[%s2 + $0x158] sm:$0xff]
      %v2522 = vld [vmem:[%s2 + $0x160] sm:$0xff]
      %v2523 = vld [vmem:[%s2 + $0x168] sm:$0xff]
      %v2524 = vld [vmem:[%s2 + $0x170] sm:$0xff]
      %v2525 = vld [vmem:[%s2 + $0x178] sm:$0xff]
      %v2526 = vld [vmem:[%s2 + $0x180] sm:$0xff]
      %v2527 = vld [vmem:[%s2 + $0x188] sm:$0xff]
      %v2528 = vld [vmem:[%s2 + $0x190] sm:$0xff]
      %v2529 = vld [vmem:[%s2 + $0x198] sm:$0xff]
      %v2530 = vld [vmem:[%s2 + $0x1a0] sm:$0xff]
      %v2531 = vld [vmem:[%s2 + $0x1a8] sm:$0xff]
      %v2532 = vld [vmem:[%s2 + $0x1b0] sm:$0xff]
      %v2533 = vld [vmem:[%s2 + $0x1b8] sm:$0xff]
      %v2534 = vld [vmem:[%s2 + $0x1c0] sm:$0xff]
      %v2535 = vld [vmem:[%s2 + $0x1c8] sm:$0xff]
      %v2536 = vld [vmem:[%s2 + $0x1d0] sm:$0xff]
      %v2537 = vld [vmem:[%s2 + $0x1d8] sm:$0xff]
      %v2538 = vld [vmem:[%s2 + $0x1e0] sm:$0xff]
      %v2539 = vld [vmem:[%s2 + $0x1e8] sm:$0xff]
      %v2540 = vld [vmem:[%s2 + $0x1f0] sm:$0xff]
      %v2541 = vld [vmem:[%s2 + $0x1f8] sm:$0xff]
      %2542 = vmatpush.msra.mxu0 %v2493
      %2543 = vmatpush.msra.mxu0 %v2492
      %2544 = vmatpush.msra.mxu0 %v2491
      %2545 = vmatpush.msra.mxu0 %v2490
      %2546 = vmatpush.msra.mxu0 %v2489
      %2547 = vmatpush.msra.mxu0 %v2488
      %2548 = vmatpush.msra.mxu0 %v2487
      %2549 = vmatpush.msra.mxu0 %v2486
      %2550 = vmatpush.msra.mxu0 %v2485
      %2551 = vmatpush.msra.mxu0 %v2484
      %2552 = vmatpush.msra.mxu0 %v2483
      %2553 = vmatpush.msra.mxu0 %v2482
      %2554 = vmatpush.msra.mxu0 %v2481
      %2555 = vmatpush.msra.mxu0 %v2480
      %2556 = vmatpush.msra.mxu0 %v2479
      %2557 = vmatpush.msra.mxu0 %v2478
      %2558 = vmatmul.f32.gmra.mxu0 %v2350
      %v2559 = vpop.f32.mrf.mxu0
      %v2560 = vadd.f32 0.0, %v2559
      %2561 = vmatmul.f32.gmra.mxu0 %v2354
      %v2562 = vpop.f32.mrf.mxu0
      %v2563 = vadd.f32 0.0, %v2562
      %2564 = vmatmul.f32.gmra.mxu0 %v2358
      %v2565 = vpop.f32.mrf.mxu0
      %v2566 = vadd.f32 0.0, %v2565
      %2567 = vmatmul.f32.gmra.mxu0 %v2362
      %v2568 = vpop.f32.mrf.mxu0
      %v2569 = vadd.f32 0.0, %v2568
      %2570 = vmatmul.f32.gmra.mxu0 %v2366
      %v2571 = vpop.f32.mrf.mxu0
      %v2572 = vadd.f32 0.0, %v2571
      %2573 = vmatmul.f32.gmra.mxu0 %v2370
      %v2574 = vpop.f32.mrf.mxu0
      %v2575 = vadd.f32 0.0, %v2574
      %2576 = vmatmul.f32.gmra.mxu0 %v2374
      %v2577 = vpop.f32.mrf.mxu0
      %v2578 = vadd.f32 0.0, %v2577
      %2579 = vmatmul.f32.gmra.mxu0 %v2378
      %v2580 = vpop.f32.mrf.mxu0
      %v2581 = vadd.f32 0.0, %v2580
      %2582 = vmatmul.f32.gmra.mxu0 %v2382
      %v2583 = vpop.f32.mrf.mxu0
      %v2584 = vadd.f32 0.0, %v2583
      %2585 = vmatmul.f32.gmra.mxu0 %v2386
      %v2586 = vpop.f32.mrf.mxu0
      %v2587 = vadd.f32 0.0, %v2586
      %2588 = vmatmul.f32.gmra.mxu0 %v2390
      %v2589 = vpop.f32.mrf.mxu0
      %v2590 = vadd.f32 0.0, %v2589
      %2591 = vmatmul.f32.gmra.mxu0 %v2394
      %v2592 = vpop.f32.mrf.mxu0
      %v2593 = vadd.f32 0.0, %v2592
      %2594 = vmatmul.f32.gmra.mxu0 %v2398
      %v2595 = vpop.f32.mrf.mxu0
      %v2596 = vadd.f32 0.0, %v2595
      %2597 = vmatmul.f32.gmra.mxu0 %v2402
      %v2598 = vpop.f32.mrf.mxu0
      %v2599 = vadd.f32 0.0, %v2598
      %2600 = vmatmul.f32.gmra.mxu0 %v2406
      %v2601 = vpop.f32.mrf.mxu0
      %v2602 = vadd.f32 0.0, %v2601
      %2603 = vmatmul.f32.gmra.mxu0 %v2410
      %v2604 = vpop.f32.mrf.mxu0
      %v2605 = vadd.f32 0.0, %v2604
      %2606 = vmatmul.f32.gmra.mxu0 %v2414
      %v2607 = vpop.f32.mrf.mxu0
      %v2608 = vadd.f32 0.0, %v2607
      %2609 = vmatmul.f32.gmra.mxu0 %v2418
      %v2610 = vpop.f32.mrf.mxu0
      %v2611 = vadd.f32 0.0, %v2610
      %2612 = vmatmul.f32.gmra.mxu0 %v2422
      %v2613 = vpop.f32.mrf.mxu0
      %v2614 = vadd.f32 0.0, %v2613
      %2615 = vmatmul.f32.gmra.mxu0 %v2426
      %v2616 = vpop.f32.mrf.mxu0
      %v2617 = vadd.f32 0.0, %v2616
      %2618 = vmatmul.f32.gmra.mxu0 %v2430
      %v2619 = vpop.f32.mrf.mxu0
      %v2620 = vadd.f32 0.0, %v2619
      %2621 = vmatmul.f32.gmra.mxu0 %v2434
      %v2622 = vpop.f32.mrf.mxu0
      %v2623 = vadd.f32 0.0, %v2622
      %2624 = vmatmul.f32.gmra.mxu0 %v2438
      %v2625 = vpop.f32.mrf.mxu0
      %v2626 = vadd.f32 0.0, %v2625
      %2627 = vmatmul.f32.gmra.mxu0 %v2442
      %v2628 = vpop.f32.mrf.mxu0
      %v2629 = vadd.f32 0.0, %v2628
      %2630 = vmatmul.f32.gmra.mxu0 %v2446
      %v2631 = vpop.f32.mrf.mxu0
      %v2632 = vadd.f32 0.0, %v2631
      %2633 = vmatmul.f32.gmra.mxu0 %v2450
      %v2634 = vpop.f32.mrf.mxu0
      %v2635 = vadd.f32 0.0, %v2634
      %2636 = vmatmul.f32.gmra.mxu0 %v2454
      %v2637 = vpop.f32.mrf.mxu0
      %v2638 = vadd.f32 0.0, %v2637
      %2639 = vmatmul.f32.gmra.mxu0 %v2458
      %v2640 = vpop.f32.mrf.mxu0
      %v2641 = vadd.f32 0.0, %v2640
      %2642 = vmatmul.f32.gmra.mxu0 %v2462
      %v2643 = vpop.f32.mrf.mxu0
      %v2644 = vadd.f32 0.0, %v2643
      %2645 = vmatmul.f32.gmra.mxu0 %v2466
      %v2646 = vpop.f32.mrf.mxu0
      %v2647 = vadd.f32 0.0, %v2646
      %2648 = vmatmul.f32.gmra.mxu0 %v2470
      %v2649 = vpop.f32.mrf.mxu0
      %v2650 = vadd.f32 0.0, %v2649
      %2651 = vmatmul.f32.gmra.mxu0 %v2474
      %v2652 = vpop.f32.mrf.mxu0
      %v2653 = vadd.f32 0.0, %v2652
      %2654 = vdwg.mxu0
      %2655 = vmatpush.msra.mxu0 %v2509
      %2656 = vmatpush.msra.mxu0 %v2508
      %2657 = vmatpush.msra.mxu0 %v2507
      %2658 = vmatpush.msra.mxu0 %v2506
      %2659 = vmatpush.msra.mxu0 %v2505
      %2660 = vmatpush.msra.mxu0 %v2504
      %2661 = vmatpush.msra.mxu0 %v2503
      %2662 = vmatpush.msra.mxu0 %v2502
      %2663 = vmatpush.msra.mxu0 %v2501
      %2664 = vmatpush.msra.mxu0 %v2500
      %2665 = vmatpush.msra.mxu0 %v2499
      %2666 = vmatpush.msra.mxu0 %v2498
      %2667 = vmatpush.msra.mxu0 %v2497
      %2668 = vmatpush.msra.mxu0 %v2496
      %2669 = vmatpush.msra.mxu0 %v2495
      %2670 = vmatpush.msra.mxu0 %v2494
      %2671 = vmatmul.f32.gmra.mxu0 %v2351
      %v2672 = vpop.f32.mrf.mxu0
      %v2673 = vadd.f32 %v2560, %v2672
      %2674 = vmatmul.f32.gmra.mxu0 %v2355
      %v2675 = vpop.f32.mrf.mxu0
      %v2676 = vadd.f32 %v2563, %v2675
      %2677 = vmatmul.f32.gmra.mxu0 %v2359
      %v2678 = vpop.f32.mrf.mxu0
      %v2679 = vadd.f32 %v2566, %v2678
      %2680 = vmatmul.f32.gmra.mxu0 %v2363
      %v2681 = vpop.f32.mrf.mxu0
      %v2682 = vadd.f32 %v2569, %v2681
      %2683 = vmatmul.f32.gmra.mxu0 %v2367
      %v2684 = vpop.f32.mrf.mxu0
      %v2685 = vadd.f32 %v2572, %v2684
      %2686 = vmatmul.f32.gmra.mxu0 %v2371
      %v2687 = vpop.f32.mrf.mxu0
      %v2688 = vadd.f32 %v2575, %v2687
      %2689 = vmatmul.f32.gmra.mxu0 %v2375
      %v2690 = vpop.f32.mrf.mxu0
      %v2691 = vadd.f32 %v2578, %v2690
      %2692 = vmatmul.f32.gmra.mxu0 %v2379
      %v2693 = vpop.f32.mrf.mxu0
      %v2694 = vadd.f32 %v2581, %v2693
      %2695 = vmatmul.f32.gmra.mxu0 %v2383
      %v2696 = vpop.f32.mrf.mxu0
      %v2697 = vadd.f32 %v2584, %v2696
      %2698 = vmatmul.f32.gmra.mxu0 %v2387
      %v2699 = vpop.f32.mrf.mxu0
      %v2700 = vadd.f32 %v2587, %v2699
      %2701 = vmatmul.f32.gmra.mxu0 %v2391
      %v2702 = vpop.f32.mrf.mxu0
      %v2703 = vadd.f32 %v2590, %v2702
      %2704 = vmatmul.f32.gmra.mxu0 %v2395
      %v2705 = vpop.f32.mrf.mxu0
      %v2706 = vadd.f32 %v2593, %v2705
      %2707 = vmatmul.f32.gmra.mxu0 %v2399
      %v2708 = vpop.f32.mrf.mxu0
      %v2709 = vadd.f32 %v2596, %v2708
      %2710 = vmatmul.f32.gmra.mxu0 %v2403
      %v2711 = vpop.f32.mrf.mxu0
      %v2712 = vadd.f32 %v2599, %v2711
      %2713 = vmatmul.f32.gmra.mxu0 %v2407
      %v2714 = vpop.f32.mrf.mxu0
      %v2715 = vadd.f32 %v2602, %v2714
      %2716 = vmatmul.f32.gmra.mxu0 %v2411
      %v2717 = vpop.f32.mrf.mxu0
      %v2718 = vadd.f32 %v2605, %v2717
      %2719 = vmatmul.f32.gmra.mxu0 %v2415
      %v2720 = vpop.f32.mrf.mxu0
      %v2721 = vadd.f32 %v2608, %v2720
      %2722 = vmatmul.f32.gmra.mxu0 %v2419
      %v2723 = vpop.f32.mrf.mxu0
      %v2724 = vadd.f32 %v2611, %v2723
      %2725 = vmatmul.f32.gmra.mxu0 %v2423
      %v2726 = vpop.f32.mrf.mxu0
      %v2727 = vadd.f32 %v2614, %v2726
      %2728 = vmatmul.f32.gmra.mxu0 %v2427
      %v2729 = vpop.f32.mrf.mxu0
      %v2730 = vadd.f32 %v2617, %v2729
      %2731 = vmatmul.f32.gmra.mxu0 %v2431
      %v2732 = vpop.f32.mrf.mxu0
      %v2733 = vadd.f32 %v2620, %v2732
      %2734 = vmatmul.f32.gmra.mxu0 %v2435
      %v2735 = vpop.f32.mrf.mxu0
      %v2736 = vadd.f32 %v2623, %v2735
      %2737 = vmatmul.f32.gmra.mxu0 %v2439
      %v2738 = vpop.f32.mrf.mxu0
      %v2739 = vadd.f32 %v2626, %v2738
      %2740 = vmatmul.f32.gmra.mxu0 %v2443
      %v2741 = vpop.f32.mrf.mxu0
      %v2742 = vadd.f32 %v2629, %v2741
      %2743 = vmatmul.f32.gmra.mxu0 %v2447
      %v2744 = vpop.f32.mrf.mxu0
      %v2745 = vadd.f32 %v2632, %v2744
      %2746 = vmatmul.f32.gmra.mxu0 %v2451
      %v2747 = vpop.f32.mrf.mxu0
      %v2748 = vadd.f32 %v2635, %v2747
      %2749 = vmatmul.f32.gmra.mxu0 %v2455
      %v2750 = vpop.f32.mrf.mxu0
      %v2751 = vadd.f32 %v2638, %v2750
      %2752 = vmatmul.f32.gmra.mxu0 %v2459
      %v2753 = vpop.f32.mrf.mxu0
      %v2754 = vadd.f32 %v2641, %v2753
      %2755 = vmatmul.f32.gmra.mxu0 %v2463
      %v2756 = vpop.f32.mrf.mxu0
      %v2757 = vadd.f32 %v2644, %v2756
      %2758 = vmatmul.f32.gmra.mxu0 %v2467
      %v2759 = vpop.f32.mrf.mxu0
      %v2760 = vadd.f32 %v2647, %v2759
      %2761 = vmatmul.f32.gmra.mxu0 %v2471
      %v2762 = vpop.f32.mrf.mxu0
      %v2763 = vadd.f32 %v2650, %v2762
      %2764 = vmatmul.f32.gmra.mxu0 %v2475
      %v2765 = vpop.f32.mrf.mxu0
      %v2766 = vadd.f32 %v2653, %v2765
      %2767 = vdwg.mxu0
      %2768 = vmatpush.msra.mxu0 %v2525
      %2769 = vmatpush.msra.mxu0 %v2524
      %2770 = vmatpush.msra.mxu0 %v2523
      %2771 = vmatpush.msra.mxu0 %v2522
      %2772 = vmatpush.msra.mxu0 %v2521
      %2773 = vmatpush.msra.mxu0 %v2520
      %2774 = vmatpush.msra.mxu0 %v2519
      %2775 = vmatpush.msra.mxu0 %v2518
      %2776 = vmatpush.msra.mxu0 %v2517
      %2777 = vmatpush.msra.mxu0 %v2516
      %2778 = vmatpush.msra.mxu0 %v2515
      %2779 = vmatpush.msra.mxu0 %v2514
      %2780 = vmatpush.msra.mxu0 %v2513
      %2781 = vmatpush.msra.mxu0 %v2512
      %2782 = vmatpush.msra.mxu0 %v2511
      %2783 = vmatpush.msra.mxu0 %v2510
      %2784 = vmatmul.f32.gmra.mxu0 %v2352
      %v2785 = vpop.f32.mrf.mxu0
      %v2786 = vadd.f32 %v2673, %v2785
      %2787 = vmatmul.f32.gmra.mxu0 %v2356
      %v2788 = vpop.f32.mrf.mxu0
      %v2789 = vadd.f32 %v2676, %v2788
      %2790 = vmatmul.f32.gmra.mxu0 %v2360
      %v2791 = vpop.f32.mrf.mxu0
      %v2792 = vadd.f32 %v2679, %v2791
      %2793 = vmatmul.f32.gmra.mxu0 %v2364
      %v2794 = vpop.f32.mrf.mxu0
      %v2795 = vadd.f32 %v2682, %v2794
      %2796 = vmatmul.f32.gmra.mxu0 %v2368
      %v2797 = vpop.f32.mrf.mxu0
      %v2798 = vadd.f32 %v2685, %v2797
      %2799 = vmatmul.f32.gmra.mxu0 %v2372
      %v2800 = vpop.f32.mrf.mxu0
      %v2801 = vadd.f32 %v2688, %v2800
      %2802 = vmatmul.f32.gmra.mxu0 %v2376
      %v2803 = vpop.f32.mrf.mxu0
      %v2804 = vadd.f32 %v2691, %v2803
      %2805 = vmatmul.f32.gmra.mxu0 %v2380
      %v2806 = vpop.f32.mrf.mxu0
      %v2807 = vadd.f32 %v2694, %v2806
      %2808 = vmatmul.f32.gmra.mxu0 %v2384
      %v2809 = vpop.f32.mrf.mxu0
      %v2810 = vadd.f32 %v2697, %v2809
      %2811 = vmatmul.f32.gmra.mxu0 %v2388
      %v2812 = vpop.f32.mrf.mxu0
      %v2813 = vadd.f32 %v2700, %v2812
      %2814 = vmatmul.f32.gmra.mxu0 %v2392
      %v2815 = vpop.f32.mrf.mxu0
      %v2816 = vadd.f32 %v2703, %v2815
      %2817 = vmatmul.f32.gmra.mxu0 %v2396
      %v2818 = vpop.f32.mrf.mxu0
      %v2819 = vadd.f32 %v2706, %v2818
      %2820 = vmatmul.f32.gmra.mxu0 %v2400
      %v2821 = vpop.f32.mrf.mxu0
      %v2822 = vadd.f32 %v2709, %v2821
      %2823 = vmatmul.f32.gmra.mxu0 %v2404
      %v2824 = vpop.f32.mrf.mxu0
      %v2825 = vadd.f32 %v2712, %v2824
      %2826 = vmatmul.f32.gmra.mxu0 %v2408
      %v2827 = vpop.f32.mrf.mxu0
      %v2828 = vadd.f32 %v2715, %v2827
      %2829 = vmatmul.f32.gmra.mxu0 %v2412
      %v2830 = vpop.f32.mrf.mxu0
      %v2831 = vadd.f32 %v2718, %v2830
      %2832 = vmatmul.f32.gmra.mxu0 %v2416
      %v2833 = vpop.f32.mrf.mxu0
      %v2834 = vadd.f32 %v2721, %v2833
      %2835 = vmatmul.f32.gmra.mxu0 %v2420
      %v2836 = vpop.f32.mrf.mxu0
      %v2837 = vadd.f32 %v2724, %v2836
      %2838 = vmatmul.f32.gmra.mxu0 %v2424
      %v2839 = vpop.f32.mrf.mxu0
      %v2840 = vadd.f32 %v2727, %v2839
      %2841 = vmatmul.f32.gmra.mxu0 %v2428
      %v2842 = vpop.f32.mrf.mxu0
      %v2843 = vadd.f32 %v2730, %v2842
      %2844 = vmatmul.f32.gmra.mxu0 %v2432
      %v2845 = vpop.f32.mrf.mxu0
      %v2846 = vadd.f32 %v2733, %v2845
      %2847 = vmatmul.f32.gmra.mxu0 %v2436
      %v2848 = vpop.f32.mrf.mxu0
      %v2849 = vadd.f32 %v2736, %v2848
      %2850 = vmatmul.f32.gmra.mxu0 %v2440
      %v2851 = vpop.f32.mrf.mxu0
      %v2852 = vadd.f32 %v2739, %v2851
      %2853 = vmatmul.f32.gmra.mxu0 %v2444
      %v2854 = vpop.f32.mrf.mxu0
      %v2855 = vadd.f32 %v2742, %v2854
      %2856 = vmatmul.f32.gmra.mxu0 %v2448
      %v2857 = vpop.f32.mrf.mxu0
      %v2858 = vadd.f32 %v2745, %v2857
      %2859 = vmatmul.f32.gmra.mxu0 %v2452
      %v2860 = vpop.f32.mrf.mxu0
      %v2861 = vadd.f32 %v2748, %v2860
      %2862 = vmatmul.f32.gmra.mxu0 %v2456
      %v2863 = vpop.f32.mrf.mxu0
      %v2864 = vadd.f32 %v2751, %v2863
      %2865 = vmatmul.f32.gmra.mxu0 %v2460
      %v2866 = vpop.f32.mrf.mxu0
      %v2867 = vadd.f32 %v2754, %v2866
      %2868 = vmatmul.f32.gmra.mxu0 %v2464
      %v2869 = vpop.f32.mrf.mxu0
      %v2870 = vadd.f32 %v2757, %v2869
      %2871 = vmatmul.f32.gmra.mxu0 %v2468
      %v2872 = vpop.f32.mrf.mxu0
      %v2873 = vadd.f32 %v2760, %v2872
      %2874 = vmatmul.f32.gmra.mxu0 %v2472
      %v2875 = vpop.f32.mrf.mxu0
      %v2876 = vadd.f32 %v2763, %v2875
      %2877 = vmatmul.f32.gmra.mxu0 %v2476
      %v2878 = vpop.f32.mrf.mxu0
      %v2879 = vadd.f32 %v2766, %v2878
      %2880 = vdwg.mxu0
      %2881 = vmatpush.msra.mxu0 %v2541
      %2882 = vmatpush.msra.mxu0 %v2540
      %2883 = vmatpush.msra.mxu0 %v2539
      %2884 = vmatpush.msra.mxu0 %v2538
      %2885 = vmatpush.msra.mxu0 %v2537
      %2886 = vmatpush.msra.mxu0 %v2536
      %2887 = vmatpush.msra.mxu0 %v2535
      %2888 = vmatpush.msra.mxu0 %v2534
      %2889 = vmatpush.msra.mxu0 %v2533
      %2890 = vmatpush.msra.mxu0 %v2532
      %2891 = vmatpush.msra.mxu0 %v2531
      %2892 = vmatpush.msra.mxu0 %v2530
      %2893 = vmatpush.msra.mxu0 %v2529
      %2894 = vmatpush.msra.mxu0 %v2528
      %2895 = vmatpush.msra.mxu0 %v2527
      %2896 = vmatpush.msra.mxu0 %v2526
      %2897 = vmatmul.f32.gmra.mxu0 %v2353
      %v2898 = vpop.f32.mrf.mxu0
      %v2899 = vadd.f32 %v2786, %v2898
      %2900 = vmatmul.f32.gmra.mxu0 %v2357
      %v2901 = vpop.f32.mrf.mxu0
      %v2902 = vadd.f32 %v2789, %v2901
      %2903 = vmatmul.f32.gmra.mxu0 %v2361
      %v2904 = vpop.f32.mrf.mxu0
      %v2905 = vadd.f32 %v2792, %v2904
      %2906 = vmatmul.f32.gmra.mxu0 %v2365
      %v2907 = vpop.f32.mrf.mxu0
      %v2908 = vadd.f32 %v2795, %v2907
      %2909 = vmatmul.f32.gmra.mxu0 %v2369
      %v2910 = vpop.f32.mrf.mxu0
      %v2911 = vadd.f32 %v2798, %v2910
      %2912 = vmatmul.f32.gmra.mxu0 %v2373
      %v2913 = vpop.f32.mrf.mxu0
      %v2914 = vadd.f32 %v2801, %v2913
      %2915 = vmatmul.f32.gmra.mxu0 %v2377
      %v2916 = vpop.f32.mrf.mxu0
      %v2917 = vadd.f32 %v2804, %v2916
      %2918 = vmatmul.f32.gmra.mxu0 %v2381
      %v2919 = vpop.f32.mrf.mxu0
      %v2920 = vadd.f32 %v2807, %v2919
      %2921 = vmatmul.f32.gmra.mxu0 %v2385
      %v2922 = vpop.f32.mrf.mxu0
      %v2923 = vadd.f32 %v2810, %v2922
      %2924 = vmatmul.f32.gmra.mxu0 %v2389
      %v2925 = vpop.f32.mrf.mxu0
      %v2926 = vadd.f32 %v2813, %v2925
      %2927 = vmatmul.f32.gmra.mxu0 %v2393
      %v2928 = vpop.f32.mrf.mxu0
      %v2929 = vadd.f32 %v2816, %v2928
      %2930 = vmatmul.f32.gmra.mxu0 %v2397
      %v2931 = vpop.f32.mrf.mxu0
      %v2932 = vadd.f32 %v2819, %v2931
      %2933 = vmatmul.f32.gmra.mxu0 %v2401
      %v2934 = vpop.f32.mrf.mxu0
      %v2935 = vadd.f32 %v2822, %v2934
      %2936 = vmatmul.f32.gmra.mxu0 %v2405
      %v2937 = vpop.f32.mrf.mxu0
      %v2938 = vadd.f32 %v2825, %v2937
      %2939 = vmatmul.f32.gmra.mxu0 %v2409
      %v2940 = vpop.f32.mrf.mxu0
      %v2941 = vadd.f32 %v2828, %v2940
      %2942 = vmatmul.f32.gmra.mxu0 %v2413
      %v2943 = vpop.f32.mrf.mxu0
      %v2944 = vadd.f32 %v2831, %v2943
      %2945 = vmatmul.f32.gmra.mxu0 %v2417
      %v2946 = vpop.f32.mrf.mxu0
      %v2947 = vadd.f32 %v2834, %v2946
      %2948 = vmatmul.f32.gmra.mxu0 %v2421
      %v2949 = vpop.f32.mrf.mxu0
      %v2950 = vadd.f32 %v2837, %v2949
      %2951 = vmatmul.f32.gmra.mxu0 %v2425
      %v2952 = vpop.f32.mrf.mxu0
      %v2953 = vadd.f32 %v2840, %v2952
      %2954 = vmatmul.f32.gmra.mxu0 %v2429
      %v2955 = vpop.f32.mrf.mxu0
      %v2956 = vadd.f32 %v2843, %v2955
      %2957 = vmatmul.f32.gmra.mxu0 %v2433
      %v2958 = vpop.f32.mrf.mxu0
      %v2959 = vadd.f32 %v2846, %v2958
      %2960 = vmatmul.f32.gmra.mxu0 %v2437
      %v2961 = vpop.f32.mrf.mxu0
      %v2962 = vadd.f32 %v2849, %v2961
      %2963 = vmatmul.f32.gmra.mxu0 %v2441
      %v2964 = vpop.f32.mrf.mxu0
      %v2965 = vadd.f32 %v2852, %v2964
      %2966 = vmatmul.f32.gmra.mxu0 %v2445
      %v2967 = vpop.f32.mrf.mxu0
      %v2968 = vadd.f32 %v2855, %v2967
      %2969 = vmatmul.f32.gmra.mxu0 %v2449
      %v2970 = vpop.f32.mrf.mxu0
      %v2971 = vadd.f32 %v2858, %v2970
      %2972 = vmatmul.f32.gmra.mxu0 %v2453
      %v2973 = vpop.f32.mrf.mxu0
      %v2974 = vadd.f32 %v2861, %v2973
      %2975 = vmatmul.f32.gmra.mxu0 %v2457
      %v2976 = vpop.f32.mrf.mxu0
      %v2977 = vadd.f32 %v2864, %v2976
      %2978 = vmatmul.f32.gmra.mxu0 %v2461
      %v2979 = vpop.f32.mrf.mxu0
      %v2980 = vadd.f32 %v2867, %v2979
      %2981 = vmatmul.f32.gmra.mxu0 %v2465
      %v2982 = vpop.f32.mrf.mxu0
      %v2983 = vadd.f32 %v2870, %v2982
      %2984 = vmatmul.f32.gmra.mxu0 %v2469
      %v2985 = vpop.f32.mrf.mxu0
      %v2986 = vadd.f32 %v2873, %v2985
      %2987 = vmatmul.f32.gmra.mxu0 %v2473
      %v2988 = vpop.f32.mrf.mxu0
      %v2989 = vadd.f32 %v2876, %v2988
      %2990 = vmatmul.f32.gmra.mxu0 %v2477
      %v2991 = vpop.f32.mrf.mxu0
      %v2992 = vadd.f32 %v2879, %v2991
      %2993 = vdwg.mxu0
      %v2994 = vsub.f32 %v2899, %v282
      %v2995 = vsub.f32 %v2902, %v283
      %v2996 = vsub.f32 %v2905, %v284
      %v2997 = vsub.f32 %v2908, %v285
      %v2998 = vsub.f32 %v2911, %v286
      %v2999 = vsub.f32 %v2914, %v287
      %v3000 = vsub.f32 %v2917, %v288
      %v3001 = vsub.f32 %v2920, %v289
      %v3002 = vsub.f32 %v2923, %v290
      %v3003 = vsub.f32 %v2926, %v291
      %v3004 = vsub.f32 %v2929, %v292
      %v3005 = vsub.f32 %v2932, %v293
      %v3006 = vsub.f32 %v2935, %v294
      %v3007 = vsub.f32 %v2938, %v295
      %v3008 = vsub.f32 %v2941, %v296
      %v3009 = vsub.f32 %v2944, %v297
      %v3010 = vsub.f32 %v2947, %v298
      %v3011 = vsub.f32 %v2950, %v299
      %v3012 = vsub.f32 %v2953, %v300
      %v3013 = vsub.f32 %v2956, %v301
      %v3014 = vsub.f32 %v2959, %v302
      %v3015 = vsub.f32 %v2962, %v303
      %v3016 = vsub.f32 %v2965, %v304
      %v3017 = vsub.f32 %v2968, %v305
      %v3018 = vsub.f32 %v2971, %v306
      %v3019 = vsub.f32 %v2974, %v307
      %v3020 = vsub.f32 %v2977, %v308
      %v3021 = vsub.f32 %v2980, %v309
      %v3022 = vsub.f32 %v2983, %v310
      %v3023 = vsub.f32 %v2986, %v311
      %v3024 = vsub.f32 %v2989, %v312
      %v3025 = vsub.f32 %v2992, %v313
      %v3026 = vmul.f32 %v2994, %v2994
      %v3027 = vmul.f32 %v2995, %v2995
      %v3028 = vmul.f32 %v2996, %v2996
      %v3029 = vmul.f32 %v2997, %v2997
      %v3030 = vmul.f32 %v2998, %v2998
      %v3031 = vmul.f32 %v2999, %v2999
      %v3032 = vmul.f32 %v3000, %v3000
      %v3033 = vmul.f32 %v3001, %v3001
      %v3034 = vmul.f32 %v3002, %v3002
      %v3035 = vmul.f32 %v3003, %v3003
      %v3036 = vmul.f32 %v3004, %v3004
      %v3037 = vmul.f32 %v3005, %v3005
      %v3038 = vmul.f32 %v3006, %v3006
      %v3039 = vmul.f32 %v3007, %v3007
      %v3040 = vmul.f32 %v3008, %v3008
      %v3041 = vmul.f32 %v3009, %v3009
      %v3042 = vmul.f32 %v3010, %v3010
      %v3043 = vmul.f32 %v3011, %v3011
      %v3044 = vmul.f32 %v3012, %v3012
      %v3045 = vmul.f32 %v3013, %v3013
      %v3046 = vmul.f32 %v3014, %v3014
      %v3047 = vmul.f32 %v3015, %v3015
      %v3048 = vmul.f32 %v3016, %v3016
      %v3049 = vmul.f32 %v3017, %v3017
      %v3050 = vmul.f32 %v3018, %v3018
      %v3051 = vmul.f32 %v3019, %v3019
      %v3052 = vmul.f32 %v3020, %v3020
      %v3053 = vmul.f32 %v3021, %v3021
      %v3054 = vmul.f32 %v3022, %v3022
      %v3055 = vmul.f32 %v3023, %v3023
      %v3056 = vmul.f32 %v3024, %v3024
      %v3057 = vmul.f32 %v3025, %v3025
      %v3058 = vsel %vm346, %v3026, 0.0
      %3059 = vadd.xlane.f32.xlu0 %v3058
      %v3060 = vpop.xlane.xlu0 %3059
      %v3061 = vsel %vm346, %v3027, 0.0
      %3062 = vadd.xlane.f32.xlu0 %v3061
      %v3063 = vpop.xlane.xlu0 %3062
      %v3064 = vsel %vm346, %v3028, 0.0
      %3065 = vadd.xlane.f32.xlu0 %v3064
      %v3066 = vpop.xlane.xlu0 %3065
      %v3067 = vsel %vm346, %v3029, 0.0
      %3068 = vadd.xlane.f32.xlu0 %v3067
      %v3069 = vpop.xlane.xlu0 %3068
      %v3070 = vsel %vm346, %v3030, 0.0
      %3071 = vadd.xlane.f32.xlu0 %v3070
      %v3072 = vpop.xlane.xlu0 %3071
      %v3073 = vsel %vm346, %v3031, 0.0
      %3074 = vadd.xlane.f32.xlu0 %v3073
      %v3075 = vpop.xlane.xlu0 %3074
      %v3076 = vsel %vm346, %v3032, 0.0
      %3077 = vadd.xlane.f32.xlu0 %v3076
      %v3078 = vpop.xlane.xlu0 %3077
      %v3079 = vsel %vm346, %v3033, 0.0
      %3080 = vadd.xlane.f32.xlu0 %v3079
      %v3081 = vpop.xlane.xlu0 %3080
      %v3082 = vsel %vm346, %v3034, 0.0
      %3083 = vadd.xlane.f32.xlu0 %v3082
      %v3084 = vpop.xlane.xlu0 %3083
      %v3085 = vsel %vm346, %v3035, 0.0
      %3086 = vadd.xlane.f32.xlu0 %v3085
      %v3087 = vpop.xlane.xlu0 %3086
      %v3088 = vsel %vm346, %v3036, 0.0
      %3089 = vadd.xlane.f32.xlu0 %v3088
      %v3090 = vpop.xlane.xlu0 %3089
      %v3091 = vsel %vm346, %v3037, 0.0
      %3092 = vadd.xlane.f32.xlu0 %v3091
      %v3093 = vpop.xlane.xlu0 %3092
      %v3094 = vsel %vm346, %v3038, 0.0
      %3095 = vadd.xlane.f32.xlu0 %v3094
      %v3096 = vpop.xlane.xlu0 %3095
      %v3097 = vsel %vm346, %v3039, 0.0
      %3098 = vadd.xlane.f32.xlu0 %v3097
      %v3099 = vpop.xlane.xlu0 %3098
      %v3100 = vsel %vm346, %v3040, 0.0
      %3101 = vadd.xlane.f32.xlu0 %v3100
      %v3102 = vpop.xlane.xlu0 %3101
      %v3103 = vsel %vm346, %v3041, 0.0
      %3104 = vadd.xlane.f32.xlu0 %v3103
      %v3105 = vpop.xlane.xlu0 %3104
      %v3106 = vsel %vm346, %v3042, 0.0
      %3107 = vadd.xlane.f32.xlu0 %v3106
      %v3108 = vpop.xlane.xlu0 %3107
      %v3109 = vsel %vm346, %v3043, 0.0
      %3110 = vadd.xlane.f32.xlu0 %v3109
      %v3111 = vpop.xlane.xlu0 %3110
      %v3112 = vsel %vm346, %v3044, 0.0
      %3113 = vadd.xlane.f32.xlu0 %v3112
      %v3114 = vpop.xlane.xlu0 %3113
      %v3115 = vsel %vm346, %v3045, 0.0
      %3116 = vadd.xlane.f32.xlu0 %v3115
      %v3117 = vpop.xlane.xlu0 %3116
      %v3118 = vsel %vm346, %v3046, 0.0
      %3119 = vadd.xlane.f32.xlu0 %v3118
      %v3120 = vpop.xlane.xlu0 %3119
      %v3121 = vsel %vm346, %v3047, 0.0
      %3122 = vadd.xlane.f32.xlu0 %v3121
      %v3123 = vpop.xlane.xlu0 %3122
      %v3124 = vsel %vm346, %v3048, 0.0
      %3125 = vadd.xlane.f32.xlu0 %v3124
      %v3126 = vpop.xlane.xlu0 %3125
      %v3127 = vsel %vm346, %v3049, 0.0
      %3128 = vadd.xlane.f32.xlu0 %v3127
      %v3129 = vpop.xlane.xlu0 %3128
      %v3130 = vsel %vm346, %v3050, 0.0
      %3131 = vadd.xlane.f32.xlu0 %v3130
      %v3132 = vpop.xlane.xlu0 %3131
      %v3133 = vsel %vm346, %v3051, 0.0
      %3134 = vadd.xlane.f32.xlu0 %v3133
      %v3135 = vpop.xlane.xlu0 %3134
      %v3136 = vsel %vm346, %v3052, 0.0
      %3137 = vadd.xlane.f32.xlu0 %v3136
      %v3138 = vpop.xlane.xlu0 %3137
      %v3139 = vsel %vm346, %v3053, 0.0
      %3140 = vadd.xlane.f32.xlu0 %v3139
      %v3141 = vpop.xlane.xlu0 %3140
      %v3142 = vsel %vm346, %v3054, 0.0
      %3143 = vadd.xlane.f32.xlu0 %v3142
      %v3144 = vpop.xlane.xlu0 %3143
      %v3145 = vsel %vm346, %v3055, 0.0
      %3146 = vadd.xlane.f32.xlu0 %v3145
      %v3147 = vpop.xlane.xlu0 %3146
      %v3148 = vsel %vm346, %v3056, 0.0
      %3149 = vadd.xlane.f32.xlu0 %v3148
      %v3150 = vpop.xlane.xlu0 %3149
      %v3151 = vsel %vm346, %v3057, 0.0
      %3152 = vadd.xlane.f32.xlu0 %v3151
      %v3153 = vpop.xlane.xlu0 %3152
      %vm3154 = vcmask 7168
      %3155 = vst.msk [vmem:[%s280] sm:$0xff] %vm3154, %v3060
      %3156 = vst.msk [vmem:[%s280 + $0x8] sm:$0xff] %vm3154, %v3063
      %3157 = vst.msk [vmem:[%s280 + $0x10] sm:$0xff] %vm3154, %v3066
      %3158 = vst.msk [vmem:[%s280 + $0x18] sm:$0xff] %vm3154, %v3069
      %3159 = vst.msk [vmem:[%s280 + $0x20] sm:$0xff] %vm3154, %v3072
      %3160 = vst.msk [vmem:[%s280 + $0x28] sm:$0xff] %vm3154, %v3075
      %3161 = vst.msk [vmem:[%s280 + $0x30] sm:$0xff] %vm3154, %v3078
      %3162 = vst.msk [vmem:[%s280 + $0x38] sm:$0xff] %vm3154, %v3081
      %3163 = vst.msk [vmem:[%s280 + $0x40] sm:$0xff] %vm3154, %v3084
      %3164 = vst.msk [vmem:[%s280 + $0x48] sm:$0xff] %vm3154, %v3087
      %3165 = vst.msk [vmem:[%s280 + $0x50] sm:$0xff] %vm3154, %v3090
      %3166 = vst.msk [vmem:[%s280 + $0x58] sm:$0xff] %vm3154, %v3093
      %3167 = vst.msk [vmem:[%s280 + $0x60] sm:$0xff] %vm3154, %v3096
      %3168 = vst.msk [vmem:[%s280 + $0x68] sm:$0xff] %vm3154, %v3099
      %3169 = vst.msk [vmem:[%s280 + $0x70] sm:$0xff] %vm3154, %v3102
      %3170 = vst.msk [vmem:[%s280 + $0x78] sm:$0xff] %vm3154, %v3105
      %3171 = vst.msk [vmem:[%s280 + $0x80] sm:$0xff] %vm3154, %v3108
      %3172 = vst.msk [vmem:[%s280 + $0x88] sm:$0xff] %vm3154, %v3111
      %3173 = vst.msk [vmem:[%s280 + $0x90] sm:$0xff] %vm3154, %v3114
      %3174 = vst.msk [vmem:[%s280 + $0x98] sm:$0xff] %vm3154, %v3117
      %3175 = vst.msk [vmem:[%s280 + $0xa0] sm:$0xff] %vm3154, %v3120
      %3176 = vst.msk [vmem:[%s280 + $0xa8] sm:$0xff] %vm3154, %v3123
      %3177 = vst.msk [vmem:[%s280 + $0xb0] sm:$0xff] %vm3154, %v3126
      %3178 = vst.msk [vmem:[%s280 + $0xb8] sm:$0xff] %vm3154, %v3129
      %3179 = vst.msk [vmem:[%s280 + $0xc0] sm:$0xff] %vm3154, %v3132
      %3180 = vst.msk [vmem:[%s280 + $0xc8] sm:$0xff] %vm3154, %v3135
      %3181 = vst.msk [vmem:[%s280 + $0xd0] sm:$0xff] %vm3154, %v3138
      %3182 = vst.msk [vmem:[%s280 + $0xd8] sm:$0xff] %vm3154, %v3141
      %3183 = vst.msk [vmem:[%s280 + $0xe0] sm:$0xff] %vm3154, %v3144
      %3184 = vst.msk [vmem:[%s280 + $0xe8] sm:$0xff] %vm3154, %v3147
      %3185 = vst.msk [vmem:[%s280 + $0xf0] sm:$0xff] %vm3154, %v3150
      %3186 = vst.msk [vmem:[%s280 + $0xf8] sm:$0xff] %vm3154, %v3153
      %3187 = vst.msk [vmem:[%s274] sm:$0xff] %vm3154, %v1473
      %3188 = vst.msk [vmem:[%s274 + $0x8] sm:$0xff] %vm3154, %v1493
      %3189 = vst.msk [vmem:[%s274 + $0x10] sm:$0xff] %vm3154, %v1513
      %3190 = vst.msk [vmem:[%s274 + $0x18] sm:$0xff] %vm3154, %v1533
      %3191 = vst.msk [vmem:[%s274 + $0x20] sm:$0xff] %vm3154, %v1553
      %3192 = vst.msk [vmem:[%s274 + $0x28] sm:$0xff] %vm3154, %v1573
      %3193 = vst.msk [vmem:[%s274 + $0x30] sm:$0xff] %vm3154, %v1593
      %3194 = vst.msk [vmem:[%s274 + $0x38] sm:$0xff] %vm3154, %v1613
      %3195 = vst.msk [vmem:[%s274 + $0x40] sm:$0xff] %vm3154, %v1633
      %3196 = vst.msk [vmem:[%s274 + $0x48] sm:$0xff] %vm3154, %v1653
      %3197 = vst.msk [vmem:[%s274 + $0x50] sm:$0xff] %vm3154, %v1673
      %3198 = vst.msk [vmem:[%s274 + $0x58] sm:$0xff] %vm3154, %v1693
      %3199 = vst.msk [vmem:[%s274 + $0x60] sm:$0xff] %vm3154, %v1713
      %3200 = vst.msk [vmem:[%s274 + $0x68] sm:$0xff] %vm3154, %v1733
      %3201 = vst.msk [vmem:[%s274 + $0x70] sm:$0xff] %vm3154, %v1753
      %3202 = vst.msk [vmem:[%s274 + $0x78] sm:$0xff] %vm3154, %v1773
      %3203 = vst.msk [vmem:[%s274 + $0x80] sm:$0xff] %vm3154, %v1793
      %3204 = vst.msk [vmem:[%s274 + $0x88] sm:$0xff] %vm3154, %v1813
      %3205 = vst.msk [vmem:[%s274 + $0x90] sm:$0xff] %vm3154, %v1833
      %3206 = vst.msk [vmem:[%s274 + $0x98] sm:$0xff] %vm3154, %v1853
      %3207 = vst.msk [vmem:[%s274 + $0xa0] sm:$0xff] %vm3154, %v1873
      %3208 = vst.msk [vmem:[%s274 + $0xa8] sm:$0xff] %vm3154, %v1893
      %3209 = vst.msk [vmem:[%s274 + $0xb0] sm:$0xff] %vm3154, %v1913
      %3210 = vst.msk [vmem:[%s274 + $0xb8] sm:$0xff] %vm3154, %v1933
      %3211 = vst.msk [vmem:[%s274 + $0xc0] sm:$0xff] %vm3154, %v1953
      %3212 = vst.msk [vmem:[%s274 + $0xc8] sm:$0xff] %vm3154, %v1973
      %3213 = vst.msk [vmem:[%s274 + $0xd0] sm:$0xff] %vm3154, %v1993
      %3214 = vst.msk [vmem:[%s274 + $0xd8] sm:$0xff] %vm3154, %v2013
      %3215 = vst.msk [vmem:[%s274 + $0xe0] sm:$0xff] %vm3154, %v2033
      %3216 = vst.msk [vmem:[%s274 + $0xe8] sm:$0xff] %vm3154, %v2053
      %3217 = vst.msk [vmem:[%s274 + $0xf0] sm:$0xff] %vm3154, %v2073
      %3218 = vst.msk [vmem:[%s274 + $0xf8] sm:$0xff] %vm3154, %v2093
      %3219 = vst.msk [vmem:[%s268] sm:$0xff] %vm346, %v2899
      %3220 = vst.msk [vmem:[%s268 + $0x8] sm:$0xff] %vm346, %v2902
      %3221 = vst.msk [vmem:[%s268 + $0x10] sm:$0xff] %vm346, %v2905
      %3222 = vst.msk [vmem:[%s268 + $0x18] sm:$0xff] %vm346, %v2908
      %3223 = vst.msk [vmem:[%s268 + $0x20] sm:$0xff] %vm346, %v2911
      %3224 = vst.msk [vmem:[%s268 + $0x28] sm:$0xff] %vm346, %v2914
      %3225 = vst.msk [vmem:[%s268 + $0x30] sm:$0xff] %vm346, %v2917
      %3226 = vst.msk [vmem:[%s268 + $0x38] sm:$0xff] %vm346, %v2920
      %3227 = vst.msk [vmem:[%s268 + $0x40] sm:$0xff] %vm346, %v2923
      %3228 = vst.msk [vmem:[%s268 + $0x48] sm:$0xff] %vm346, %v2926
      %3229 = vst.msk [vmem:[%s268 + $0x50] sm:$0xff] %vm346, %v2929
      %3230 = vst.msk [vmem:[%s268 + $0x58] sm:$0xff] %vm346, %v2932
      %3231 = vst.msk [vmem:[%s268 + $0x60] sm:$0xff] %vm346, %v2935
      %3232 = vst.msk [vmem:[%s268 + $0x68] sm:$0xff] %vm346, %v2938
      %3233 = vst.msk [vmem:[%s268 + $0x70] sm:$0xff] %vm346, %v2941
      %3234 = vst.msk [vmem:[%s268 + $0x78] sm:$0xff] %vm346, %v2944
      %3235 = vst.msk [vmem:[%s268 + $0x80] sm:$0xff] %vm346, %v2947
      %3236 = vst.msk [vmem:[%s268 + $0x88] sm:$0xff] %vm346, %v2950
      %3237 = vst.msk [vmem:[%s268 + $0x90] sm:$0xff] %vm346, %v2953
      %3238 = vst.msk [vmem:[%s268 + $0x98] sm:$0xff] %vm346, %v2956
      %3239 = vst.msk [vmem:[%s268 + $0xa0] sm:$0xff] %vm346, %v2959
      %3240 = vst.msk [vmem:[%s268 + $0xa8] sm:$0xff] %vm346, %v2962
      %3241 = vst.msk [vmem:[%s268 + $0xb0] sm:$0xff] %vm346, %v2965
      %3242 = vst.msk [vmem:[%s268 + $0xb8] sm:$0xff] %vm346, %v2968
      %3243 = vst.msk [vmem:[%s268 + $0xc0] sm:$0xff] %vm346, %v2971
      %3244 = vst.msk [vmem:[%s268 + $0xc8] sm:$0xff] %vm346, %v2974
      %3245 = vst.msk [vmem:[%s268 + $0xd0] sm:$0xff] %vm346, %v2977
      %3246 = vst.msk [vmem:[%s268 + $0xd8] sm:$0xff] %vm346, %v2980
      %3247 = vst.msk [vmem:[%s268 + $0xe0] sm:$0xff] %vm346, %v2983
      %3248 = vst.msk [vmem:[%s268 + $0xe8] sm:$0xff] %vm346, %v2986
      %3249 = vst.msk [vmem:[%s268 + $0xf0] sm:$0xff] %vm346, %v2989
      %3250 = vst.msk [vmem:[%s268 + $0xf8] sm:$0xff] %vm346, %v2992
      %s3251 = smul.u32 32, %s18
      %p3252 = scmp.lt.s32.totalorder %s3251, 63
      %s3253 = scalar_select %p3252, %s3251, 63
      %s3254 = smul.addr %s3253, 8
      %s3255 = scalar_lea.vmem %s4, %s3254
      %s3256 = smul.u32 32, %s18
      %p3257 = scmp.lt.s32.totalorder %s3256, 63
      %s3258 = scalar_select %p3257, %s3256, 63
      %s3259 = smul.addr %s3258, 8
      %s3260 = scalar_lea.vmem %s5, %s3259
      %s3261 = smul.u32 32, %s18
      %p3262 = scmp.lt.s32.totalorder %s3261, 63
      %s3263 = scalar_select %p3262, %s3261, 63
      %s3264 = smul.addr %s3263, 8
      %s3265 = scalar_lea.vmem %s6, %s3264
      // Predicated region
      $region37: #{tpu_custom_call.1} parent=35 // pred_check
        %p3266 = pneg %p125
      $region38: #{tpu_custom_call.1} parent=35 // pred_check_branch
        %3268 = sbr.rel (%p3266) target = $region40
      $region39: #{tpu_custom_call.1} parent=35 // pred_region
        %s3269 = smul.u32 32, %s18
      $region40: #{tpu_custom_call.1} parent=35 // pred_fallthru
        _
      // Predicated region
      $region41: #{tpu_custom_call.1} parent=35 // pred_check
        %p3270 = pneg %p151
      $region42: #{tpu_custom_call.1} parent=35 // pred_check_branch
        %3272 = sbr.rel (%p3270) target = $region44
      $region43: #{tpu_custom_call.1} parent=35 // pred_region
        %s3273 = smul.u32 32, %s18
      $region44: #{tpu_custom_call.1} parent=35 // pred_fallthru
        _
      // Predicated region
      $region45: #{tpu_custom_call.1} parent=35 // pred_check
        %p3274 = pneg %p177
      $region46: #{tpu_custom_call.1} parent=35 // pred_check_branch
        %3276 = sbr.rel (%p3274) target = $region48
      $region47: #{tpu_custom_call.1} parent=35 // pred_region
        %s3277 = smul.u32 32, %s18
      $region48: #{tpu_custom_call.1} parent=35 // pred_fallthru
        _
    $region36: #{tpu_custom_call.1} parent=5 // pred_fallthru
      _
    %p3278 = scmp.le.s32.totalorder 2, %s13
    // Predicated region
    $region49: #{tpu_custom_call.1} parent=5 // pred_check
      %p3279 = pneg %p3278
    $region50: #{tpu_custom_call.1} parent=5 // pred_check_branch
      %3281 = sbr.rel (%p3279) target = $region52
    $region51: #{tpu_custom_call.1} parent=5 // pred_region
      %s3282 = ssub.s32 %s13, 2
      // Predicated region
      $region53: #{tpu_custom_call.1} parent=51 // pred_check
        %p3283 = pneg %p131
      $region54: #{tpu_custom_call.1} parent=51 // pred_check_branch
        %3285 = sbr.rel (%p3283) target = $region56
      $region55: #{tpu_custom_call.1} parent=51 // pred_region
        %s3286 = smul.u32 32, %s19
        %p3287 = scmp.lt.s32.totalorder %s3286, 63
        %s3288 = scalar_select %p3287, %s3286, 63
        %s3289 = smul.addr %s3288, 8
        %s3290 = scalar_lea.vmem %s4, %s3289
      $region56: #{tpu_custom_call.1} parent=51 // pred_fallthru
        _
      // Predicated region
      $region57: #{tpu_custom_call.1} parent=51 // pred_check
        %p3291 = pneg %p157
      $region58: #{tpu_custom_call.1} parent=51 // pred_check_branch
        %3293 = sbr.rel (%p3291) target = $region60
      $region59: #{tpu_custom_call.1} parent=51 // pred_region
        %s3294 = smul.u32 32, %s19
        %p3295 = scmp.lt.s32.totalorder %s3294, 63
        %s3296 = scalar_select %p3295, %s3294, 63
        %s3297 = smul.addr %s3296, 8
        %s3298 = scalar_lea.vmem %s5, %s3297
      $region60: #{tpu_custom_call.1} parent=51 // pred_fallthru
        _
      // Predicated region
      $region61: #{tpu_custom_call.1} parent=51 // pred_check
        %p3299 = pneg %p183
      $region62: #{tpu_custom_call.1} parent=51 // pred_check_branch
        %3301 = sbr.rel (%p3299) target = $region64
      $region63: #{tpu_custom_call.1} parent=51 // pred_region
        %s3302 = smul.u32 32, %s19
        %p3303 = scmp.lt.s32.totalorder %s3302, 63
        %s3304 = scalar_select %p3303, %s3302, 63
        %s3305 = smul.addr %s3304, 8
        %s3306 = scalar_lea.vmem %s6, %s3305
      $region64: #{tpu_custom_call.1} parent=51 // pred_fallthru
        _
    $region52: #{tpu_custom_call.1} parent=5 // pred_fallthru
      _
  $region6: #{tpu_custom_call.1} parent=0 // loop_footer
    %s17 = sadd.s32 1, %s13
  $region7: #{tpu_custom_call.1} parent=0 // loop_footer_branch
    %12 = sbr.rel target = $region3
  $region8: #{tpu_custom_call.1} parent=0 // loop_exit
    _

</llo_original>
